<compile_context>
chip_gen: v7x
topology: tpu7x:2x2x1
jax: 0.10.0
libtpu: 0.0.40
codegen_flags: <defaults>
</compile_context>

<pallas_src>
import functools
import math

import jax
import jax.numpy as jnp
from jax import lax
from jax.experimental import pallas as pl
from jax.experimental.pallas import tpu as pltpu

_INV_SQRT2 = 1.0 / math.sqrt(2.0)
_LN_EPS = 1e-5
_LANE = 128


def _round_up(v, m):
    return ((v + m - 1) // m) * m


def _vmem_limit_bytes():
    """Per-generation VMEM budget (v7x has only 64 MiB per TensorCore)."""
    cap = 64 * 1024 * 1024            # safe floor (v7x physical VMEM / TC)
    try:
        info = pltpu.get_tpu_info()
        cap = int(getattr(info, "vmem_capacity_bytes", cap)) or cap
    except Exception:
        pass
    return int(min(cap - 8 * 1024 * 1024, 100 * 1024 * 1024))


# ----------------------------- in-kernel math -----------------------------

def _gelu(x):
    # exact GELU (PyTorch nn.GELU default, approximate='none')
    # TODO(synk): on v6e/v7x a bf16 GELU would halve VPU/EUP work.
    return 0.5 * x * (1.0 + lax.erf(x * _INV_SQRT2))


def _layernorm_padded(x, gamma, beta, real_dim):
    # Two-pass LayerNorm over the real (unpadded) features. x has zeros in
    # padded lanes >= real_dim; the centered value is re-masked so padded
    # lanes contribute nothing to the variance and stay exactly zero in the
    # output (gamma/beta are zero-padded too).
    inv_d = 1.0 / float(real_dim)
    mean = jnp.sum(x, axis=-1, keepdims=True) * inv_d
    lane = lax.broadcasted_iota(jnp.int32, x.shape, 1)
    centered = jnp.where(lane < real_dim, x - mean, 0.0)
    var = jnp.sum(centered * centered, axis=-1, keepdims=True) * inv_d
    inv = lax.rsqrt(var + _LN_EPS)
    return centered * inv * gamma + beta


def _ff(h_f32, w1, b1, w2, b2):
    # Linear -> (dropout=identity) -> GELU -> Linear -> (dropout=identity)
    z = jnp.dot(h_f32.astype(jnp.bfloat16), w1,
                preferred_element_type=jnp.float32) + b1
    z = _gelu(z)
    z = jnp.dot(z.astype(jnp.bfloat16), w2,
                preferred_element_type=jnp.float32) + b2
    return z


# ------------------------------- fused kernel ------------------------------

def fused_layer_kernel(
        # resident operands (loaded once, single VMEM buffer)
        x_ref, x1_ref, adj_ref,
        in_w_ref, in_b_ref, in1_w_ref, in1_b_ref,
        # per-layer streamed weights (blocked over the layer grid axis)
        gcn_g_ref, gcn_bt_ref, gcn_w1_ref, gcn_b1_ref, gcn_w2_ref, gcn_b2_ref,
        ff_g_ref, ff_bt_ref, ff_w1_ref, ff_b1_ref, ff_w2_ref, ff_b2_ref,
        # output norms + split output linear (concat trick), resident
        og_ref, obt_ref, og1_ref, obt1_ref, owa_ref, owb_ref, ob_ref,
        # output
        o_ref,
        # persistent VMEM scratch carrying the hidden states across layers
        h_ref, h1_ref,
        *, hidden_dim, hidden_dim_1, num_layers, num_layers_1):
    l = pl.program_id(0)
    last = pl.num_programs(0) - 1

    # ----- input projections (once, at the first grid step) -----
    @pl.when(l == 0)
    def _init():
        h = jnp.dot(x_ref[...], in_w_ref[...],
                    preferred_element_type=jnp.float32)
        h_ref[...] = _gelu(h + in_b_ref[...])       # dropout == identity (eval)
        h1 = jnp.dot(x1_ref[...], in1_w_ref[...],
                     preferred_element_type=jnp.float32)
        h1_ref[...] = _gelu(h1 + in1_b_ref[...])

    # ----- one GCN residual layer -----
    @pl.when(l < num_layers)
    def _gcn_layer():
        h = h_ref[...]
        ln = _layernorm_padded(h, gcn_g_ref[...], gcn_bt_ref[...], hidden_dim)
        agg = jnp.dot(adj_ref[...], ln.astype(jnp.bfloat16),
                      preferred_element_type=jnp.float32)
        h_ref[...] = h + _ff(agg, gcn_w1_ref[...], gcn_b1_ref[...],
                             gcn_w2_ref[...], gcn_b2_ref[...])

    # ----- one MLP (FeedForward) residual layer -----
    @pl.when(l < num_layers_1)
    def _ff_layer():
        h1 = h1_ref[...]
        ln = _layernorm_padded(h1, ff_g_ref[...], ff_bt_ref[...], hidden_dim_1)
        h1_ref[...] = h1 + _ff(ln, ff_w1_ref[...], ff_b1_ref[...],
                               ff_w2_ref[...], ff_b2_ref[...])

    # ----- output norms + concat-linear head (once, at the last step) -----
    @pl.when(l == last)
    def _head():
        xa = _layernorm_padded(h_ref[...], og_ref[...], obt_ref[...],
                               hidden_dim)
        xb = _layernorm_padded(h1_ref[...], og1_ref[...], obt1_ref[...],
                               hidden_dim_1)
        # Linear(cat([xa, xb], dim=1)) == xa @ W[:H] + xb @ W[H:] + b
        o_ref[...] = (
            jnp.dot(xa.astype(jnp.bfloat16), owa_ref[...],
                    preferred_element_type=jnp.float32)
            + jnp.dot(xb.astype(jnp.bfloat16), owb_ref[...],
                      preferred_element_type=jnp.float32)
            + ob_ref[...])


# --------------------------- pallas_call glue ------------------------------

def _pad2(a, rows, cols):
    return jnp.pad(a, ((0, rows - a.shape[0]), (0, cols - a.shape[1])))


def _resident_spec():
    # Whole array placed in VMEM for the kernel's lifetime, not pipelined
    # (avoids double-buffering operands that are loaded exactly once).
    return pl.BlockSpec(memory_space=pltpu.MemorySpace.VMEM)


def _layer_spec(rows, cols):
    # One layer's weight block per grid step; double-buffered by the pipeline
    # so layer l+1's DMA overlaps layer l's compute.
    return pl.BlockSpec((None, rows, cols), lambda l: (l, 0, 0))


# ------------------------- parameters & forward ----------------------------

def init_params(key, input_dim, input_dim_1, hidden_dim, hidden_dim_1,
                output_dim, hidden_dim_multiplier, num_layers, num_layers_1):
    def linear(k, fan_in, fan_out):
        kw, kb = jax.random.split(k)
        bound = 1.0 / math.sqrt(fan_in)
        w = jax.random.uniform(kw, (fan_in, fan_out), jnp.float32, -bound, bound)
        b = jax.random.uniform(kb, (1, fan_out), jnp.float32, -bound, bound)
        return w, b

    keys = iter(jax.random.split(key, 8 + 2 * (num_layers + num_layers_1)))
    p = {}
    p["in_w"], p["in_b"] = linear(next(keys), input_dim, hidden_dim)
    p["in1_w"], p["in1_b"] = linear(next(keys), input_dim_1, hidden_dim_1)

    mh = hidden_dim * hidden_dim_multiplier
    mh1 = hidden_dim_1 * hidden_dim_multiplier

    p["gcn_layers"] = []
    for _ in range(num_layers):
        w1, b1 = linear(next(keys), hidden_dim, mh)
        w2, b2 = linear(next(keys), mh, hidden_dim)
        p["gcn_layers"].append(dict(
            ln_g=jnp.ones((1, hidden_dim), jnp.float32),
            ln_b=jnp.zeros((1, hidden_dim), jnp.float32),
            w1=w1, b1=b1, w2=w2, b2=b2))

    p["ff_layers"] = []
    for _ in range(num_layers_1):
        w1, b1 = linear(next(keys), hidden_dim_1, mh1)
        w2, b2 = linear(next(keys), mh1, hidden_dim_1)
        p["ff_layers"].append(dict(
            ln_g=jnp.ones((1, hidden_dim_1), jnp.float32),
            ln_b=jnp.zeros((1, hidden_dim_1), jnp.float32),
            w1=w1, b1=b1, w2=w2, b2=b2))

    p["out_ln_g"] = jnp.ones((1, hidden_dim), jnp.float32)
    p["out_ln_b"] = jnp.zeros((1, hidden_dim), jnp.float32)
    p["out_ln1_g"] = jnp.ones((1, hidden_dim_1), jnp.float32)
    p["out_ln1_b"] = jnp.zeros((1, hidden_dim_1), jnp.float32)
    wo, bo = linear(next(keys), hidden_dim + hidden_dim_1, output_dim)
    p["out_w_a"] = wo[:hidden_dim]      # half applied to the GCN branch
    p["out_w_b"] = wo[hidden_dim:]      # half applied to the MLP branch
    p["out_b"] = bo
    return p


def model_forward(params, adj_norm, x, x_1, output_dim):
    n, input_dim = x.shape
    input_dim_1 = x_1.shape[1]
    hidden_dim = params["in_w"].shape[1]
    hidden_dim_1 = params["in1_w"].shape[1]
    inner = params["gcn_layers"][0]["w1"].shape[1]
    inner_1 = params["ff_layers"][0]["w1"].shape[1]
    num_layers = len(params["gcn_layers"])
    num_layers_1 = len(params["ff_layers"])
    grid_l = max(num_layers, num_layers_1, 1)   # one grid step per layer

    bf, f32 = jnp.bfloat16, jnp.float32

    # padded (lane-dense) dims; node dim padded to 128 so the adjacency's
    # contraction dim and all tiles are unmasked
    np_ = _round_up(n, _LANE)
    ip = _round_up(input_dim, _LANE)
    ip1 = _round_up(input_dim_1, _LANE)
    hp = _round_up(hidden_dim, _LANE)
    hp1 = _round_up(hidden_dim_1, _LANE)
    mp = _round_up(inner, _LANE)
    mp1 = _round_up(inner_1, _LANE)
    op = _round_up(output_dim, _LANE)

    # zero-pad once on the host; MXU operands in bf16, LN params / biases f32
    x_p = _pad2(x, np_, ip).astype(bf)
    x1_p = _pad2(x_1, np_, ip1).astype(bf)
    adj_p = _pad2(adj_norm, np_, np_).astype(bf)

    in_w = _pad2(params["in_w"], ip, hp).astype(bf)
    in_b = _pad2(params["in_b"], 1, hp).astype(f32)
    in1_w = _pad2(params["in1_w"], ip1, hp1).astype(bf)
    in1_b = _pad2(params["in1_b"], 1, hp1).astype(f32)

    def stack(layers, key, rows, cols, dtype):
        # pad-and-stack per-layer params; pad the layer axis to grid_l with
        # zero layers (a zero layer is an exact identity residual step)
        mats = [_pad2(lp[key], rows, cols).astype(dtype) for lp in layers]
        mats += [jnp.zeros((rows, cols), dtype)] * (grid_l - len(mats))
        return jnp.stack(mats)

    gcn_g = stack(params["gcn_layers"], "ln_g", 1, hp, f32)
    gcn_bt = stack(params["gcn_layers"], "ln_b", 1, hp, f32)
    gcn_w1 = stack(params["gcn_layers"], "w1", hp, mp, bf)
    gcn_b1 = stack(params["gcn_layers"], "b1", 1, mp, f32)
    gcn_w2 = stack(params["gcn_layers"], "w2", mp, hp, bf)
    gcn_b2 = stack(params["gcn_layers"], "b2", 1, hp, f32)

    ff_g = stack(params["ff_layers"], "ln_g", 1, hp1, f32)
    ff_bt = stack(params["ff_layers"], "ln_b", 1, hp1, f32)
    ff_w1 = stack(params["ff_layers"], "w1", hp1, mp1, bf)
    ff_b1 = stack(params["ff_layers"], "b1", 1, mp1, f32)
    ff_w2 = stack(params["ff_layers"], "w2", mp1, hp1, bf)
    ff_b2 = stack(params["ff_layers"], "b2", 1, hp1, f32)

    og = _pad2(params["out_ln_g"], 1, hp).astype(f32)
    obt = _pad2(params["out_ln_b"], 1, hp).astype(f32)
    og1 = _pad2(params["out_ln1_g"], 1, hp1).astype(f32)
    obt1 = _pad2(params["out_ln1_b"], 1, hp1).astype(f32)
    owa = _pad2(params["out_w_a"], hp, op).astype(bf)
    owb = _pad2(params["out_w_b"], hp1, op).astype(bf)
    ob = _pad2(params["out_b"], 1, op).astype(f32)

    args = (x_p, x1_p, adj_p,
            in_w, in_b, in1_w, in1_b,
            gcn_g, gcn_bt, gcn_w1, gcn_b1, gcn_w2, gcn_b2,
            ff_g, ff_bt, ff_w1, ff_b1, ff_w2, ff_b2,
            og, obt, og1, obt1, owa, owb, ob)

    in_specs = [
        # loaded once, resident in a single VMEM buffer
        _resident_spec(), _resident_spec(), _resident_spec(),      # x, x1, adj
        _resident_spec(), _resident_spec(),                        # in_w, in_b
        _resident_spec(), _resident_spec(),                        # in1_w, in1_b
        # streamed per layer (double-buffered, overlaps compute)
        _layer_spec(1, hp), _layer_spec(1, hp),                    # gcn LN g/b
        _layer_spec(hp, mp), _layer_spec(1, mp),                   # gcn w1/b1
        _layer_spec(mp, hp), _layer_spec(1, hp),                   # gcn w2/b2
        _layer_spec(1, hp1), _layer_spec(1, hp1),                  # ff LN g/b
        _layer_spec(hp1, mp1), _layer_spec(1, mp1),                # ff w1/b1
        _layer_spec(mp1, hp1), _layer_spec(1, hp1),                # ff w2/b2
        # head params, loaded once
        _resident_spec(), _resident_spec(), _resident_spec(), _resident_spec(),
        _resident_spec(), _resident_spec(), _resident_spec(),
    ]

    kernel = functools.partial(
        fused_layer_kernel,
        hidden_dim=hidden_dim, hidden_dim_1=hidden_dim_1,
        num_layers=num_layers, num_layers_1=num_layers_1)

    out_p = pl.pallas_call(
        kernel,
        out_shape=jax.ShapeDtypeStruct((np_, op), f32),
        grid=(grid_l,),
        in_specs=in_specs,
        out_specs=pl.BlockSpec((np_, op), lambda l: (0, 0)),
        scratch_shapes=[pltpu.VMEM((np_, hp), f32),    # h  (GCN branch)
                        pltpu.VMEM((np_, hp1), f32)],  # h1 (MLP branch)
        compiler_params=pltpu.CompilerParams(
            dimension_semantics=("arbitrary",),        # serial layer carry
            vmem_limit_bytes=_vmem_limit_bytes()),
    )(*args)

    out = out_p[:n, :output_dim]
    if output_dim == 1:
        out = out[:, 0]     # torch .squeeze(1)
    return out


# --------------------------------- main ------------------------------------

if __name__ == "__main__":
    key = jax.random.PRNGKey(0)
    k_adj, k_x, k_x1, k_p = jax.random.split(key, 4)

    # small shapes consistent with the module
    N = 16                        # graph nodes
    input_dim, input_dim_1 = 12, 10
    hidden_dim, hidden_dim_1 = 32, 24
    hidden_dim_multiplier = 2
    num_layers, num_layers_1 = 2, 2
    output_dim = 1

    # deterministic undirected graph with self-loops, GCN-normalized (dense)
    a = jax.random.bernoulli(k_adj, 0.3, (N, N)).astype(jnp.float32)
    a = jnp.maximum(a, a.T)
    a = jnp.maximum(a, jnp.eye(N, dtype=jnp.float32))
    deg = jnp.sum(a, axis=1)
    d_inv_sqrt = 1.0 / jnp.sqrt(deg)
    adj_norm = a * d_inv_sqrt[:, None] * d_inv_sqrt[None, :]

    x = jax.random.normal(k_x, (N, input_dim), jnp.float32)
    x_1 = jax.random.normal(k_x1, (N, input_dim_1), jnp.float32)

    params = init_params(k_p, input_dim, input_dim_1, hidden_dim, hidden_dim_1,
                         output_dim, hidden_dim_multiplier,
                         num_layers, num_layers_1)

    out = model_forward(params, adj_norm, x, x_1, output_dim)
    out = jax.block_until_ready(out)
    assert out.shape == (N,), out.shape
    print("KERNEL_OK")
</pallas_src>

<mosaic_0001>
module attributes {stable_mosaic.version = 11 : i64} {
  func.func @fused_layer_kernel(%arg0: i32, %arg1: memref<128x128xbf16, #tpu.memory_space<vmem>>, %arg2: memref<128x128xbf16, #tpu.memory_space<vmem>>, %arg3: memref<128x128xbf16, #tpu.memory_space<vmem>>, %arg4: memref<128x128xbf16, #tpu.memory_space<vmem>>, %arg5: memref<1x128xf32, #tpu.memory_space<vmem>>, %arg6: memref<128x128xbf16, #tpu.memory_space<vmem>>, %arg7: memref<1x128xf32, #tpu.memory_space<vmem>>, %arg8: memref<1x1x128xf32, #tpu.memory_space<vmem>>, %arg9: memref<1x1x128xf32, #tpu.memory_space<vmem>>, %arg10: memref<1x128x128xbf16, #tpu.memory_space<vmem>>, %arg11: memref<1x1x128xf32, #tpu.memory_space<vmem>>, %arg12: memref<1x128x128xbf16, #tpu.memory_space<vmem>>, %arg13: memref<1x1x128xf32, #tpu.memory_space<vmem>>, %arg14: memref<1x1x128xf32, #tpu.memory_space<vmem>>, %arg15: memref<1x1x128xf32, #tpu.memory_space<vmem>>, %arg16: memref<1x128x128xbf16, #tpu.memory_space<vmem>>, %arg17: memref<1x1x128xf32, #tpu.memory_space<vmem>>, %arg18: memref<1x128x128xbf16, #tpu.memory_space<vmem>>, %arg19: memref<1x1x128xf32, #tpu.memory_space<vmem>>, %arg20: memref<1x128xf32, #tpu.memory_space<vmem>>, %arg21: memref<1x128xf32, #tpu.memory_space<vmem>>, %arg22: memref<1x128xf32, #tpu.memory_space<vmem>>, %arg23: memref<1x128xf32, #tpu.memory_space<vmem>>, %arg24: memref<128x128xbf16, #tpu.memory_space<vmem>>, %arg25: memref<128x128xbf16, #tpu.memory_space<vmem>>, %arg26: memref<1x128xf32, #tpu.memory_space<vmem>>, %arg27: memref<128x128xf32, #tpu.memory_space<vmem>>, %arg28: memref<128x128xf32, #tpu.memory_space<vmem>>, %arg29: memref<128x128xf32, #tpu.memory_space<vmem>>) attributes {dimension_semantics = [#tpu.dimension_semantics<arbitrary>], iteration_bounds = array<i64: 2>, scalar_prefetch = 0 : i64, scratch_operands = 2 : i64, tpu.core_type = #tpu.core_type<tc>, window_params = [{pipeline_mode = #tpu.pipeline_mode<synchronous>, transform_indices = @transform_0, window_bounds = array<i64: 128, 128>}, {pipeline_mode = #tpu.pipeline_mode<synchronous>, transform_indices = @transform_1, window_bounds = array<i64: 128, 128>}, {pipeline_mode = #tpu.pipeline_mode<synchronous>, transform_indices = @transform_2, window_bounds = array<i64: 128, 128>}, {pipeline_mode = #tpu.pipeline_mode<synchronous>, transform_indices = @transform_3, window_bounds = array<i64: 128, 128>}, {pipeline_mode = #tpu.pipeline_mode<synchronous>, transform_indices = @transform_4, window_bounds = array<i64: 1, 128>}, {pipeline_mode = #tpu.pipeline_mode<synchronous>, transform_indices = @transform_5, window_bounds = array<i64: 128, 128>}, {pipeline_mode = #tpu.pipeline_mode<synchronous>, transform_indices = @transform_6, window_bounds = array<i64: 1, 128>}, {transform_indices = @transform_7, window_bounds = array<i64: 1, 1, 128>}, {transform_indices = @transform_8, window_bounds = array<i64: 1, 1, 128>}, {transform_indices = @transform_9, window_bounds = array<i64: 1, 128, 128>}, {transform_indices = @transform_10, window_bounds = array<i64: 1, 1, 128>}, {transform_indices = @transform_11, window_bounds = array<i64: 1, 128, 128>}, {transform_indices = @transform_12, window_bounds = array<i64: 1, 1, 128>}, {transform_indices = @transform_13, window_bounds = array<i64: 1, 1, 128>}, {transform_indices = @transform_14, window_bounds = array<i64: 1, 1, 128>}, {transform_indices = @transform_15, window_bounds = array<i64: 1, 128, 128>}, {transform_indices = @transform_16, window_bounds = array<i64: 1, 1, 128>}, {transform_indices = @transform_17, window_bounds = array<i64: 1, 128, 128>}, {transform_indices = @transform_18, window_bounds = array<i64: 1, 1, 128>}, {pipeline_mode = #tpu.pipeline_mode<synchronous>, transform_indices = @transform_19, window_bounds = array<i64: 1, 128>}, {pipeline_mode = #tpu.pipeline_mode<synchronous>, transform_indices = @transform_20, window_bounds = array<i64: 1, 128>}, {pipeline_mode = #tpu.pipeline_mode<synchronous>, transform_indices = @transform_21, window_bounds = array<i64: 1, 128>}, {pipeline_mode = #tpu.pipeline_mode<synchronous>, transform_indices = @transform_22, window_bounds = array<i64: 1, 128>}, {pipeline_mode = #tpu.pipeline_mode<synchronous>, transform_indices = @transform_23, window_bounds = array<i64: 128, 128>}, {pipeline_mode = #tpu.pipeline_mode<synchronous>, transform_indices = @transform_24, window_bounds = array<i64: 128, 128>}, {pipeline_mode = #tpu.pipeline_mode<synchronous>, transform_indices = @transform_25, window_bounds = array<i64: 1, 128>}, {pipeline_mode = #tpu.pipeline_mode<synchronous>, transform_indices = @transform_26, window_bounds = array<i64: 128, 128>}]} {
    %c0_i32 = arith.constant 0 : i32
    %0 = arith.cmpi eq, %arg0, %c0_i32 : i32
    %1 = arith.extui %0 : i1 to i32
    %c0_i32_0 = arith.constant 0 : i32
    %2 = arith.cmpi ne, %1, %c0_i32_0 : i32
    scf.if %2 {
      %c0 = arith.constant 0 : index
      %c0_5 = arith.constant 0 : index
      %12 = vector.load %arg1[%c0, %c0_5] : memref<128x128xbf16, #tpu.memory_space<vmem>>, vector<128x128xbf16>
      %c0_6 = arith.constant 0 : index
      %c0_7 = arith.constant 0 : index
      %13 = vector.load %arg4[%c0_6, %c0_7] : memref<128x128xbf16, #tpu.memory_space<vmem>>, vector<128x128xbf16>
      %cst = arith.constant dense<0.000000e+00> : vector<128x128xf32>
      %14 = tpu.matmul %12, %13, %cst {dimension_numbers = #tpu.dot_dimension_numbers<[1], [0], [0], [1], [0, 0, 1, 1], [], []>} : vector<128x128xbf16>, vector<128x128xbf16>, vector<128x128xf32> -> vector<128x128xf32>
      %c0_8 = arith.constant 0 : index
      %c0_9 = arith.constant 0 : index
      %15 = vector.load %arg5[%c0_8, %c0_9] : memref<1x128xf32, #tpu.memory_space<vmem>>, vector<1x128xf32>
      %16 = vector.broadcast %15 : vector<1x128xf32> to vector<128x128xf32>
      %17 = arith.addf %14, %16 : vector<128x128xf32>
      %cst_10 = arith.constant 5.000000e-01 : f32
      %18 = vector.broadcast %cst_10 : f32 to vector<128x128xf32>
      %19 = arith.mulf %18, %17 : vector<128x128xf32>
      %cst_11 = arith.constant 0.707106769 : f32
      %20 = vector.broadcast %cst_11 : f32 to vector<128x128xf32>
      %21 = arith.mulf %17, %20 : vector<128x128xf32>
      %22 = math.erf %21 : vector<128x128xf32>
      %cst_12 = arith.constant 1.000000e+00 : f32
      %23 = vector.broadcast %cst_12 : f32 to vector<128x128xf32>
      %24 = arith.addf %23, %22 : vector<128x128xf32>
      %25 = arith.mulf %19, %24 : vector<128x128xf32>
      %c0_13 = arith.constant 0 : index
      %c0_14 = arith.constant 0 : index
      %26 = vector.load %arg28[%c0_13, %c0_14] : memref<128x128xf32, #tpu.memory_space<vmem>>, vector<128x128xf32>
      tpu.vector_store %arg28[%c0_13, %c0_14], %25 {strides = array<i32>} : memref<128x128xf32, #tpu.memory_space<vmem>>, vector<128x128xf32>,
      %c0_15 = arith.constant 0 : index
      %c0_16 = arith.constant 0 : index
      %27 = vector.load %arg2[%c0_15, %c0_16] : memref<128x128xbf16, #tpu.memory_space<vmem>>, vector<128x128xbf16>
      %c0_17 = arith.constant 0 : index
      %c0_18 = arith.constant 0 : index
      %28 = vector.load %arg6[%c0_17, %c0_18] : memref<128x128xbf16, #tpu.memory_space<vmem>>, vector<128x128xbf16>
      %cst_19 = arith.constant dense<0.000000e+00> : vector<128x128xf32>
      %29 = tpu.matmul %27, %28, %cst_19 {dimension_numbers = #tpu.dot_dimension_numbers<[1], [0], [0], [1], [0, 0, 1, 1], [], []>} : vector<128x128xbf16>, vector<128x128xbf16>, vector<128x128xf32> -> vector<128x128xf32>
      %c0_20 = arith.constant 0 : index
      %c0_21 = arith.constant 0 : index
      %30 = vector.load %arg7[%c0_20, %c0_21] : memref<1x128xf32, #tpu.memory_space<vmem>>, vector<1x128xf32>
      %31 = vector.broadcast %30 : vector<1x128xf32> to vector<128x128xf32>
      %32 = arith.addf %29, %31 : vector<128x128xf32>
      %cst_22 = arith.constant 5.000000e-01 : f32
      %33 = vector.broadcast %cst_22 : f32 to vector<128x128xf32>
      %34 = arith.mulf %33, %32 : vector<128x128xf32>
      %cst_23 = arith.constant 0.707106769 : f32
      %35 = vector.broadcast %cst_23 : f32 to vector<128x128xf32>
      %36 = arith.mulf %32, %35 : vector<128x128xf32>
      %37 = math.erf %36 : vector<128x128xf32>
      %cst_24 = arith.constant 1.000000e+00 : f32
      %38 = vector.broadcast %cst_24 : f32 to vector<128x128xf32>
      %39 = arith.addf %38, %37 : vector<128x128xf32>
      %40 = arith.mulf %34, %39 : vector<128x128xf32>
      %c0_25 = arith.constant 0 : index
      %c0_26 = arith.constant 0 : index
      %41 = vector.load %arg29[%c0_25, %c0_26] : memref<128x128xf32, #tpu.memory_space<vmem>>, vector<128x128xf32>
      tpu.vector_store %arg29[%c0_25, %c0_26], %40 {strides = array<i32>} : memref<128x128xf32, #tpu.memory_space<vmem>>, vector<128x128xf32>,
    } else {
    }
    %c2_i32 = arith.constant 2 : i32
    %3 = arith.cmpi slt, %arg0, %c2_i32 : i32
    %4 = arith.extui %3 : i1 to i32
    %c0_i32_1 = arith.constant 0 : i32
    %5 = arith.cmpi ne, %4, %c0_i32_1 : i32
    scf.if %5 {
      %c0 = arith.constant 0 : index
      %c0_5 = arith.constant 0 : index
      %12 = vector.load %arg28[%c0, %c0_5] : memref<128x128xf32, #tpu.memory_space<vmem>>, vector<128x128xf32>
      %c0_6 = arith.constant 0 : index
      %c0_7 = arith.constant 0 : index
      %c0_8 = arith.constant 0 : index
      %13 = vector.load %arg8[%c0_6, %c0_7, %c0_8] : memref<1x1x128xf32, #tpu.memory_space<vmem>>, vector<1x1x128xf32>
      %14 = vector.shape_cast %13 : vector<1x1x128xf32> to vector<1x128xf32>
      %c0_9 = arith.constant 0 : index
      %c0_10 = arith.constant 0 : index
      %c0_11 = arith.constant 0 : index
      %15 = vector.load %arg9[%c0_9, %c0_10, %c0_11] : memref<1x1x128xf32, #tpu.memory_space<vmem>>, vector<1x1x128xf32>
      %16 = vector.shape_cast %15 : vector<1x1x128xf32> to vector<1x128xf32>
      %cst = arith.constant dense<0.000000e+00> : vector<128xf32>
      %17 = vector.multi_reduction <add>, %12, %cst [1] : vector<128x128xf32> to vector<128xf32>
      %18 = vector.shape_cast %17 : vector<128xf32> to vector<128x1xf32>
      %cst_12 = arith.constant 3.125000e-02 : f32
      %19 = vector.broadcast %cst_12 : f32 to vector<128x1xf32>
      %20 = arith.mulf %18, %19 : vector<128x1xf32>
      %21 = tpu.iota {dimensions = array<i32: 1>} : vector<128x128xi32>
      %c32_i32 = arith.constant 32 : i32
      %22 = vector.broadcast %c32_i32 : i32 to vector<128x128xi32>
      %23 = arith.cmpi slt, %21, %22 : vector<128x128xi32>
      %24 = vector.broadcast %20 : vector<128x1xf32> to vector<128x128xf32>
      %25 = arith.subf %12, %24 : vector<128x128xf32>
      %cst_13 = arith.constant 0.000000e+00 : f32
      %26 = vector.broadcast %cst_13 : f32 to vector<128x128xf32>
      %27 = arith.select %23, %25, %26 : vector<128x128xi1>, vector<128x128xf32>
      %28 = arith.mulf %27, %27 : vector<128x128xf32>
      %cst_14 = arith.constant dense<0.000000e+00> : vector<128xf32>
      %29 = vector.multi_reduction <add>, %28, %cst_14 [1] : vector<128x128xf32> to vector<128xf32>
      %30 = vector.shape_cast %29 : vector<128xf32> to vector<128x1xf32>
      %cst_15 = arith.constant 3.125000e-02 : f32
      %31 = vector.broadcast %cst_15 : f32 to vector<128x1xf32>
      %32 = arith.mulf %30, %31 : vector<128x1xf32>
      %cst_16 = arith.constant 9.99999974E-6 : f32
      %33 = vector.broadcast %cst_16 : f32 to vector<128x1xf32>
      %34 = arith.addf %32, %33 : vector<128x1xf32>
      %35 = math.rsqrt %34 : vector<128x1xf32>
      %36 = vector.broadcast %35 : vector<128x1xf32> to vector<128x128xf32>
      %37 = arith.mulf %27, %36 : vector<128x128xf32>
      %38 = vector.broadcast %14 : vector<1x128xf32> to vector<128x128xf32>
      %39 = arith.mulf %37, %38 : vector<128x128xf32>
      %40 = vector.broadcast %16 : vector<1x128xf32> to vector<128x128xf32>
      %41 = arith.addf %39, %40 : vector<128x128xf32>
      %c0_17 = arith.constant 0 : index
      %c0_18 = arith.constant 0 : index
      %42 = vector.load %arg3[%c0_17, %c0_18] : memref<128x128xbf16, #tpu.memory_space<vmem>>, vector<128x128xbf16>
      %43 = arith.truncf %41 : vector<128x128xf32> to vector<128x128xbf16>
      %cst_19 = arith.constant dense<0.000000e+00> : vector<128x128xf32>
      %44 = tpu.matmul %42, %43, %cst_19 {dimension_numbers = #tpu.dot_dimension_numbers<[1], [0], [0], [1], [0, 0, 1, 1], [], []>} : vector<128x128xbf16>, vector<128x128xbf16>, vector<128x128xf32> -> vector<128x128xf32>
      %c0_20 = arith.constant 0 : index
      %c0_21 = arith.constant 0 : index
      %c0_22 = arith.constant 0 : index
      %45 = vector.load %arg10[%c0_20, %c0_21, %c0_22] : memref<1x128x128xbf16, #tpu.memory_space<vmem>>, vector<1x128x128xbf16>
      %46 = vector.shape_cast %45 : vector<1x128x128xbf16> to vector<128x128xbf16>
      %c0_23 = arith.constant 0 : index
      %c0_24 = arith.constant 0 : index
      %c0_25 = arith.constant 0 : index
      %47 = vector.load %arg11[%c0_23, %c0_24, %c0_25] : memref<1x1x128xf32, #tpu.memory_space<vmem>>, vector<1x1x128xf32>
      %48 = vector.shape_cast %47 : vector<1x1x128xf32> to vector<1x128xf32>
      %c0_26 = arith.constant 0 : index
      %c0_27 = arith.constant 0 : index
      %c0_28 = arith.constant 0 : index
      %49 = vector.load %arg12[%c0_26, %c0_27, %c0_28] : memref<1x128x128xbf16, #tpu.memory_space<vmem>>, vector<1x128x128xbf16>
      %50 = vector.shape_cast %49 : vector<1x128x128xbf16> to vector<128x128xbf16>
      %c0_29 = arith.constant 0 : index
      %c0_30 = arith.constant 0 : index
      %c0_31 = arith.constant 0 : index
      %51 = vector.load %arg13[%c0_29, %c0_30, %c0_31] : memref<1x1x128xf32, #tpu.memory_space<vmem>>, vector<1x1x128xf32>
      %52 = vector.shape_cast %51 : vector<1x1x128xf32> to vector<1x128xf32>
      %53 = arith.truncf %44 : vector<128x128xf32> to vector<128x128xbf16>
      %cst_32 = arith.constant dense<0.000000e+00> : vector<128x128xf32>
      %54 = tpu.matmul %53, %46, %cst_32 {dimension_numbers = #tpu.dot_dimension_numbers<[1], [0], [0], [1], [0, 0, 1, 1], [], []>} : vector<128x128xbf16>, vector<128x128xbf16>, vector<128x128xf32> -> vector<128x128xf32>
      %55 = vector.broadcast %48 : vector<1x128xf32> to vector<128x128xf32>
      %56 = arith.addf %54, %55 : vector<128x128xf32>
      %cst_33 = arith.constant 5.000000e-01 : f32
      %57 = vector.broadcast %cst_33 : f32 to vector<128x128xf32>
      %58 = arith.mulf %57, %56 : vector<128x128xf32>
      %cst_34 = arith.constant 0.707106769 : f32
      %59 = vector.broadcast %cst_34 : f32 to vector<128x128xf32>
      %60 = arith.mulf %56, %59 : vector<128x128xf32>
      %61 = math.erf %60 : vector<128x128xf32>
      %cst_35 = arith.constant 1.000000e+00 : f32
      %62 = vector.broadcast %cst_35 : f32 to vector<128x128xf32>
      %63 = arith.addf %62, %61 : vector<128x128xf32>
      %64 = arith.mulf %58, %63 : vector<128x128xf32>
      %65 = arith.truncf %64 : vector<128x128xf32> to vector<128x128xbf16>
      %cst_36 = arith.constant dense<0.000000e+00> : vector<128x128xf32>
      %66 = tpu.matmul %65, %50, %cst_36 {dimension_numbers = #tpu.dot_dimension_numbers<[1], [0], [0], [1], [0, 0, 1, 1], [], []>} : vector<128x128xbf16>, vector<128x128xbf16>, vector<128x128xf32> -> vector<128x128xf32>
      %67 = vector.broadcast %52 : vector<1x128xf32> to vector<128x128xf32>
      %68 = arith.addf %66, %67 : vector<128x128xf32>
      %69 = arith.addf %12, %68 : vector<128x128xf32>
      %c0_37 = arith.constant 0 : index
      %c0_38 = arith.constant 0 : index
      %70 = vector.load %arg28[%c0_37, %c0_38] : memref<128x128xf32, #tpu.memory_space<vmem>>, vector<128x128xf32>
      tpu.vector_store %arg28[%c0_37, %c0_38], %69 {strides = array<i32>} : memref<128x128xf32, #tpu.memory_space<vmem>>, vector<128x128xf32>,
    } else {
    }
    %c2_i32_2 = arith.constant 2 : i32
    %6 = arith.cmpi slt, %arg0, %c2_i32_2 : i32
    %7 = arith.extui %6 : i1 to i32
    %c0_i32_3 = arith.constant 0 : i32
    %8 = arith.cmpi ne, %7, %c0_i32_3 : i32
    scf.if %8 {
      %c0 = arith.constant 0 : index
      %c0_5 = arith.constant 0 : index
      %12 = vector.load %arg29[%c0, %c0_5] : memref<128x128xf32, #tpu.memory_space<vmem>>, vector<128x128xf32>
      %c0_6 = arith.constant 0 : index
      %c0_7 = arith.constant 0 : index
      %c0_8 = arith.constant 0 : index
      %13 = vector.load %arg14[%c0_6, %c0_7, %c0_8] : memref<1x1x128xf32, #tpu.memory_space<vmem>>, vector<1x1x128xf32>
      %14 = vector.shape_cast %13 : vector<1x1x128xf32> to vector<1x128xf32>
      %c0_9 = arith.constant 0 : index
      %c0_10 = arith.constant 0 : index
      %c0_11 = arith.constant 0 : index
      %15 = vector.load %arg15[%c0_9, %c0_10, %c0_11] : memref<1x1x128xf32, #tpu.memory_space<vmem>>, vector<1x1x128xf32>
      %16 = vector.shape_cast %15 : vector<1x1x128xf32> to vector<1x128xf32>
      %cst = arith.constant dense<0.000000e+00> : vector<128xf32>
      %17 = vector.multi_reduction <add>, %12, %cst [1] : vector<128x128xf32> to vector<128xf32>
      %18 = vector.shape_cast %17 : vector<128xf32> to vector<128x1xf32>
      %cst_12 = arith.constant 0.0416666679 : f32
      %19 = vector.broadcast %cst_12 : f32 to vector<128x1xf32>
      %20 = arith.mulf %18, %19 : vector<128x1xf32>
      %21 = tpu.iota {dimensions = array<i32: 1>} : vector<128x128xi32>
      %c24_i32 = arith.constant 24 : i32
      %22 = vector.broadcast %c24_i32 : i32 to vector<128x128xi32>
      %23 = arith.cmpi slt, %21, %22 : vector<128x128xi32>
      %24 = vector.broadcast %20 : vector<128x1xf32> to vector<128x128xf32>
      %25 = arith.subf %12, %24 : vector<128x128xf32>
      %cst_13 = arith.constant 0.000000e+00 : f32
      %26 = vector.broadcast %cst_13 : f32 to vector<128x128xf32>
      %27 = arith.select %23, %25, %26 : vector<128x128xi1>, vector<128x128xf32>
      %28 = arith.mulf %27, %27 : vector<128x128xf32>
      %cst_14 = arith.constant dense<0.000000e+00> : vector<128xf32>
      %29 = vector.multi_reduction <add>, %28, %cst_14 [1] : vector<128x128xf32> to vector<128xf32>
      %30 = vector.shape_cast %29 : vector<128xf32> to vector<128x1xf32>
      %cst_15 = arith.constant 0.0416666679 : f32
      %31 = vector.broadcast %cst_15 : f32 to vector<128x1xf32>
      %32 = arith.mulf %30, %31 : vector<128x1xf32>
      %cst_16 = arith.constant 9.99999974E-6 : f32
      %33 = vector.broadcast %cst_16 : f32 to vector<128x1xf32>
      %34 = arith.addf %32, %33 : vector<128x1xf32>
      %35 = math.rsqrt %34 : vector<128x1xf32>
      %36 = vector.broadcast %35 : vector<128x1xf32> to vector<128x128xf32>
      %37 = arith.mulf %27, %36 : vector<128x128xf32>
      %38 = vector.broadcast %14 : vector<1x128xf32> to vector<128x128xf32>
      %39 = arith.mulf %37, %38 : vector<128x128xf32>
      %40 = vector.broadcast %16 : vector<1x128xf32> to vector<128x128xf32>
      %41 = arith.addf %39, %40 : vector<128x128xf32>
      %c0_17 = arith.constant 0 : index
      %c0_18 = arith.constant 0 : index
      %c0_19 = arith.constant 0 : index
      %42 = vector.load %arg16[%c0_17, %c0_18, %c0_19] : memref<1x128x128xbf16, #tpu.memory_space<vmem>>, vector<1x128x128xbf16>
      %43 = vector.shape_cast %42 : vector<1x128x128xbf16> to vector<128x128xbf16>
      %c0_20 = arith.constant 0 : index
      %c0_21 = arith.constant 0 : index
      %c0_22 = arith.constant 0 : index
      %44 = vector.load %arg17[%c0_20, %c0_21, %c0_22] : memref<1x1x128xf32, #tpu.memory_space<vmem>>, vector<1x1x128xf32>
      %45 = vector.shape_cast %44 : vector<1x1x128xf32> to vector<1x128xf32>
      %c0_23 = arith.constant 0 : index
      %c0_24 = arith.constant 0 : index
      %c0_25 = arith.constant 0 : index
      %46 = vector.load %arg18[%c0_23, %c0_24, %c0_25] : memref<1x128x128xbf16, #tpu.memory_space<vmem>>, vector<1x128x128xbf16>
      %47 = vector.shape_cast %46 : vector<1x128x128xbf16> to vector<128x128xbf16>
      %c0_26 = arith.constant 0 : index
      %c0_27 = arith.constant 0 : index
      %c0_28 = arith.constant 0 : index
      %48 = vector.load %arg19[%c0_26, %c0_27, %c0_28] : memref<1x1x128xf32, #tpu.memory_space<vmem>>, vector<1x1x128xf32>
      %49 = vector.shape_cast %48 : vector<1x1x128xf32> to vector<1x128xf32>
      %50 = arith.truncf %41 : vector<128x128xf32> to vector<128x128xbf16>
      %cst_29 = arith.constant dense<0.000000e+00> : vector<128x128xf32>
      %51 = tpu.matmul %50, %43, %cst_29 {dimension_numbers = #tpu.dot_dimension_numbers<[1], [0], [0], [1], [0, 0, 1, 1], [], []>} : vector<128x128xbf16>, vector<128x128xbf16>, vector<128x128xf32> -> vector<128x128xf32>
      %52 = vector.broadcast %45 : vector<1x128xf32> to vector<128x128xf32>
      %53 = arith.addf %51, %52 : vector<128x128xf32>
      %cst_30 = arith.constant 5.000000e-01 : f32
      %54 = vector.broadcast %cst_30 : f32 to vector<128x128xf32>
      %55 = arith.mulf %54, %53 : vector<128x128xf32>
      %cst_31 = arith.constant 0.707106769 : f32
      %56 = vector.broadcast %cst_31 : f32 to vector<128x128xf32>
      %57 = arith.mulf %53, %56 : vector<128x128xf32>
      %58 = math.erf %57 : vector<128x128xf32>
      %cst_32 = arith.constant 1.000000e+00 : f32
      %59 = vector.broadcast %cst_32 : f32 to vector<128x128xf32>
      %60 = arith.addf %59, %58 : vector<128x128xf32>
      %61 = arith.mulf %55, %60 : vector<128x128xf32>
      %62 = arith.truncf %61 : vector<128x128xf32> to vector<128x128xbf16>
      %cst_33 = arith.constant dense<0.000000e+00> : vector<128x128xf32>
      %63 = tpu.matmul %62, %47, %cst_33 {dimension_numbers = #tpu.dot_dimension_numbers<[1], [0], [0], [1], [0, 0, 1, 1], [], []>} : vector<128x128xbf16>, vector<128x128xbf16>, vector<128x128xf32> -> vector<128x128xf32>
      %64 = vector.broadcast %49 : vector<1x128xf32> to vector<128x128xf32>
      %65 = arith.addf %63, %64 : vector<128x128xf32>
      %66 = arith.addf %12, %65 : vector<128x128xf32>
      %c0_34 = arith.constant 0 : index
      %c0_35 = arith.constant 0 : index
      %67 = vector.load %arg29[%c0_34, %c0_35] : memref<128x128xf32, #tpu.memory_space<vmem>>, vector<128x128xf32>
      tpu.vector_store %arg29[%c0_34, %c0_35], %66 {strides = array<i32>} : memref<128x128xf32, #tpu.memory_space<vmem>>, vector<128x128xf32>,
    } else {
    }
    %c1_i32 = arith.constant 1 : i32
    %9 = arith.cmpi eq, %arg0, %c1_i32 : i32
    %10 = arith.extui %9 : i1 to i32
    %c0_i32_4 = arith.constant 0 : i32
    %11 = arith.cmpi ne, %10, %c0_i32_4 : i32
    scf.if %11 {
      %c0 = arith.constant 0 : index
      %c0_5 = arith.constant 0 : index
      %12 = vector.load %arg28[%c0, %c0_5] : memref<128x128xf32, #tpu.memory_space<vmem>>, vector<128x128xf32>
      %c0_6 = arith.constant 0 : index
      %c0_7 = arith.constant 0 : index
      %13 = vector.load %arg20[%c0_6, %c0_7] : memref<1x128xf32, #tpu.memory_space<vmem>>, vector<1x128xf32>
      %c0_8 = arith.constant 0 : index
      %c0_9 = arith.constant 0 : index
      %14 = vector.load %arg21[%c0_8, %c0_9] : memref<1x128xf32, #tpu.memory_space<vmem>>, vector<1x128xf32>
      %cst = arith.constant dense<0.000000e+00> : vector<128xf32>
      %15 = vector.multi_reduction <add>, %12, %cst [1] : vector<128x128xf32> to vector<128xf32>
      %16 = vector.shape_cast %15 : vector<128xf32> to vector<128x1xf32>
      %cst_10 = arith.constant 3.125000e-02 : f32
      %17 = vector.broadcast %cst_10 : f32 to vector<128x1xf32>
      %18 = arith.mulf %16, %17 : vector<128x1xf32>
      %19 = tpu.iota {dimensions = array<i32: 1>} : vector<128x128xi32>
      %c32_i32 = arith.constant 32 : i32
      %20 = vector.broadcast %c32_i32 : i32 to vector<128x128xi32>
      %21 = arith.cmpi slt, %19, %20 : vector<128x128xi32>
      %22 = vector.broadcast %18 : vector<128x1xf32> to vector<128x128xf32>
      %23 = arith.subf %12, %22 : vector<128x128xf32>
      %cst_11 = arith.constant 0.000000e+00 : f32
      %24 = vector.broadcast %cst_11 : f32 to vector<128x128xf32>
      %25 = arith.select %21, %23, %24 : vector<128x128xi1>, vector<128x128xf32>
      %26 = arith.mulf %25, %25 : vector<128x128xf32>
      %cst_12 = arith.constant dense<0.000000e+00> : vector<128xf32>
      %27 = vector.multi_reduction <add>, %26, %cst_12 [1] : vector<128x128xf32> to vector<128xf32>
      %28 = vector.shape_cast %27 : vector<128xf32> to vector<128x1xf32>
      %cst_13 = arith.constant 3.125000e-02 : f32
      %29 = vector.broadcast %cst_13 : f32 to vector<128x1xf32>
      %30 = arith.mulf %28, %29 : vector<128x1xf32>
      %cst_14 = arith.constant 9.99999974E-6 : f32
      %31 = vector.broadcast %cst_14 : f32 to vector<128x1xf32>
      %32 = arith.addf %30, %31 : vector<128x1xf32>
      %33 = math.rsqrt %32 : vector<128x1xf32>
      %34 = vector.broadcast %33 : vector<128x1xf32> to vector<128x128xf32>
      %35 = arith.mulf %25, %34 : vector<128x128xf32>
      %36 = vector.broadcast %13 : vector<1x128xf32> to vector<128x128xf32>
      %37 = arith.mulf %35, %36 : vector<128x128xf32>
      %38 = vector.broadcast %14 : vector<1x128xf32> to vector<128x128xf32>
      %39 = arith.addf %37, %38 : vector<128x128xf32>
      %c0_15 = arith.constant 0 : index
      %c0_16 = arith.constant 0 : index
      %40 = vector.load %arg29[%c0_15, %c0_16] : memref<128x128xf32, #tpu.memory_space<vmem>>, vector<128x128xf32>
      %c0_17 = arith.constant 0 : index
      %c0_18 = arith.constant 0 : index
      %41 = vector.load %arg22[%c0_17, %c0_18] : memref<1x128xf32, #tpu.memory_space<vmem>>, vector<1x128xf32>
      %c0_19 = arith.constant 0 : index
      %c0_20 = arith.constant 0 : index
      %42 = vector.load %arg23[%c0_19, %c0_20] : memref<1x128xf32, #tpu.memory_space<vmem>>, vector<1x128xf32>
      %cst_21 = arith.constant dense<0.000000e+00> : vector<128xf32>
      %43 = vector.multi_reduction <add>, %40, %cst_21 [1] : vector<128x128xf32> to vector<128xf32>
      %44 = vector.shape_cast %43 : vector<128xf32> to vector<128x1xf32>
      %cst_22 = arith.constant 0.0416666679 : f32
      %45 = vector.broadcast %cst_22 : f32 to vector<128x1xf32>
      %46 = arith.mulf %44, %45 : vector<128x1xf32>
      %47 = tpu.iota {dimensions = array<i32: 1>} : vector<128x128xi32>
      %c24_i32 = arith.constant 24 : i32
      %48 = vector.broadcast %c24_i32 : i32 to vector<128x128xi32>
      %49 = arith.cmpi slt, %47, %48 : vector<128x128xi32>
      %50 = vector.broadcast %46 : vector<128x1xf32> to vector<128x128xf32>
      %51 = arith.subf %40, %50 : vector<128x128xf32>
      %cst_23 = arith.constant 0.000000e+00 : f32
      %52 = vector.broadcast %cst_23 : f32 to vector<128x128xf32>
      %53 = arith.select %49, %51, %52 : vector<128x128xi1>, vector<128x128xf32>
      %54 = arith.mulf %53, %53 : vector<128x128xf32>
      %cst_24 = arith.constant dense<0.000000e+00> : vector<128xf32>
      %55 = vector.multi_reduction <add>, %54, %cst_24 [1] : vector<128x128xf32> to vector<128xf32>
      %56 = vector.shape_cast %55 : vector<128xf32> to vector<128x1xf32>
      %cst_25 = arith.constant 0.0416666679 : f32
      %57 = vector.broadcast %cst_25 : f32 to vector<128x1xf32>
      %58 = arith.mulf %56, %57 : vector<128x1xf32>
      %cst_26 = arith.constant 9.99999974E-6 : f32
      %59 = vector.broadcast %cst_26 : f32 to vector<128x1xf32>
      %60 = arith.addf %58, %59 : vector<128x1xf32>
      %61 = math.rsqrt %60 : vector<128x1xf32>
      %62 = vector.broadcast %61 : vector<128x1xf32> to vector<128x128xf32>
      %63 = arith.mulf %53, %62 : vector<128x128xf32>
      %64 = vector.broadcast %41 : vector<1x128xf32> to vector<128x128xf32>
      %65 = arith.mulf %63, %64 : vector<128x128xf32>
      %66 = vector.broadcast %42 : vector<1x128xf32> to vector<128x128xf32>
      %67 = arith.addf %65, %66 : vector<128x128xf32>
      %68 = arith.truncf %39 : vector<128x128xf32> to vector<128x128xbf16>
      %c0_27 = arith.constant 0 : index
      %c0_28 = arith.constant 0 : index
      %69 = vector.load %arg24[%c0_27, %c0_28] : memref<128x128xbf16, #tpu.memory_space<vmem>>, vector<128x128xbf16>
      %cst_29 = arith.constant dense<0.000000e+00> : vector<128x128xf32>
      %70 = tpu.matmul %68, %69, %cst_29 {dimension_numbers = #tpu.dot_dimension_numbers<[1], [0], [0], [1], [0, 0, 1, 1], [], []>} : vector<128x128xbf16>, vector<128x128xbf16>, vector<128x128xf32> -> vector<128x128xf32>
      %71 = arith.truncf %67 : vector<128x128xf32> to vector<128x128xbf16>
      %c0_30 = arith.constant 0 : index
      %c0_31 = arith.constant 0 : index
      %72 = vector.load %arg25[%c0_30, %c0_31] : memref<128x128xbf16, #tpu.memory_space<vmem>>, vector<128x128xbf16>
      %cst_32 = arith.constant dense<0.000000e+00> : vector<128x128xf32>
      %73 = tpu.matmul %71, %72, %cst_32 {dimension_numbers = #tpu.dot_dimension_numbers<[1], [0], [0], [1], [0, 0, 1, 1], [], []>} : vector<128x128xbf16>, vector<128x128xbf16>, vector<128x128xf32> -> vector<128x128xf32>
      %74 = arith.addf %70, %73 : vector<128x128xf32>
      %c0_33 = arith.constant 0 : index
      %c0_34 = arith.constant 0 : index
      %75 = vector.load %arg26[%c0_33, %c0_34] : memref<1x128xf32, #tpu.memory_space<vmem>>, vector<1x128xf32>
      %76 = vector.broadcast %75 : vector<1x128xf32> to vector<128x128xf32>
      %77 = arith.addf %74, %76 : vector<128x128xf32>
      %c0_35 = arith.constant 0 : index
      %c0_36 = arith.constant 0 : index
      %78 = vector.load %arg27[%c0_35, %c0_36] : memref<128x128xf32, #tpu.memory_space<vmem>>, vector<128x128xf32>
      tpu.vector_store %arg27[%c0_35, %c0_36], %77 {strides = array<i32>} : memref<128x128xf32, #tpu.memory_space<vmem>>, vector<128x128xf32>,
    } else {
    }
    return
  }
  func.func @transform_0(%arg0: i32) -> (i32, i32) {
    %c0_i32 = arith.constant 0 : i32
    %c0_i32_0 = arith.constant 0 : i32
    %c0_i32_1 = arith.constant 0 : i32
    return %c0_i32, %c0_i32_0 : i32, i32
  }
  func.func @transform_1(%arg0: i32) -> (i32, i32) {
    %c0_i32 = arith.constant 0 : i32
    %c0_i32_0 = arith.constant 0 : i32
    %c0_i32_1 = arith.constant 0 : i32
    return %c0_i32, %c0_i32_0 : i32, i32
  }
  func.func @transform_2(%arg0: i32) -> (i32, i32) {
    %c0_i32 = arith.constant 0 : i32
    %c0_i32_0 = arith.constant 0 : i32
    %c0_i32_1 = arith.constant 0 : i32
    return %c0_i32, %c0_i32_0 : i32, i32
  }
  func.func @transform_3(%arg0: i32) -> (i32, i32) {
    %c0_i32 = arith.constant 0 : i32
    %c0_i32_0 = arith.constant 0 : i32
    %c0_i32_1 = arith.constant 0 : i32
    return %c0_i32, %c0_i32_0 : i32, i32
  }
  func.func @transform_4(%arg0: i32) -> (i32, i32) {
    %c0_i32 = arith.constant 0 : i32
    %c0_i32_0 = arith.constant 0 : i32
    %c0_i32_1 = arith.constant 0 : i32
    return %c0_i32, %c0_i32_0 : i32, i32
  }
  func.func @transform_5(%arg0: i32) -> (i32, i32) {
    %c0_i32 = arith.constant 0 : i32
    %c0_i32_0 = arith.constant 0 : i32
    %c0_i32_1 = arith.constant 0 : i32
    return %c0_i32, %c0_i32_0 : i32, i32
  }
  func.func @transform_6(%arg0: i32) -> (i32, i32) {
    %c0_i32 = arith.constant 0 : i32
    %c0_i32_0 = arith.constant 0 : i32
    %c0_i32_1 = arith.constant 0 : i32
    return %c0_i32, %c0_i32_0 : i32, i32
  }
  func.func @transform_7(%arg0: i32) -> (i32, i32, i32) {
    %c0_i32 = arith.constant 0 : i32
    %c0_i32_0 = arith.constant 0 : i32
    %c0_i32_1 = arith.constant 0 : i32
    return %arg0, %c0_i32, %c0_i32_0 : i32, i32, i32
  }
  func.func @transform_8(%arg0: i32) -> (i32, i32, i32) {
    %c0_i32 = arith.constant 0 : i32
    %c0_i32_0 = arith.constant 0 : i32
    %c0_i32_1 = arith.constant 0 : i32
    return %arg0, %c0_i32, %c0_i32_0 : i32, i32, i32
  }
  func.func @transform_9(%arg0: i32) -> (i32, i32, i32) {
    %c0_i32 = arith.constant 0 : i32
    %c0_i32_0 = arith.constant 0 : i32
    %c0_i32_1 = arith.constant 0 : i32
    return %arg0, %c0_i32, %c0_i32_0 : i32, i32, i32
  }
  func.func @transform_10(%arg0: i32) -> (i32, i32, i32) {
    %c0_i32 = arith.constant 0 : i32
    %c0_i32_0 = arith.constant 0 : i32
    %c0_i32_1 = arith.constant 0 : i32
    return %arg0, %c0_i32, %c0_i32_0 : i32, i32, i32
  }
  func.func @transform_11(%arg0: i32) -> (i32, i32, i32) {
    %c0_i32 = arith.constant 0 : i32
    %c0_i32_0 = arith.constant 0 : i32
    %c0_i32_1 = arith.constant 0 : i32
    return %arg0, %c0_i32, %c0_i32_0 : i32, i32, i32
  }
  func.func @transform_12(%arg0: i32) -> (i32, i32, i32) {
    %c0_i32 = arith.constant 0 : i32
    %c0_i32_0 = arith.constant 0 : i32
    %c0_i32_1 = arith.constant 0 : i32
    return %arg0, %c0_i32, %c0_i32_0 : i32, i32, i32
  }
  func.func @transform_13(%arg0: i32) -> (i32, i32, i32) {
    %c0_i32 = arith.constant 0 : i32
    %c0_i32_0 = arith.constant 0 : i32
    %c0_i32_1 = arith.constant 0 : i32
    return %arg0, %c0_i32, %c0_i32_0 : i32, i32, i32
  }
  func.func @transform_14(%arg0: i32) -> (i32, i32, i32) {
    %c0_i32 = arith.constant 0 : i32
    %c0_i32_0 = arith.constant 0 : i32
    %c0_i32_1 = arith.constant 0 : i32
    return %arg0, %c0_i32, %c0_i32_0 : i32, i32, i32
  }
  func.func @transform_15(%arg0: i32) -> (i32, i32, i32) {
    %c0_i32 = arith.constant 0 : i32
    %c0_i32_0 = arith.constant 0 : i32
    %c0_i32_1 = arith.constant 0 : i32
    return %arg0, %c0_i32, %c0_i32_0 : i32, i32, i32
  }
  func.func @transform_16(%arg0: i32) -> (i32, i32, i32) {
    %c0_i32 = arith.constant 0 : i32
    %c0_i32_0 = arith.constant 0 : i32
    %c0_i32_1 = arith.constant 0 : i32
    return %arg0, %c0_i32, %c0_i32_0 : i32, i32, i32
  }
  func.func @transform_17(%arg0: i32) -> (i32, i32, i32) {
    %c0_i32 = arith.constant 0 : i32
    %c0_i32_0 = arith.constant 0 : i32
    %c0_i32_1 = arith.constant 0 : i32
    return %arg0, %c0_i32, %c0_i32_0 : i32, i32, i32
  }
  func.func @transform_18(%arg0: i32) -> (i32, i32, i32) {
    %c0_i32 = arith.constant 0 : i32
    %c0_i32_0 = arith.constant 0 : i32
    %c0_i32_1 = arith.constant 0 : i32
    return %arg0, %c0_i32, %c0_i32_0 : i32, i32, i32
  }
  func.func @transform_19(%arg0: i32) -> (i32, i32) {
    %c0_i32 = arith.constant 0 : i32
    %c0_i32_0 = arith.constant 0 : i32
    %c0_i32_1 = arith.constant 0 : i32
    return %c0_i32, %c0_i32_0 : i32, i32
  }
  func.func @transform_20(%arg0: i32) -> (i32, i32) {
    %c0_i32 = arith.constant 0 : i32
    %c0_i32_0 = arith.constant 0 : i32
    %c0_i32_1 = arith.constant 0 : i32
    return %c0_i32, %c0_i32_0 : i32, i32
  }
  func.func @transform_21(%arg0: i32) -> (i32, i32) {
    %c0_i32 = arith.constant 0 : i32
    %c0_i32_0 = arith.constant 0 : i32
    %c0_i32_1 = arith.constant 0 : i32
    return %c0_i32, %c0_i32_0 : i32, i32
  }
  func.func @transform_22(%arg0: i32) -> (i32, i32) {
    %c0_i32 = arith.constant 0 : i32
    %c0_i32_0 = arith.constant 0 : i32
    %c0_i32_1 = arith.constant 0 : i32
    return %c0_i32, %c0_i32_0 : i32, i32
  }
  func.func @transform_23(%arg0: i32) -> (i32, i32) {
    %c0_i32 = arith.constant 0 : i32
    %c0_i32_0 = arith.constant 0 : i32
    %c0_i32_1 = arith.constant 0 : i32
    return %c0_i32, %c0_i32_0 : i32, i32
  }
  func.func @transform_24(%arg0: i32) -> (i32, i32) {
    %c0_i32 = arith.constant 0 : i32
    %c0_i32_0 = arith.constant 0 : i32
    %c0_i32_1 = arith.constant 0 : i32
    return %c0_i32, %c0_i32_0 : i32, i32
  }
  func.func @transform_25(%arg0: i32) -> (i32, i32) {
    %c0_i32 = arith.constant 0 : i32
    %c0_i32_0 = arith.constant 0 : i32
    %c0_i32_1 = arith.constant 0 : i32
    return %c0_i32, %c0_i32_0 : i32, i32
  }
  func.func @transform_26(%arg0: i32) -> (i32, i32) {
    %c0_i32 = arith.constant 0 : i32
    %c0_i32_0 = arith.constant 0 : i32
    %c0_i32_1 = arith.constant 0 : i32
    return %c0_i32, %c0_i32_0 : i32, i32
  }
}

</mosaic_0001>

<llo_original>
// kernel: tpu_custom_call.1
$region0: #{tpu_custom_call.1}
  #allocation0 [shape = 'u32[]', space=smem, size = 0x4, offset = 0x4, fixed_abs, tag = 'smem constant byte address 0x4 - core index']
  #allocation1 [shape = 'u32[144,128]{1,0:T(1,128)}', space=vmem, size = 0x12000, scoped, tag = 'internal scratch']
  #allocation2 [shape = 'f32[128,128]{1,0:T(8,128)}', space=vmem, size = 0x10000, scoped, tag = 'scratch operand']
  #allocation3 [shape = 'f32[128,128]{1,0:T(8,128)}', space=vmem, size = 0x10000, scoped, tag = 'scratch operand']
  %s0 = inlined_call_operand.hbm [shape: bf16[128,128], index: 0, kind: input, shape index: {}]
  %s1 = inlined_call_operand.hbm [shape: bf16[128,128], index: 1, kind: input, shape index: {}]
  %s2 = inlined_call_operand.hbm [shape: bf16[128,128], index: 2, kind: input, shape index: {}]
  %s3 = inlined_call_operand.hbm [shape: bf16[128,128], index: 3, kind: input, shape index: {}]
  %s4 = inlined_call_operand.vmem [shape: f32[1,128], index: 4, kind: input, shape index: {}]
  %s5 = inlined_call_operand.hbm [shape: bf16[128,128], index: 5, kind: input, shape index: {}]
  %s6 = inlined_call_operand.vmem [shape: f32[1,128], index: 6, kind: input, shape index: {}]
  %s7 = inlined_call_operand.vmem [shape: f32[2,1,128], index: 7, kind: input, shape index: {}]
  %s8 = inlined_call_operand.vmem [shape: f32[2,1,128], index: 8, kind: input, shape index: {}]
  %s9 = inlined_call_operand.hbm [shape: bf16[2,128,128], index: 9, kind: input, shape index: {}]
  %s10 = inlined_call_operand.vmem [shape: f32[2,1,128], index: 10, kind: input, shape index: {}]
  %s11 = inlined_call_operand.hbm [shape: bf16[2,128,128], index: 11, kind: input, shape index: {}]
  %s12 = inlined_call_operand.vmem [shape: f32[2,1,128], index: 12, kind: input, shape index: {}]
  %s13 = inlined_call_operand.vmem [shape: f32[2,1,128], index: 13, kind: input, shape index: {}]
  %s14 = inlined_call_operand.vmem [shape: f32[2,1,128], index: 14, kind: input, shape index: {}]
  %s15 = inlined_call_operand.hbm [shape: bf16[2,128,128], index: 15, kind: input, shape index: {}]
  %s16 = inlined_call_operand.vmem [shape: f32[2,1,128], index: 16, kind: input, shape index: {}]
  %s17 = inlined_call_operand.hbm [shape: bf16[2,128,128], index: 17, kind: input, shape index: {}]
  %s18 = inlined_call_operand.vmem [shape: f32[2,1,128], index: 18, kind: input, shape index: {}]
  %s19 = inlined_call_operand.vmem [shape: f32[1,128], index: 19, kind: input, shape index: {}]
  %s20 = inlined_call_operand.vmem [shape: f32[1,128], index: 20, kind: input, shape index: {}]
  %s21 = inlined_call_operand.vmem [shape: f32[1,128], index: 21, kind: input, shape index: {}]
  %s22 = inlined_call_operand.vmem [shape: f32[1,128], index: 22, kind: input, shape index: {}]
  %s23 = inlined_call_operand.vmem [shape: bf16[128,128], index: 23, kind: input, shape index: {}]
  %s24 = inlined_call_operand.hbm [shape: bf16[128,128], index: 24, kind: input, shape index: {}]
  %s25 = inlined_call_operand.vmem [shape: f32[1,128], index: 25, kind: input, shape index: {}]
  %s26 = inlined_call_operand.hbm [shape: f32[128,128], index: 26, kind: output, shape index: {}]
  %s27 = sld [smem:[#allocation0]]
  $region189: #{tpu_custom_call.1} parent=0
    _
  %s29 = ssub.s32 1, %s27
  %s30 = scalar_select 0, %s29, %s27
  $region1: #{tpu_custom_call.1} parent=0
    #allocation4 [shape = 'u8[32768]{0}', space=vmem, size = 0x8000, scoped, tag = 'input window, operand 0, single buffered']
    #allocation5 [shape = 's32[2]{0}', space=sflag, size = 0x8, scoped, tag = 'scoped memory for tpu_custom_call.1']
    #allocation6 [shape = 's32[2]{0}', space=sflag, size = 0x8, scoped, tag = 'scoped memory for tpu_custom_call.1']
    #allocation7 [shape = 'u8[32768]{0}', space=vmem, size = 0x8000, scoped, tag = 'input window, operand 1, single buffered']
    #allocation8 [shape = 's32[1]{0}', space=sflag, size = 0x4, scoped, tag = 'scoped memory for tpu_custom_call.1']
    #allocation9 [shape = 'u8[32768]{0}', space=vmem, size = 0x8000, scoped, tag = 'input window, operand 2, single buffered']
    #allocation10 [shape = 'u8[32768]{0}', space=vmem, size = 0x8000, scoped, tag = 'input window, operand 3, single buffered']
    #allocation11 [shape = 's32[1]{0}', space=sflag, size = 0x4, scoped, tag = 'scoped memory for tpu_custom_call.1']
    #allocation12 [shape = 'u8[32768]{0}', space=vmem, size = 0x8000, scoped, tag = 'input window, operand 5, single buffered']
    #allocation13 [shape = 'u8[65536]{0}', space=vmem, size = 0x10000, scoped, tag = 'input window, operand 9']
    #allocation14 [shape = 's32[2]{0}', space=sflag, size = 0x8, scoped, tag = 'scoped memory for tpu_custom_call.1']
    #allocation15 [shape = 'u8[65536]{0}', space=vmem, size = 0x10000, scoped, tag = 'input window, operand 11']
    #allocation16 [shape = 'u8[65536]{0}', space=vmem, size = 0x10000, scoped, tag = 'input window, operand 15']
    #allocation17 [shape = 's32[2]{0}', space=sflag, size = 0x8, scoped, tag = 'scoped memory for tpu_custom_call.1']
    #allocation18 [shape = 'u8[65536]{0}', space=vmem, size = 0x10000, scoped, tag = 'input window, operand 17']
    #allocation19 [shape = 'u8[32768]{0}', space=vmem, size = 0x8000, scoped, tag = 'input window, operand 24, single buffered']
    #allocation20 [shape = 's32[1]{0}', space=sflag, size = 0x4, scoped, tag = 'scoped memory for tpu_custom_call.1']
    #allocation21 [shape = 'u8[65536]{0}', space=vmem, size = 0x10000, scoped, tag = 'output window, operand 0, single buffered']
    %31 = vsyncpa [#allocation5], 0
    %32 = vsyncpa [#allocation8], 0
    %33 = vsyncpa [#allocation11], 0
    %34 = vsyncpa [#allocation14], 0
    %s35 = scalar_lea.sflag [#allocation14], 1
    %36 = vsyncpa %s35, 0
    %37 = vsyncpa [#allocation17], 0
    %s38 = scalar_lea.sflag [#allocation17], 1
    %39 = vsyncpa %s38, 0
    %40 = vsyncpa [#allocation20], 0
    %41 = vsyncpa [#allocation6], 0
    loop: start=0, step=1, limit=4
    $region2: #{tpu_custom_call.1} parent=1 // loop_pre_header
      _
    $region3: #{tpu_custom_call.1} parent=1 // loop_header
      %s43 = sphi 0, %s47
      %p44 = scmp.ge.s32.totalorder %s43, 4
      %s51 = sphi 0, %s51
      %s53 = sphi 0, %s51
      %s54 = sphi 0, %s53
      %s68 = sphi 0, %s54
      %s72 = sphi 0, %s72
      %s74 = sphi 0, %s72
      %s75 = sphi 0, %s74
      %s89 = sphi 0, %s75
      %s93 = sphi 0, %s93
      %s95 = sphi 0, %s93
      %s96 = sphi 0, %s95
      %s110 = sphi 0, %s96
      %s114 = sphi 0, %s114
      %s116 = sphi 0, %s114
      %s117 = sphi 0, %s116
      %s131 = sphi 0, %s117
      %s135 = sphi 0, %s135
      %s137 = sphi 0, %s135
      %s138 = sphi 0, %s137
      %s152 = sphi 0, %s138
      %s156 = sphi 0, %s156
      %s158 = sphi 0, %s156
      %s159 = sphi 0, %s158
      %s173 = sphi 0, %s159
      %s177 = sphi 0, %s177
      %s179 = sphi 0, %s177
      %s180 = sphi 0, %s179
      %s194 = sphi 0, %s180
      %s200 = sphi 0, %s202
      %s203 = sphi 0, %s200
      %s204 = sphi 0, %s203
      %s220 = sphi 0, %s204
      %s226 = sphi 0, %s228
      %s229 = sphi 0, %s226
      %s230 = sphi 0, %s229
      %s246 = sphi 0, %s230
      %s252 = sphi 0, %s254
      %s255 = sphi 0, %s252
      %s256 = sphi 0, %s255
      %s272 = sphi 0, %s256
      %s278 = sphi 0, %s280
      %s281 = sphi 0, %s278
      %s282 = sphi 0, %s281
      %s298 = sphi 0, %s282
      %s304 = sphi 0, %s306
      %s307 = sphi 0, %s304
      %s308 = sphi 0, %s307
      %s324 = sphi 0, %s308
      %s330 = sphi 0, %s332
      %s333 = sphi 0, %s330
      %s334 = sphi 0, %s333
      %s350 = sphi 0, %s334
      %s356 = sphi 0, %s358
      %s359 = sphi 0, %s356
      %s360 = sphi 0, %s359
      %s376 = sphi 0, %s360
      %s382 = sphi 0, %s384
      %s385 = sphi 0, %s382
      %s386 = sphi 0, %s385
      %s402 = sphi 0, %s386
      %s408 = sphi 0, %s410
      %s411 = sphi 0, %s408
      %s412 = sphi 0, %s411
      %s428 = sphi 0, %s412
      %s434 = sphi 0, %s436
      %s437 = sphi 0, %s434
      %s438 = sphi 0, %s437
      %s454 = sphi 0, %s438
      %s460 = sphi 0, %s462
      %s463 = sphi 0, %s460
      %s464 = sphi 0, %s463
      %s480 = sphi 0, %s464
      %s486 = sphi 0, %s488
      %s489 = sphi 0, %s486
      %s490 = sphi 0, %s489
      %s506 = sphi 0, %s490
      %s510 = sphi 0, %s510
      %s512 = sphi 0, %s510
      %s513 = sphi 0, %s512
      %s527 = sphi 0, %s513
      %s531 = sphi 0, %s531
      %s533 = sphi 0, %s531
      %s534 = sphi 0, %s533
      %s548 = sphi 0, %s534
      %s552 = sphi 0, %s552
      %s554 = sphi 0, %s552
      %s555 = sphi 0, %s554
      %s569 = sphi 0, %s555
      %s573 = sphi 0, %s573
      %s575 = sphi 0, %s573
      %s576 = sphi 0, %s575
      %s590 = sphi 0, %s576
      %s594 = sphi 0, %s594
      %s596 = sphi 0, %s594
      %s597 = sphi 0, %s596
      %s611 = sphi 0, %s597
      %s615 = sphi 0, %s615
      %s617 = sphi 0, %s615
      %s618 = sphi 0, %s617
      %s632 = sphi 0, %s618
      %s636 = sphi 0, %s636
      %s638 = sphi 0, %s636
      %s639 = sphi 0, %s638
      %s653 = sphi 0, %s639
      %s657 = sphi 0, %s657
      %s659 = sphi 0, %s657
      %s660 = sphi 0, %s659
      %s674 = sphi 0, %s660
    $region4: #{tpu_custom_call.1} parent=1 // loop_header_branch
      %46 = sbr.rel (%p44) target = $region8
    $region5: #{tpu_custom_call.1} parent=1 // loop_body
      %s48 = ssub.s32 %s43, 1
      %s49 = ssub.s32 %s43, 2
      %s50 = sadd.s32 %s43, 1
      %s52 = sadd.s32 %s51, 1
      %p55 = scmp.eq.s32.totalorder %s43, 1
      %p56 = scmp.ne.s32.totalorder %s51, %s53
      %p57 = scmp.eq.s32.totalorder %s43, 0
      %p58 = por %p56, %p57
      %p59 = scmp.ne.s32.totalorder %s51, %s53
      %p60 = scmp.eq.s32.totalorder %s48, 1
      %p61 = por %p59, %p60
      %p62 = scmp.ne.s32.totalorder %s53, %s54
      %p63 = scmp.eq.s32.totalorder %s48, 0
      %p64 = por %p62, %p63
      %p65 = scmp.ne.s32.totalorder %s53, %s54
      %p66 = scmp.eq.s32.totalorder %s49, 1
      %p67 = por %p65, %p66
      %p69 = scmp.ne.s32.totalorder %s54, %s68
      %p70 = scmp.eq.s32.totalorder %s49, 0
      %p71 = por %p69, %p70
      %s73 = sadd.s32 %s72, 1
      %p76 = scmp.eq.s32.totalorder %s43, 1
      %p77 = scmp.ne.s32.totalorder %s72, %s74
      %p78 = scmp.eq.s32.totalorder %s43, 0
      %p79 = por %p77, %p78
      %p80 = scmp.ne.s32.totalorder %s72, %s74
      %p81 = scmp.eq.s32.totalorder %s48, 1
      %p82 = por %p80, %p81
      %p83 = scmp.ne.s32.totalorder %s74, %s75
      %p84 = scmp.eq.s32.totalorder %s48, 0
      %p85 = por %p83, %p84
      %p86 = scmp.ne.s32.totalorder %s74, %s75
      %p87 = scmp.eq.s32.totalorder %s49, 1
      %p88 = por %p86, %p87
      %p90 = scmp.ne.s32.totalorder %s75, %s89
      %p91 = scmp.eq.s32.totalorder %s49, 0
      %p92 = por %p90, %p91
      %s94 = sadd.s32 %s93, 1
      %p97 = scmp.eq.s32.totalorder %s43, 1
      %p98 = scmp.ne.s32.totalorder %s93, %s95
      %p99 = scmp.eq.s32.totalorder %s43, 0
      %p100 = por %p98, %p99
      %p101 = scmp.ne.s32.totalorder %s93, %s95
      %p102 = scmp.eq.s32.totalorder %s48, 1
      %p103 = por %p101, %p102
      %p104 = scmp.ne.s32.totalorder %s95, %s96
      %p105 = scmp.eq.s32.totalorder %s48, 0
      %p106 = por %p104, %p105
      %p107 = scmp.ne.s32.totalorder %s95, %s96
      %p108 = scmp.eq.s32.totalorder %s49, 1
      %p109 = por %p107, %p108
      %p111 = scmp.ne.s32.totalorder %s96, %s110
      %p112 = scmp.eq.s32.totalorder %s49, 0
      %p113 = por %p111, %p112
      %s115 = sadd.s32 %s114, 1
      %p118 = scmp.eq.s32.totalorder %s43, 1
      %p119 = scmp.ne.s32.totalorder %s114, %s116
      %p120 = scmp.eq.s32.totalorder %s43, 0
      %p121 = por %p119, %p120
      %p122 = scmp.ne.s32.totalorder %s114, %s116
      %p123 = scmp.eq.s32.totalorder %s48, 1
      %p124 = por %p122, %p123
      %p125 = scmp.ne.s32.totalorder %s116, %s117
      %p126 = scmp.eq.s32.totalorder %s48, 0
      %p127 = por %p125, %p126
      %p128 = scmp.ne.s32.totalorder %s116, %s117
      %p129 = scmp.eq.s32.totalorder %s49, 1
      %p130 = por %p128, %p129
      %p132 = scmp.ne.s32.totalorder %s117, %s131
      %p133 = scmp.eq.s32.totalorder %s49, 0
      %p134 = por %p132, %p133
      %s136 = sadd.s32 %s135, 1
      %p139 = scmp.eq.s32.totalorder %s43, 1
      %p140 = scmp.ne.s32.totalorder %s135, %s137
      %p141 = scmp.eq.s32.totalorder %s43, 0
      %p142 = por %p140, %p141
      %p143 = scmp.ne.s32.totalorder %s135, %s137
      %p144 = scmp.eq.s32.totalorder %s48, 1
      %p145 = por %p143, %p144
      %p146 = scmp.ne.s32.totalorder %s137, %s138
      %p147 = scmp.eq.s32.totalorder %s48, 0
      %p148 = por %p146, %p147
      %p149 = scmp.ne.s32.totalorder %s137, %s138
      %p150 = scmp.eq.s32.totalorder %s49, 1
      %p151 = por %p149, %p150
      %p153 = scmp.ne.s32.totalorder %s138, %s152
      %p154 = scmp.eq.s32.totalorder %s49, 0
      %p155 = por %p153, %p154
      %s157 = sadd.s32 %s156, 1
      %p160 = scmp.eq.s32.totalorder %s43, 1
      %p161 = scmp.ne.s32.totalorder %s156, %s158
      %p162 = scmp.eq.s32.totalorder %s43, 0
      %p163 = por %p161, %p162
      %p164 = scmp.ne.s32.totalorder %s156, %s158
      %p165 = scmp.eq.s32.totalorder %s48, 1
      %p166 = por %p164, %p165
      %p167 = scmp.ne.s32.totalorder %s158, %s159
      %p168 = scmp.eq.s32.totalorder %s48, 0
      %p169 = por %p167, %p168
      %p170 = scmp.ne.s32.totalorder %s158, %s159
      %p171 = scmp.eq.s32.totalorder %s49, 1
      %p172 = por %p170, %p171
      %p174 = scmp.ne.s32.totalorder %s159, %s173
      %p175 = scmp.eq.s32.totalorder %s49, 0
      %p176 = por %p174, %p175
      %s178 = sadd.s32 %s177, 1
      %p181 = scmp.eq.s32.totalorder %s43, 1
      %p182 = scmp.ne.s32.totalorder %s177, %s179
      %p183 = scmp.eq.s32.totalorder %s43, 0
      %p184 = por %p182, %p183
      %p185 = scmp.ne.s32.totalorder %s177, %s179
      %p186 = scmp.eq.s32.totalorder %s48, 1
      %p187 = por %p185, %p186
      %p188 = scmp.ne.s32.totalorder %s179, %s180
      %p189 = scmp.eq.s32.totalorder %s48, 0
      %p190 = por %p188, %p189
      %p191 = scmp.ne.s32.totalorder %s179, %s180
      %p192 = scmp.eq.s32.totalorder %s49, 1
      %p193 = por %p191, %p192
      %p195 = scmp.ne.s32.totalorder %s180, %s194
      %p196 = scmp.eq.s32.totalorder %s49, 0
      %p197 = por %p195, %p196
      %s198 = ssub.s32 %s43, %s50
      %p199 = scmp.eq.s32.totalorder %s198, 0
      %s201 = sadd.s32 %s200, 1
      %s202 = scalar_select %p199, %s200, %s201
      %p205 = pneg %p199
      %p206 = scmp.eq.s32.totalorder %s43, 1
      %p207 = por %p205, %p206
      %p208 = scmp.ne.s32.totalorder %s200, %s203
      %p209 = scmp.eq.s32.totalorder %s43, 0
      %p210 = por %p208, %p209
      %p211 = scmp.ne.s32.totalorder %s200, %s203
      %p212 = scmp.eq.s32.totalorder %s48, 1
      %p213 = por %p211, %p212
      %p214 = scmp.ne.s32.totalorder %s203, %s204
      %p215 = scmp.eq.s32.totalorder %s48, 0
      %p216 = por %p214, %p215
      %p217 = scmp.ne.s32.totalorder %s203, %s204
      %p218 = scmp.eq.s32.totalorder %s49, 1
      %p219 = por %p217, %p218
      %p221 = scmp.ne.s32.totalorder %s204, %s220
      %p222 = scmp.eq.s32.totalorder %s49, 0
      %p223 = por %p221, %p222
      %s224 = ssub.s32 %s43, %s50
      %p225 = scmp.eq.s32.totalorder %s224, 0
      %s227 = sadd.s32 %s226, 1
      %s228 = scalar_select %p225, %s226, %s227
      %p231 = pneg %p225
      %p232 = scmp.eq.s32.totalorder %s43, 1
      %p233 = por %p231, %p232
      %p234 = scmp.ne.s32.totalorder %s226, %s229
      %p235 = scmp.eq.s32.totalorder %s43, 0
      %p236 = por %p234, %p235
      %p237 = scmp.ne.s32.totalorder %s226, %s229
      %p238 = scmp.eq.s32.totalorder %s48, 1
      %p239 = por %p237, %p238
      %p240 = scmp.ne.s32.totalorder %s229, %s230
      %p241 = scmp.eq.s32.totalorder %s48, 0
      %p242 = por %p240, %p241
      %p243 = scmp.ne.s32.totalorder %s229, %s230
      %p244 = scmp.eq.s32.totalorder %s49, 1
      %p245 = por %p243, %p244
      %p247 = scmp.ne.s32.totalorder %s230, %s246
      %p248 = scmp.eq.s32.totalorder %s49, 0
      %p249 = por %p247, %p248
      %s250 = ssub.s32 %s43, %s50
      %p251 = scmp.eq.s32.totalorder %s250, 0
      %s253 = sadd.s32 %s252, 1
      %s254 = scalar_select %p251, %s252, %s253
      %p257 = pneg %p251
      %p258 = scmp.eq.s32.totalorder %s43, 1
      %p259 = por %p257, %p258
      %p260 = scmp.ne.s32.totalorder %s252, %s255
      %p261 = scmp.eq.s32.totalorder %s43, 0
      %p262 = por %p260, %p261
      %p263 = scmp.ne.s32.totalorder %s252, %s255
      %p264 = scmp.eq.s32.totalorder %s48, 1
      %p265 = por %p263, %p264
      %p266 = scmp.ne.s32.totalorder %s255, %s256
      %p267 = scmp.eq.s32.totalorder %s48, 0
      %p268 = por %p266, %p267
      %p269 = scmp.ne.s32.totalorder %s255, %s256
      %p270 = scmp.eq.s32.totalorder %s49, 1
      %p271 = por %p269, %p270
      %p273 = scmp.ne.s32.totalorder %s256, %s272
      %p274 = scmp.eq.s32.totalorder %s49, 0
      %p275 = por %p273, %p274
      %s276 = ssub.s32 %s43, %s50
      %p277 = scmp.eq.s32.totalorder %s276, 0
      %s279 = sadd.s32 %s278, 1
      %s280 = scalar_select %p277, %s278, %s279
      %p283 = pneg %p277
      %p284 = scmp.eq.s32.totalorder %s43, 1
      %p285 = por %p283, %p284
      %p286 = scmp.ne.s32.totalorder %s278, %s281
      %p287 = scmp.eq.s32.totalorder %s43, 0
      %p288 = por %p286, %p287
      %p289 = scmp.ne.s32.totalorder %s278, %s281
      %p290 = scmp.eq.s32.totalorder %s48, 1
      %p291 = por %p289, %p290
      %p292 = scmp.ne.s32.totalorder %s281, %s282
      %p293 = scmp.eq.s32.totalorder %s48, 0
      %p294 = por %p292, %p293
      %p295 = scmp.ne.s32.totalorder %s281, %s282
      %p296 = scmp.eq.s32.totalorder %s49, 1
      %p297 = por %p295, %p296
      %p299 = scmp.ne.s32.totalorder %s282, %s298
      %p300 = scmp.eq.s32.totalorder %s49, 0
      %p301 = por %p299, %p300
      %s302 = ssub.s32 %s43, %s50
      %p303 = scmp.eq.s32.totalorder %s302, 0
      %s305 = sadd.s32 %s304, 1
      %s306 = scalar_select %p303, %s304, %s305
      %p309 = pneg %p303
      %p310 = scmp.eq.s32.totalorder %s43, 1
      %p311 = por %p309, %p310
      %p312 = scmp.ne.s32.totalorder %s304, %s307
      %p313 = scmp.eq.s32.totalorder %s43, 0
      %p314 = por %p312, %p313
      %p315 = scmp.ne.s32.totalorder %s304, %s307
      %p316 = scmp.eq.s32.totalorder %s48, 1
      %p317 = por %p315, %p316
      %p318 = scmp.ne.s32.totalorder %s307, %s308
      %p319 = scmp.eq.s32.totalorder %s48, 0
      %p320 = por %p318, %p319
      %p321 = scmp.ne.s32.totalorder %s307, %s308
      %p322 = scmp.eq.s32.totalorder %s49, 1
      %p323 = por %p321, %p322
      %p325 = scmp.ne.s32.totalorder %s308, %s324
      %p326 = scmp.eq.s32.totalorder %s49, 0
      %p327 = por %p325, %p326
      %s328 = ssub.s32 %s43, %s50
      %p329 = scmp.eq.s32.totalorder %s328, 0
      %s331 = sadd.s32 %s330, 1
      %s332 = scalar_select %p329, %s330, %s331
      %p335 = pneg %p329
      %p336 = scmp.eq.s32.totalorder %s43, 1
      %p337 = por %p335, %p336
      %p338 = scmp.ne.s32.totalorder %s330, %s333
      %p339 = scmp.eq.s32.totalorder %s43, 0
      %p340 = por %p338, %p339
      %p341 = scmp.ne.s32.totalorder %s330, %s333
      %p342 = scmp.eq.s32.totalorder %s48, 1
      %p343 = por %p341, %p342
      %p344 = scmp.ne.s32.totalorder %s333, %s334
      %p345 = scmp.eq.s32.totalorder %s48, 0
      %p346 = por %p344, %p345
      %p347 = scmp.ne.s32.totalorder %s333, %s334
      %p348 = scmp.eq.s32.totalorder %s49, 1
      %p349 = por %p347, %p348
      %p351 = scmp.ne.s32.totalorder %s334, %s350
      %p352 = scmp.eq.s32.totalorder %s49, 0
      %p353 = por %p351, %p352
      %s354 = ssub.s32 %s43, %s50
      %p355 = scmp.eq.s32.totalorder %s354, 0
      %s357 = sadd.s32 %s356, 1
      %s358 = scalar_select %p355, %s356, %s357
      %p361 = pneg %p355
      %p362 = scmp.eq.s32.totalorder %s43, 1
      %p363 = por %p361, %p362
      %p364 = scmp.ne.s32.totalorder %s356, %s359
      %p365 = scmp.eq.s32.totalorder %s43, 0
      %p366 = por %p364, %p365
      %p367 = scmp.ne.s32.totalorder %s356, %s359
      %p368 = scmp.eq.s32.totalorder %s48, 1
      %p369 = por %p367, %p368
      %p370 = scmp.ne.s32.totalorder %s359, %s360
      %p371 = scmp.eq.s32.totalorder %s48, 0
      %p372 = por %p370, %p371
      %p373 = scmp.ne.s32.totalorder %s359, %s360
      %p374 = scmp.eq.s32.totalorder %s49, 1
      %p375 = por %p373, %p374
      %p377 = scmp.ne.s32.totalorder %s360, %s376
      %p378 = scmp.eq.s32.totalorder %s49, 0
      %p379 = por %p377, %p378
      %s380 = ssub.s32 %s43, %s50
      %p381 = scmp.eq.s32.totalorder %s380, 0
      %s383 = sadd.s32 %s382, 1
      %s384 = scalar_select %p381, %s382, %s383
      %p387 = pneg %p381
      %p388 = scmp.eq.s32.totalorder %s43, 1
      %p389 = por %p387, %p388
      %p390 = scmp.ne.s32.totalorder %s382, %s385
      %p391 = scmp.eq.s32.totalorder %s43, 0
      %p392 = por %p390, %p391
      %p393 = scmp.ne.s32.totalorder %s382, %s385
      %p394 = scmp.eq.s32.totalorder %s48, 1
      %p395 = por %p393, %p394
      %p396 = scmp.ne.s32.totalorder %s385, %s386
      %p397 = scmp.eq.s32.totalorder %s48, 0
      %p398 = por %p396, %p397
      %p399 = scmp.ne.s32.totalorder %s385, %s386
      %p400 = scmp.eq.s32.totalorder %s49, 1
      %p401 = por %p399, %p400
      %p403 = scmp.ne.s32.totalorder %s386, %s402
      %p404 = scmp.eq.s32.totalorder %s49, 0
      %p405 = por %p403, %p404
      %s406 = ssub.s32 %s43, %s50
      %p407 = scmp.eq.s32.totalorder %s406, 0
      %s409 = sadd.s32 %s408, 1
      %s410 = scalar_select %p407, %s408, %s409
      %p413 = pneg %p407
      %p414 = scmp.eq.s32.totalorder %s43, 1
      %p415 = por %p413, %p414
      %p416 = scmp.ne.s32.totalorder %s408, %s411
      %p417 = scmp.eq.s32.totalorder %s43, 0
      %p418 = por %p416, %p417
      %p419 = scmp.ne.s32.totalorder %s408, %s411
      %p420 = scmp.eq.s32.totalorder %s48, 1
      %p421 = por %p419, %p420
      %p422 = scmp.ne.s32.totalorder %s411, %s412
      %p423 = scmp.eq.s32.totalorder %s48, 0
      %p424 = por %p422, %p423
      %p425 = scmp.ne.s32.totalorder %s411, %s412
      %p426 = scmp.eq.s32.totalorder %s49, 1
      %p427 = por %p425, %p426
      %p429 = scmp.ne.s32.totalorder %s412, %s428
      %p430 = scmp.eq.s32.totalorder %s49, 0
      %p431 = por %p429, %p430
      %s432 = ssub.s32 %s43, %s50
      %p433 = scmp.eq.s32.totalorder %s432, 0
      %s435 = sadd.s32 %s434, 1
      %s436 = scalar_select %p433, %s434, %s435
      %p439 = pneg %p433
      %p440 = scmp.eq.s32.totalorder %s43, 1
      %p441 = por %p439, %p440
      %p442 = scmp.ne.s32.totalorder %s434, %s437
      %p443 = scmp.eq.s32.totalorder %s43, 0
      %p444 = por %p442, %p443
      %p445 = scmp.ne.s32.totalorder %s434, %s437
      %p446 = scmp.eq.s32.totalorder %s48, 1
      %p447 = por %p445, %p446
      %p448 = scmp.ne.s32.totalorder %s437, %s438
      %p449 = scmp.eq.s32.totalorder %s48, 0
      %p450 = por %p448, %p449
      %p451 = scmp.ne.s32.totalorder %s437, %s438
      %p452 = scmp.eq.s32.totalorder %s49, 1
      %p453 = por %p451, %p452
      %p455 = scmp.ne.s32.totalorder %s438, %s454
      %p456 = scmp.eq.s32.totalorder %s49, 0
      %p457 = por %p455, %p456
      %s458 = ssub.s32 %s43, %s50
      %p459 = scmp.eq.s32.totalorder %s458, 0
      %s461 = sadd.s32 %s460, 1
      %s462 = scalar_select %p459, %s460, %s461
      %p465 = pneg %p459
      %p466 = scmp.eq.s32.totalorder %s43, 1
      %p467 = por %p465, %p466
      %p468 = scmp.ne.s32.totalorder %s460, %s463
      %p469 = scmp.eq.s32.totalorder %s43, 0
      %p470 = por %p468, %p469
      %p471 = scmp.ne.s32.totalorder %s460, %s463
      %p472 = scmp.eq.s32.totalorder %s48, 1
      %p473 = por %p471, %p472
      %p474 = scmp.ne.s32.totalorder %s463, %s464
      %p475 = scmp.eq.s32.totalorder %s48, 0
      %p476 = por %p474, %p475
      %p477 = scmp.ne.s32.totalorder %s463, %s464
      %p478 = scmp.eq.s32.totalorder %s49, 1
      %p479 = por %p477, %p478
      %p481 = scmp.ne.s32.totalorder %s464, %s480
      %p482 = scmp.eq.s32.totalorder %s49, 0
      %p483 = por %p481, %p482
      %s484 = ssub.s32 %s43, %s50
      %p485 = scmp.eq.s32.totalorder %s484, 0
      %s487 = sadd.s32 %s486, 1
      %s488 = scalar_select %p485, %s486, %s487
      %p491 = pneg %p485
      %p492 = scmp.eq.s32.totalorder %s43, 1
      %p493 = por %p491, %p492
      %p494 = scmp.ne.s32.totalorder %s486, %s489
      %p495 = scmp.eq.s32.totalorder %s43, 0
      %p496 = por %p494, %p495
      %p497 = scmp.ne.s32.totalorder %s486, %s489
      %p498 = scmp.eq.s32.totalorder %s48, 1
      %p499 = por %p497, %p498
      %p500 = scmp.ne.s32.totalorder %s489, %s490
      %p501 = scmp.eq.s32.totalorder %s48, 0
      %p502 = por %p500, %p501
      %p503 = scmp.ne.s32.totalorder %s489, %s490
      %p504 = scmp.eq.s32.totalorder %s49, 1
      %p505 = por %p503, %p504
      %p507 = scmp.ne.s32.totalorder %s490, %s506
      %p508 = scmp.eq.s32.totalorder %s49, 0
      %p509 = por %p507, %p508
      %s511 = sadd.s32 %s510, 1
      %p514 = scmp.eq.s32.totalorder %s43, 1
      %p515 = scmp.ne.s32.totalorder %s510, %s512
      %p516 = scmp.eq.s32.totalorder %s43, 0
      %p517 = por %p515, %p516
      %p518 = scmp.ne.s32.totalorder %s510, %s512
      %p519 = scmp.eq.s32.totalorder %s48, 1
      %p520 = por %p518, %p519
      %p521 = scmp.ne.s32.totalorder %s512, %s513
      %p522 = scmp.eq.s32.totalorder %s48, 0
      %p523 = por %p521, %p522
      %p524 = scmp.ne.s32.totalorder %s512, %s513
      %p525 = scmp.eq.s32.totalorder %s49, 1
      %p526 = por %p524, %p525
      %p528 = scmp.ne.s32.totalorder %s513, %s527
      %p529 = scmp.eq.s32.totalorder %s49, 0
      %p530 = por %p528, %p529
      %s532 = sadd.s32 %s531, 1
      %p535 = scmp.eq.s32.totalorder %s43, 1
      %p536 = scmp.ne.s32.totalorder %s531, %s533
      %p537 = scmp.eq.s32.totalorder %s43, 0
      %p538 = por %p536, %p537
      %p539 = scmp.ne.s32.totalorder %s531, %s533
      %p540 = scmp.eq.s32.totalorder %s48, 1
      %p541 = por %p539, %p540
      %p542 = scmp.ne.s32.totalorder %s533, %s534
      %p543 = scmp.eq.s32.totalorder %s48, 0
      %p544 = por %p542, %p543
      %p545 = scmp.ne.s32.totalorder %s533, %s534
      %p546 = scmp.eq.s32.totalorder %s49, 1
      %p547 = por %p545, %p546
      %p549 = scmp.ne.s32.totalorder %s534, %s548
      %p550 = scmp.eq.s32.totalorder %s49, 0
      %p551 = por %p549, %p550
      %s553 = sadd.s32 %s552, 1
      %p556 = scmp.eq.s32.totalorder %s43, 1
      %p557 = scmp.ne.s32.totalorder %s552, %s554
      %p558 = scmp.eq.s32.totalorder %s43, 0
      %p559 = por %p557, %p558
      %p560 = scmp.ne.s32.totalorder %s552, %s554
      %p561 = scmp.eq.s32.totalorder %s48, 1
      %p562 = por %p560, %p561
      %p563 = scmp.ne.s32.totalorder %s554, %s555
      %p564 = scmp.eq.s32.totalorder %s48, 0
      %p565 = por %p563, %p564
      %p566 = scmp.ne.s32.totalorder %s554, %s555
      %p567 = scmp.eq.s32.totalorder %s49, 1
      %p568 = por %p566, %p567
      %p570 = scmp.ne.s32.totalorder %s555, %s569
      %p571 = scmp.eq.s32.totalorder %s49, 0
      %p572 = por %p570, %p571
      %s574 = sadd.s32 %s573, 1
      %p577 = scmp.eq.s32.totalorder %s43, 1
      %p578 = scmp.ne.s32.totalorder %s573, %s575
      %p579 = scmp.eq.s32.totalorder %s43, 0
      %p580 = por %p578, %p579
      %p581 = scmp.ne.s32.totalorder %s573, %s575
      %p582 = scmp.eq.s32.totalorder %s48, 1
      %p583 = por %p581, %p582
      %p584 = scmp.ne.s32.totalorder %s575, %s576
      %p585 = scmp.eq.s32.totalorder %s48, 0
      %p586 = por %p584, %p585
      %p587 = scmp.ne.s32.totalorder %s575, %s576
      %p588 = scmp.eq.s32.totalorder %s49, 1
      %p589 = por %p587, %p588
      %p591 = scmp.ne.s32.totalorder %s576, %s590
      %p592 = scmp.eq.s32.totalorder %s49, 0
      %p593 = por %p591, %p592
      %s595 = sadd.s32 %s594, 1
      %p598 = scmp.eq.s32.totalorder %s43, 1
      %p599 = scmp.ne.s32.totalorder %s594, %s596
      %p600 = scmp.eq.s32.totalorder %s43, 0
      %p601 = por %p599, %p600
      %p602 = scmp.ne.s32.totalorder %s594, %s596
      %p603 = scmp.eq.s32.totalorder %s48, 1
      %p604 = por %p602, %p603
      %p605 = scmp.ne.s32.totalorder %s596, %s597
      %p606 = scmp.eq.s32.totalorder %s48, 0
      %p607 = por %p605, %p606
      %p608 = scmp.ne.s32.totalorder %s596, %s597
      %p609 = scmp.eq.s32.totalorder %s49, 1
      %p610 = por %p608, %p609
      %p612 = scmp.ne.s32.totalorder %s597, %s611
      %p613 = scmp.eq.s32.totalorder %s49, 0
      %p614 = por %p612, %p613
      %s616 = sadd.s32 %s615, 1
      %p619 = scmp.eq.s32.totalorder %s43, 1
      %p620 = scmp.ne.s32.totalorder %s615, %s617
      %p621 = scmp.eq.s32.totalorder %s43, 0
      %p622 = por %p620, %p621
      %p623 = scmp.ne.s32.totalorder %s615, %s617
      %p624 = scmp.eq.s32.totalorder %s48, 1
      %p625 = por %p623, %p624
      %p626 = scmp.ne.s32.totalorder %s617, %s618
      %p627 = scmp.eq.s32.totalorder %s48, 0
      %p628 = por %p626, %p627
      %p629 = scmp.ne.s32.totalorder %s617, %s618
      %p630 = scmp.eq.s32.totalorder %s49, 1
      %p631 = por %p629, %p630
      %p633 = scmp.ne.s32.totalorder %s618, %s632
      %p634 = scmp.eq.s32.totalorder %s49, 0
      %p635 = por %p633, %p634
      %s637 = sadd.s32 %s636, 1
      %p640 = scmp.eq.s32.totalorder %s43, 1
      %p641 = scmp.ne.s32.totalorder %s636, %s638
      %p642 = scmp.eq.s32.totalorder %s43, 0
      %p643 = por %p641, %p642
      %p644 = scmp.ne.s32.totalorder %s636, %s638
      %p645 = scmp.eq.s32.totalorder %s48, 1
      %p646 = por %p644, %p645
      %p647 = scmp.ne.s32.totalorder %s638, %s639
      %p648 = scmp.eq.s32.totalorder %s48, 0
      %p649 = por %p647, %p648
      %p650 = scmp.ne.s32.totalorder %s638, %s639
      %p651 = scmp.eq.s32.totalorder %s49, 1
      %p652 = por %p650, %p651
      %p654 = scmp.ne.s32.totalorder %s639, %s653
      %p655 = scmp.eq.s32.totalorder %s49, 0
      %p656 = por %p654, %p655
      %s658 = sadd.s32 %s657, 1
      %p661 = scmp.eq.s32.totalorder %s43, 1
      %p662 = scmp.ne.s32.totalorder %s657, %s659
      %p663 = scmp.eq.s32.totalorder %s43, 0
      %p664 = por %p662, %p663
      %p665 = scmp.ne.s32.totalorder %s657, %s659
      %p666 = scmp.eq.s32.totalorder %s48, 1
      %p667 = por %p665, %p666
      %p668 = scmp.ne.s32.totalorder %s659, %s660
      %p669 = scmp.eq.s32.totalorder %s48, 0
      %p670 = por %p668, %p669
      %p671 = scmp.ne.s32.totalorder %s659, %s660
      %p672 = scmp.eq.s32.totalorder %s49, 1
      %p673 = por %p671, %p672
      %p675 = scmp.ne.s32.totalorder %s660, %s674
      %p676 = scmp.eq.s32.totalorder %s49, 0
      %p677 = por %p675, %p676
      %p678 = scmp.le.s32.totalorder 1, %s43
      %p679 = scmp.lt.s32.totalorder %s43, 3
      %p680 = pnand %p678, %p679
      %p681 = pneg %p680
      // Predicated region
      $region9: #{tpu_custom_call.1} parent=5 // pred_check
        _
      $region10: #{tpu_custom_call.1} parent=5 // pred_check_branch
        %683 = sbr.rel (%p680) target = $region12
      $region11: #{tpu_custom_call.1} parent=5 // pred_region
        %s684 = ssub.s32 %s43, 1
        // Predicated region
        $region13: #{tpu_custom_call.1} parent=11 // pred_check
          %p685 = pneg %p64
        $region14: #{tpu_custom_call.1} parent=11 // pred_check_branch
          %687 = sbr.rel (%p685) target = $region16
        $region15: #{tpu_custom_call.1} parent=11 // pred_region
          %s689 = ssub.s32 1024, 1024
          %690 = vsyncadd [#allocation5], %s689
          %s691 = sshll.u32 [#allocation4], 4
          %s692 = int_to_ptr.vmem [resolvable:$true] %s691
          %697 = dma.hbm_to_vmem [thread:$0]  %s0, 1024, %s692, [#allocation5], 64, 64, 4
        $region16: #{tpu_custom_call.1} parent=11 // pred_fallthru
          _
        // Predicated region
        $region17: #{tpu_custom_call.1} parent=11 // pred_check
          %p698 = pneg %p85
        $region18: #{tpu_custom_call.1} parent=11 // pred_check_branch
          %700 = sbr.rel (%p698) target = $region20
        $region19: #{tpu_custom_call.1} parent=11 // pred_region
          %s702 = ssub.s32 1024, 1024
          %703 = vsyncadd [#allocation8], %s702
          %s704 = sshll.u32 [#allocation7], 4
          %s705 = int_to_ptr.vmem [resolvable:$true] %s704
          %710 = dma.hbm_to_vmem [thread:$0]  %s1, 1024, %s705, [#allocation8], 64, 64, 4
        $region20: #{tpu_custom_call.1} parent=11 // pred_fallthru
          _
        // Predicated region
        $region21: #{tpu_custom_call.1} parent=11 // pred_check
          %p711 = pneg %p106
        $region22: #{tpu_custom_call.1} parent=11 // pred_check_branch
          %713 = sbr.rel (%p711) target = $region24
        $region23: #{tpu_custom_call.1} parent=11 // pred_region
          %s715 = ssub.s32 1024, 1024
          %716 = vsyncadd [#allocation8], %s715
          %s717 = sshll.u32 [#allocation9], 4
          %s718 = int_to_ptr.vmem [resolvable:$true] %s717
          %723 = dma.hbm_to_vmem [thread:$0]  %s2, 1024, %s718, [#allocation8], 64, 64, 4
        $region24: #{tpu_custom_call.1} parent=11 // pred_fallthru
          _
        // Predicated region
        $region25: #{tpu_custom_call.1} parent=11 // pred_check
          %p724 = pneg %p127
        $region26: #{tpu_custom_call.1} parent=11 // pred_check_branch
          %726 = sbr.rel (%p724) target = $region28
        $region27: #{tpu_custom_call.1} parent=11 // pred_region
          %s728 = ssub.s32 1024, 1024
          %729 = vsyncadd [#allocation11], %s728
          %s730 = sshll.u32 [#allocation10], 4
          %s731 = int_to_ptr.vmem [resolvable:$true] %s730
          %736 = dma.hbm_to_vmem [thread:$0]  %s3, 1024, %s731, [#allocation11], 64, 64, 4
        $region28: #{tpu_custom_call.1} parent=11 // pred_fallthru
          _
        // Predicated region
        $region29: #{tpu_custom_call.1} parent=11 // pred_check
          %p737 = pneg %p148
        $region30: #{tpu_custom_call.1} parent=11 // pred_check_branch
          %739 = sbr.rel (%p737) target = $region32
        $region31: #{tpu_custom_call.1} parent=11 // pred_region
          _
        $region32: #{tpu_custom_call.1} parent=11 // pred_fallthru
          _
        // Predicated region
        $region33: #{tpu_custom_call.1} parent=11 // pred_check
          %p740 = pneg %p169
        $region34: #{tpu_custom_call.1} parent=11 // pred_check_branch
          %742 = sbr.rel (%p740) target = $region36
        $region35: #{tpu_custom_call.1} parent=11 // pred_region
          %s744 = ssub.s32 1024, 1024
          %745 = vsyncadd [#allocation11], %s744
          %s746 = sshll.u32 [#allocation12], 4
          %s747 = int_to_ptr.vmem [resolvable:$true] %s746
          %752 = dma.hbm_to_vmem [thread:$0]  %s5, 1024, %s747, [#allocation11], 64, 64, 4
        $region36: #{tpu_custom_call.1} parent=11 // pred_fallthru
          _
        // Predicated region
        $region37: #{tpu_custom_call.1} parent=11 // pred_check
          %p753 = pneg %p190
        $region38: #{tpu_custom_call.1} parent=11 // pred_check_branch
          %755 = sbr.rel (%p753) target = $region40
        $region39: #{tpu_custom_call.1} parent=11 // pred_region
          _
        $region40: #{tpu_custom_call.1} parent=11 // pred_fallthru
          _
        // Predicated region
        $region41: #{tpu_custom_call.1} parent=11 // pred_check
          %p756 = pneg %p523
        $region42: #{tpu_custom_call.1} parent=11 // pred_check_branch
          %758 = sbr.rel (%p756) target = $region44
        $region43: #{tpu_custom_call.1} parent=11 // pred_region
          _
        $region44: #{tpu_custom_call.1} parent=11 // pred_fallthru
          _
        // Predicated region
        $region45: #{tpu_custom_call.1} parent=11 // pred_check
          %p759 = pneg %p544
        $region46: #{tpu_custom_call.1} parent=11 // pred_check_branch
          %761 = sbr.rel (%p759) target = $region48
        $region47: #{tpu_custom_call.1} parent=11 // pred_region
          _
        $region48: #{tpu_custom_call.1} parent=11 // pred_fallthru
          _
        // Predicated region
        $region49: #{tpu_custom_call.1} parent=11 // pred_check
          %p762 = pneg %p565
        $region50: #{tpu_custom_call.1} parent=11 // pred_check_branch
          %764 = sbr.rel (%p762) target = $region52
        $region51: #{tpu_custom_call.1} parent=11 // pred_region
          _
        $region52: #{tpu_custom_call.1} parent=11 // pred_fallthru
          _
        // Predicated region
        $region53: #{tpu_custom_call.1} parent=11 // pred_check
          %p765 = pneg %p586
        $region54: #{tpu_custom_call.1} parent=11 // pred_check_branch
          %767 = sbr.rel (%p765) target = $region56
        $region55: #{tpu_custom_call.1} parent=11 // pred_region
          _
        $region56: #{tpu_custom_call.1} parent=11 // pred_fallthru
          _
        // Predicated region
        $region57: #{tpu_custom_call.1} parent=11 // pred_check
          %p768 = pneg %p607
        $region58: #{tpu_custom_call.1} parent=11 // pred_check_branch
          %770 = sbr.rel (%p768) target = $region60
        $region59: #{tpu_custom_call.1} parent=11 // pred_region
          _
        $region60: #{tpu_custom_call.1} parent=11 // pred_fallthru
          _
        // Predicated region
        $region61: #{tpu_custom_call.1} parent=11 // pred_check
          %p771 = pneg %p628
        $region62: #{tpu_custom_call.1} parent=11 // pred_check_branch
          %773 = sbr.rel (%p771) target = $region64
        $region63: #{tpu_custom_call.1} parent=11 // pred_region
          %s775 = ssub.s32 1024, 1024
          %776 = vsyncadd [#allocation20], %s775
          %s777 = sshll.u32 [#allocation19], 4
          %s778 = int_to_ptr.vmem [resolvable:$true] %s777
          %783 = dma.hbm_to_vmem [thread:$0]  %s24, 1024, %s778, [#allocation20], 64, 64, 4
        $region64: #{tpu_custom_call.1} parent=11 // pred_fallthru
          _
        // Predicated region
        $region65: #{tpu_custom_call.1} parent=11 // pred_check
          %p784 = pneg %p649
        $region66: #{tpu_custom_call.1} parent=11 // pred_check_branch
          %786 = sbr.rel (%p784) target = $region68
        $region67: #{tpu_custom_call.1} parent=11 // pred_region
          _
        $region68: #{tpu_custom_call.1} parent=11 // pred_fallthru
          _
      $region12: #{tpu_custom_call.1} parent=5 // pred_fallthru
        _
      %p787 = scmp.lt.s32.totalorder %s43, 2
      // Predicated region
      $region69: #{tpu_custom_call.1} parent=5 // pred_check
        %p788 = pneg %p787
      $region70: #{tpu_custom_call.1} parent=5 // pred_check_branch
        %790 = sbr.rel (%p788) target = $region72
      $region71: #{tpu_custom_call.1} parent=5 // pred_region
        // Predicated region
        $region73: #{tpu_custom_call.1} parent=71 // pred_check
          %p791 = pneg %p210
        $region74: #{tpu_custom_call.1} parent=71 // pred_check_branch
          %793 = sbr.rel (%p791) target = $region76
        $region75: #{tpu_custom_call.1} parent=71 // pred_region
          %p794 = scmp.lt.s32.totalorder %s43, 1
          %s795 = scalar_select %p794, %s43, 1
          %s796 = scalar_lea.vmem %s7, %s795
        $region76: #{tpu_custom_call.1} parent=71 // pred_fallthru
          _
        // Predicated region
        $region77: #{tpu_custom_call.1} parent=71 // pred_check
          %p797 = pneg %p236
        $region78: #{tpu_custom_call.1} parent=71 // pred_check_branch
          %799 = sbr.rel (%p797) target = $region80
        $region79: #{tpu_custom_call.1} parent=71 // pred_region
          %p800 = scmp.lt.s32.totalorder %s43, 1
          %s801 = scalar_select %p800, %s43, 1
          %s802 = scalar_lea.vmem %s8, %s801
        $region80: #{tpu_custom_call.1} parent=71 // pred_fallthru
          _
        // Predicated region
        $region81: #{tpu_custom_call.1} parent=71 // pred_check
          %p803 = pneg %p262
        $region82: #{tpu_custom_call.1} parent=71 // pred_check_branch
          %805 = sbr.rel (%p803) target = $region84
        $region83: #{tpu_custom_call.1} parent=71 // pred_region
          %s806 = sand.u32 %s43, 1
          %s807 = scalar_lea.sflag [#allocation14], %s806
          %s808 = sand.u32 %s252, 1
          %s809 = smul.addr %s808, 64
          %s810 = scalar_lea.vmem [#allocation13], %s809
          %s812 = ssub.s32 1024, 1024
          %813 = vsyncadd %s807, %s812
          %s814 = smul.addr %s43, 16
          %s815 = smul.addr %s814, 64
          %s816 = scalar_lea.hbm %s9, %s815
          %s817 = sshll.u32 %s810, 4
          %s818 = int_to_ptr.vmem [resolvable:$true] %s817
          %823 = dma.hbm_to_vmem [thread:$0]  %s816, 1024, %s818, %s807, 64, 64, 4
        $region84: #{tpu_custom_call.1} parent=71 // pred_fallthru
          _
        // Predicated region
        $region85: #{tpu_custom_call.1} parent=71 // pred_check
          %p824 = pneg %p288
        $region86: #{tpu_custom_call.1} parent=71 // pred_check_branch
          %826 = sbr.rel (%p824) target = $region88
        $region87: #{tpu_custom_call.1} parent=71 // pred_region
          %p827 = scmp.lt.s32.totalorder %s43, 1
          %s828 = scalar_select %p827, %s43, 1
          %s829 = scalar_lea.vmem %s10, %s828
        $region88: #{tpu_custom_call.1} parent=71 // pred_fallthru
          _
        // Predicated region
        $region89: #{tpu_custom_call.1} parent=71 // pred_check
          %p830 = pneg %p314
        $region90: #{tpu_custom_call.1} parent=71 // pred_check_branch
          %832 = sbr.rel (%p830) target = $region92
        $region91: #{tpu_custom_call.1} parent=71 // pred_region
          %s833 = sand.u32 %s43, 1
          %s834 = scalar_lea.sflag [#allocation14], %s833
          %s835 = sand.u32 %s304, 1
          %s836 = smul.addr %s835, 64
          %s837 = scalar_lea.vmem [#allocation15], %s836
          %s839 = ssub.s32 1024, 1024
          %840 = vsyncadd %s834, %s839
          %s841 = smul.addr %s43, 16
          %s842 = smul.addr %s841, 64
          %s843 = scalar_lea.hbm %s11, %s842
          %s844 = sshll.u32 %s837, 4
          %s845 = int_to_ptr.vmem [resolvable:$true] %s844
          %850 = dma.hbm_to_vmem [thread:$0]  %s843, 1024, %s845, %s834, 64, 64, 4
        $region92: #{tpu_custom_call.1} parent=71 // pred_fallthru
          _
        // Predicated region
        $region93: #{tpu_custom_call.1} parent=71 // pred_check
          %p851 = pneg %p340
        $region94: #{tpu_custom_call.1} parent=71 // pred_check_branch
          %853 = sbr.rel (%p851) target = $region96
        $region95: #{tpu_custom_call.1} parent=71 // pred_region
          %p854 = scmp.lt.s32.totalorder %s43, 1
          %s855 = scalar_select %p854, %s43, 1
          %s856 = scalar_lea.vmem %s12, %s855
        $region96: #{tpu_custom_call.1} parent=71 // pred_fallthru
          _
        // Predicated region
        $region97: #{tpu_custom_call.1} parent=71 // pred_check
          %p857 = pneg %p366
        $region98: #{tpu_custom_call.1} parent=71 // pred_check_branch
          %859 = sbr.rel (%p857) target = $region100
        $region99: #{tpu_custom_call.1} parent=71 // pred_region
          %p860 = scmp.lt.s32.totalorder %s43, 1
          %s861 = scalar_select %p860, %s43, 1
          %s862 = scalar_lea.vmem %s13, %s861
        $region100: #{tpu_custom_call.1} parent=71 // pred_fallthru
          _
        // Predicated region
        $region101: #{tpu_custom_call.1} parent=71 // pred_check
          %p863 = pneg %p392
        $region102: #{tpu_custom_call.1} parent=71 // pred_check_branch
          %865 = sbr.rel (%p863) target = $region104
        $region103: #{tpu_custom_call.1} parent=71 // pred_region
          %p866 = scmp.lt.s32.totalorder %s43, 1
          %s867 = scalar_select %p866, %s43, 1
          %s868 = scalar_lea.vmem %s14, %s867
        $region104: #{tpu_custom_call.1} parent=71 // pred_fallthru
          _
        // Predicated region
        $region105: #{tpu_custom_call.1} parent=71 // pred_check
          %p869 = pneg %p418
        $region106: #{tpu_custom_call.1} parent=71 // pred_check_branch
          %871 = sbr.rel (%p869) target = $region108
        $region107: #{tpu_custom_call.1} parent=71 // pred_region
          %s872 = sand.u32 %s43, 1
          %s873 = scalar_lea.sflag [#allocation17], %s872
          %s874 = sand.u32 %s408, 1
          %s875 = smul.addr %s874, 64
          %s876 = scalar_lea.vmem [#allocation16], %s875
          %s878 = ssub.s32 1024, 1024
          %879 = vsyncadd %s873, %s878
          %s880 = smul.addr %s43, 16
          %s881 = smul.addr %s880, 64
          %s882 = scalar_lea.hbm %s15, %s881
          %s883 = sshll.u32 %s876, 4
          %s884 = int_to_ptr.vmem [resolvable:$true] %s883
          %889 = dma.hbm_to_vmem [thread:$0]  %s882, 1024, %s884, %s873, 64, 64, 4
        $region108: #{tpu_custom_call.1} parent=71 // pred_fallthru
          _
        // Predicated region
        $region109: #{tpu_custom_call.1} parent=71 // pred_check
          %p890 = pneg %p444
        $region110: #{tpu_custom_call.1} parent=71 // pred_check_branch
          %892 = sbr.rel (%p890) target = $region112
        $region111: #{tpu_custom_call.1} parent=71 // pred_region
          %p893 = scmp.lt.s32.totalorder %s43, 1
          %s894 = scalar_select %p893, %s43, 1
          %s895 = scalar_lea.vmem %s16, %s894
        $region112: #{tpu_custom_call.1} parent=71 // pred_fallthru
          _
        // Predicated region
        $region113: #{tpu_custom_call.1} parent=71 // pred_check
          %p896 = pneg %p470
        $region114: #{tpu_custom_call.1} parent=71 // pred_check_branch
          %898 = sbr.rel (%p896) target = $region116
        $region115: #{tpu_custom_call.1} parent=71 // pred_region
          %s899 = sand.u32 %s43, 1
          %s900 = scalar_lea.sflag [#allocation17], %s899
          %s901 = sand.u32 %s460, 1
          %s902 = smul.addr %s901, 64
          %s903 = scalar_lea.vmem [#allocation18], %s902
          %s905 = ssub.s32 1024, 1024
          %906 = vsyncadd %s900, %s905
          %s907 = smul.addr %s43, 16
          %s908 = smul.addr %s907, 64
          %s909 = scalar_lea.hbm %s17, %s908
          %s910 = sshll.u32 %s903, 4
          %s911 = int_to_ptr.vmem [resolvable:$true] %s910
          %916 = dma.hbm_to_vmem [thread:$0]  %s909, 1024, %s911, %s900, 64, 64, 4
        $region116: #{tpu_custom_call.1} parent=71 // pred_fallthru
          _
        // Predicated region
        $region117: #{tpu_custom_call.1} parent=71 // pred_check
          %p917 = pneg %p496
        $region118: #{tpu_custom_call.1} parent=71 // pred_check_branch
          %919 = sbr.rel (%p917) target = $region120
        $region119: #{tpu_custom_call.1} parent=71 // pred_region
          %p920 = scmp.lt.s32.totalorder %s43, 1
          %s921 = scalar_select %p920, %s43, 1
          %s922 = scalar_lea.vmem %s18, %s921
        $region120: #{tpu_custom_call.1} parent=71 // pred_fallthru
          _
      $region72: #{tpu_custom_call.1} parent=5 // pred_fallthru
        _
      %p923 = scmp.le.s32.totalorder 1, %s43
      %p924 = scmp.lt.s32.totalorder %s43, 3
      %p925 = pnand %p923, %p924
      %p926 = pneg %p925
      // Predicated region
      $region121: #{tpu_custom_call.1} parent=5 // pred_check
        _
      $region122: #{tpu_custom_call.1} parent=5 // pred_check_branch
        %928 = sbr.rel (%p925) target = $region124
      $region123: #{tpu_custom_call.1} parent=5 // pred_region
        %s929 = ssub.s32 %s43, 1
        // Predicated region
        $region125: #{tpu_custom_call.1} parent=123 // pred_check
          %p930 = pneg %p64
        $region126: #{tpu_custom_call.1} parent=123 // pred_check_branch
          %932 = sbr.rel (%p930) target = $region128
        $region127: #{tpu_custom_call.1} parent=123 // pred_region
          %933 = dma.done [#allocation5], 1024
        $region128: #{tpu_custom_call.1} parent=123 // pred_fallthru
          _
        // Predicated region
        $region129: #{tpu_custom_call.1} parent=123 // pred_check
          %p934 = pneg %p85
        $region130: #{tpu_custom_call.1} parent=123 // pred_check_branch
          %936 = sbr.rel (%p934) target = $region132
        $region131: #{tpu_custom_call.1} parent=123 // pred_region
          %937 = dma.done [#allocation8], 1024
        $region132: #{tpu_custom_call.1} parent=123 // pred_fallthru
          _
        // Predicated region
        $region133: #{tpu_custom_call.1} parent=123 // pred_check
          %p938 = pneg %p106
        $region134: #{tpu_custom_call.1} parent=123 // pred_check_branch
          %940 = sbr.rel (%p938) target = $region136
        $region135: #{tpu_custom_call.1} parent=123 // pred_region
          %941 = dma.done [#allocation8], 1024
        $region136: #{tpu_custom_call.1} parent=123 // pred_fallthru
          _
        // Predicated region
        $region137: #{tpu_custom_call.1} parent=123 // pred_check
          %p942 = pneg %p127
        $region138: #{tpu_custom_call.1} parent=123 // pred_check_branch
          %944 = sbr.rel (%p942) target = $region140
        $region139: #{tpu_custom_call.1} parent=123 // pred_region
          %945 = dma.done [#allocation11], 1024
        $region140: #{tpu_custom_call.1} parent=123 // pred_fallthru
          _
        // Predicated region
        $region141: #{tpu_custom_call.1} parent=123 // pred_check
          %p946 = pneg %p169
        $region142: #{tpu_custom_call.1} parent=123 // pred_check_branch
          %948 = sbr.rel (%p946) target = $region144
        $region143: #{tpu_custom_call.1} parent=123 // pred_region
          %949 = dma.done [#allocation11], 1024
        $region144: #{tpu_custom_call.1} parent=123 // pred_fallthru
          _
        %s950 = sand.u32 %s48, 1
        %s951 = scalar_lea.sflag [#allocation14], %s950
        %s952 = sand.u32 %s255, 1
        %s953 = smul.addr %s952, 64
        %s954 = scalar_lea.vmem [#allocation13], %s953
        // Predicated region
        $region145: #{tpu_custom_call.1} parent=123 // pred_check
          %p955 = pneg %p268
        $region146: #{tpu_custom_call.1} parent=123 // pred_check_branch
          %957 = sbr.rel (%p955) target = $region148
        $region147: #{tpu_custom_call.1} parent=123 // pred_region
          %958 = dma.done %s951, 1024
        $region148: #{tpu_custom_call.1} parent=123 // pred_fallthru
          _
        %s959 = sand.u32 %s48, 1
        %s960 = scalar_lea.sflag [#allocation14], %s959
        %s961 = sand.u32 %s307, 1
        %s962 = smul.addr %s961, 64
        %s963 = scalar_lea.vmem [#allocation15], %s962
        // Predicated region
        $region149: #{tpu_custom_call.1} parent=123 // pred_check
          %p964 = pneg %p320
        $region150: #{tpu_custom_call.1} parent=123 // pred_check_branch
          %966 = sbr.rel (%p964) target = $region152
        $region151: #{tpu_custom_call.1} parent=123 // pred_region
          %967 = dma.done %s960, 1024
        $region152: #{tpu_custom_call.1} parent=123 // pred_fallthru
          _
        %s968 = sand.u32 %s48, 1
        %s969 = scalar_lea.sflag [#allocation17], %s968
        %s970 = sand.u32 %s411, 1
        %s971 = smul.addr %s970, 64
        %s972 = scalar_lea.vmem [#allocation16], %s971
        // Predicated region
        $region153: #{tpu_custom_call.1} parent=123 // pred_check
          %p973 = pneg %p424
        $region154: #{tpu_custom_call.1} parent=123 // pred_check_branch
          %975 = sbr.rel (%p973) target = $region156
        $region155: #{tpu_custom_call.1} parent=123 // pred_region
          %976 = dma.done %s969, 1024
        $region156: #{tpu_custom_call.1} parent=123 // pred_fallthru
          _
        %s977 = sand.u32 %s48, 1
        %s978 = scalar_lea.sflag [#allocation17], %s977
        %s979 = sand.u32 %s463, 1
        %s980 = smul.addr %s979, 64
        %s981 = scalar_lea.vmem [#allocation18], %s980
        // Predicated region
        $region157: #{tpu_custom_call.1} parent=123 // pred_check
          %p982 = pneg %p476
        $region158: #{tpu_custom_call.1} parent=123 // pred_check_branch
          %984 = sbr.rel (%p982) target = $region160
        $region159: #{tpu_custom_call.1} parent=123 // pred_region
          %985 = dma.done %s978, 1024
        $region160: #{tpu_custom_call.1} parent=123 // pred_fallthru
          _
        // Predicated region
        $region161: #{tpu_custom_call.1} parent=123 // pred_check
          %p986 = pneg %p628
        $region162: #{tpu_custom_call.1} parent=123 // pred_check_branch
          %988 = sbr.rel (%p986) target = $region164
        $region163: #{tpu_custom_call.1} parent=123 // pred_region
          %989 = dma.done [#allocation20], 1024
        $region164: #{tpu_custom_call.1} parent=123 // pred_fallthru
          _
        %p990 = pneg %p64
        %p991 = pneg %p61
        %p992 = pneg %p85
        %p993 = pneg %p82
        %p994 = pneg %p106
        %p995 = pneg %p103
        %p996 = pneg %p127
        %p997 = pneg %p124
        %p998 = pneg %p148
        %p999 = pneg %p145
        %p1000 = pneg %p169
        %p1001 = pneg %p166
        %p1002 = pneg %p190
        %p1003 = pneg %p187
        %p1004 = scmp.lt.s32.totalorder %s48, 1
        %s1005 = scalar_select %p1004, %s48, 1
        %s1006 = scalar_lea.vmem %s7, %s1005
        %p1007 = pneg %p216
        %p1008 = pneg %p213
        %p1009 = scmp.lt.s32.totalorder %s48, 1
        %s1010 = scalar_select %p1009, %s48, 1
        %s1011 = scalar_lea.vmem %s8, %s1010
        %p1012 = pneg %p242
        %p1013 = pneg %p239
        %s1014 = sand.u32 %s48, 1
        %s1015 = scalar_lea.sflag [#allocation14], %s1014
        %s1016 = sand.u32 %s255, 1
        %s1017 = smul.addr %s1016, 64
        %s1018 = scalar_lea.vmem [#allocation13], %s1017
        %p1019 = pneg %p268
        %p1020 = pneg %p265
        %p1021 = scmp.lt.s32.totalorder %s48, 1
        %s1022 = scalar_select %p1021, %s48, 1
        %s1023 = scalar_lea.vmem %s10, %s1022
        %p1024 = pneg %p294
        %p1025 = pneg %p291
        %s1026 = sand.u32 %s48, 1
        %s1027 = scalar_lea.sflag [#allocation14], %s1026
        %s1028 = sand.u32 %s307, 1
        %s1029 = smul.addr %s1028, 64
        %s1030 = scalar_lea.vmem [#allocation15], %s1029
        %p1031 = pneg %p320
        %p1032 = pneg %p317
        %p1033 = scmp.lt.s32.totalorder %s48, 1
        %s1034 = scalar_select %p1033, %s48, 1
        %s1035 = scalar_lea.vmem %s12, %s1034
        %p1036 = pneg %p346
        %p1037 = pneg %p343
        %p1038 = scmp.lt.s32.totalorder %s48, 1
        %s1039 = scalar_select %p1038, %s48, 1
        %s1040 = scalar_lea.vmem %s13, %s1039
        %p1041 = pneg %p372
        %p1042 = pneg %p369
        %p1043 = scmp.lt.s32.totalorder %s48, 1
        %s1044 = scalar_select %p1043, %s48, 1
        %s1045 = scalar_lea.vmem %s14, %s1044
        %p1046 = pneg %p398
        %p1047 = pneg %p395
        %s1048 = sand.u32 %s48, 1
        %s1049 = scalar_lea.sflag [#allocation17], %s1048
        %s1050 = sand.u32 %s411, 1
        %s1051 = smul.addr %s1050, 64
        %s1052 = scalar_lea.vmem [#allocation16], %s1051
        %p1053 = pneg %p424
        %p1054 = pneg %p421
        %p1055 = scmp.lt.s32.totalorder %s48, 1
        %s1056 = scalar_select %p1055, %s48, 1
        %s1057 = scalar_lea.vmem %s16, %s1056
        %p1058 = pneg %p450
        %p1059 = pneg %p447
        %s1060 = sand.u32 %s48, 1
        %s1061 = scalar_lea.sflag [#allocation17], %s1060
        %s1062 = sand.u32 %s463, 1
        %s1063 = smul.addr %s1062, 64
        %s1064 = scalar_lea.vmem [#allocation18], %s1063
        %p1065 = pneg %p476
        %p1066 = pneg %p473
        %p1067 = scmp.lt.s32.totalorder %s48, 1
        %s1068 = scalar_select %p1067, %s48, 1
        %s1069 = scalar_lea.vmem %s18, %s1068
        %p1070 = pneg %p502
        %p1071 = pneg %p499
        %p1072 = pneg %p523
        %p1073 = pneg %p520
        %p1074 = pneg %p544
        %p1075 = pneg %p541
        %p1076 = pneg %p565
        %p1077 = pneg %p562
        %p1078 = pneg %p586
        %p1079 = pneg %p583
        %p1080 = pneg %p607
        %p1081 = pneg %p604
        %p1082 = pneg %p628
        %p1083 = pneg %p625
        %p1084 = pneg %p649
        %p1085 = pneg %p646
        %p1086 = pneg %p670
        %p1087 = pneg %p667
        %p1088 = scmp.lt.s32.totalorder %s48, 1
        %s1089 = scalar_select %p1088, %s48, 1
        %s1090 = scalar_lea.vmem %s7, %s1089
        %p1091 = scmp.lt.s32.totalorder %s48, 1
        %s1092 = scalar_select %p1091, %s48, 1
        %s1093 = scalar_lea.vmem %s8, %s1092
        %p1094 = scmp.lt.s32.totalorder %s48, 1
        %s1095 = scalar_select %p1094, %s48, 1
        %s1096 = scalar_lea.vmem %s10, %s1095
        %p1097 = scmp.lt.s32.totalorder %s48, 1
        %s1098 = scalar_select %p1097, %s48, 1
        %s1099 = scalar_lea.vmem %s12, %s1098
        %p1100 = scmp.lt.s32.totalorder %s48, 1
        %s1101 = scalar_select %p1100, %s48, 1
        %s1102 = scalar_lea.vmem %s13, %s1101
        %p1103 = scmp.lt.s32.totalorder %s48, 1
        %s1104 = scalar_select %p1103, %s48, 1
        %s1105 = scalar_lea.vmem %s14, %s1104
        %p1106 = scmp.lt.s32.totalorder %s48, 1
        %s1107 = scalar_select %p1106, %s48, 1
        %s1108 = scalar_lea.vmem %s16, %s1107
        %p1109 = scmp.lt.s32.totalorder %s48, 1
        %s1110 = scalar_select %p1109, %s48, 1
        %s1111 = scalar_lea.vmem %s18, %s1110
        %p1113 = scmp.eq.s32.totalorder %s48, 0
        // Predicated region
        $region165: #{tpu_custom_call.1} parent=123 // pred_check
          %p1114 = pneg %p1113
        $region166: #{tpu_custom_call.1} parent=123 // pred_check_branch
          %1116 = sbr.rel (%p1114) target = $region168
        $region167: #{tpu_custom_call.1} parent=123 // pred_region
          %v1117 = vld [vmem:[#allocation4] sm:$0xf]
          %v1118 = vld [vmem:[#allocation4 + $0x4] sm:$0xf]
          %v1119 = vld [vmem:[#allocation4 + $0x8] sm:$0xf]
          %v1120 = vld [vmem:[#allocation4 + $0xc] sm:$0xf]
          %v1121 = vld [vmem:[#allocation4 + $0x10] sm:$0xf]
          %v1122 = vld [vmem:[#allocation4 + $0x14] sm:$0xf]
          %v1123 = vld [vmem:[#allocation4 + $0x18] sm:$0xf]
          %v1124 = vld [vmem:[#allocation4 + $0x1c] sm:$0xf]
          %v1125 = vld [vmem:[#allocation4 + $0x20] sm:$0xf]
          %v1126 = vld [vmem:[#allocation4 + $0x24] sm:$0xf]
          %v1127 = vld [vmem:[#allocation4 + $0x28] sm:$0xf]
          %v1128 = vld [vmem:[#allocation4 + $0x2c] sm:$0xf]
          %v1129 = vld [vmem:[#allocation4 + $0x30] sm:$0xf]
          %v1130 = vld [vmem:[#allocation4 + $0x34] sm:$0xf]
          %v1131 = vld [vmem:[#allocation4 + $0x38] sm:$0xf]
          %v1132 = vld [vmem:[#allocation4 + $0x3c] sm:$0xf]
          %v1133 = vld [vmem:[#allocation10] sm:$0xf]
          %v1134 = vld [vmem:[#allocation10 + $0x4] sm:$0xf]
          %v1135 = vld [vmem:[#allocation10 + $0x8] sm:$0xf]
          %v1136 = vld [vmem:[#allocation10 + $0xc] sm:$0xf]
          %v1137 = vld [vmem:[#allocation10 + $0x10] sm:$0xf]
          %v1138 = vld [vmem:[#allocation10 + $0x14] sm:$0xf]
          %v1139 = vld [vmem:[#allocation10 + $0x18] sm:$0xf]
          %v1140 = vld [vmem:[#allocation10 + $0x1c] sm:$0xf]
          %v1141 = vld [vmem:[#allocation10 + $0x20] sm:$0xf]
          %v1142 = vld [vmem:[#allocation10 + $0x24] sm:$0xf]
          %v1143 = vld [vmem:[#allocation10 + $0x28] sm:$0xf]
          %v1144 = vld [vmem:[#allocation10 + $0x2c] sm:$0xf]
          %v1145 = vld [vmem:[#allocation10 + $0x30] sm:$0xf]
          %v1146 = vld [vmem:[#allocation10 + $0x34] sm:$0xf]
          %v1147 = vld [vmem:[#allocation10 + $0x38] sm:$0xf]
          %v1148 = vld [vmem:[#allocation10 + $0x3c] sm:$0xf]
          %v1149 = vld [vmem:[%s4] sm:$0x1]
          %v1151 = vlaneseq
          %v1152 = vshrl.u32 %v1151, 7
          %v1153 = vsub.s32 0, %v1152
          %v1154 = vrot.slane %v1149, %v1153
          %v1172 = vunpack.c.l.b16 %v1117
          %v1173 = vunpack.c.l.b16 %v1118
          %v1174 = vunpack.c.l.b16 %v1119
          %v1175 = vunpack.c.l.b16 %v1120
          %v1176 = vunpack.c.l.b16 %v1121
          %v1177 = vunpack.c.l.b16 %v1122
          %v1178 = vunpack.c.l.b16 %v1123
          %v1179 = vunpack.c.l.b16 %v1124
          %v1180 = vunpack.c.l.b16 %v1125
          %v1181 = vunpack.c.l.b16 %v1126
          %v1182 = vunpack.c.l.b16 %v1127
          %v1183 = vunpack.c.l.b16 %v1128
          %v1184 = vunpack.c.l.b16 %v1129
          %v1185 = vunpack.c.l.b16 %v1130
          %v1186 = vunpack.c.l.b16 %v1131
          %v1187 = vunpack.c.l.b16 %v1132
          %v1188 = vpack.c.b16 %v1173, %v1172
          %v1189 = vpack.c.b16 %v1175, %v1174
          %v1190 = vpack.c.b16 %v1177, %v1176
          %v1191 = vpack.c.b16 %v1179, %v1178
          %v1192 = vpack.c.b16 %v1181, %v1180
          %v1193 = vpack.c.b16 %v1183, %v1182
          %v1194 = vpack.c.b16 %v1185, %v1184
          %v1195 = vpack.c.b16 %v1187, %v1186
          %v1220 = vunpack.c.l.b16 %v1133
          %v1221 = vunpack.c.l.b16 %v1134
          %v1222 = vunpack.c.l.b16 %v1135
          %v1223 = vunpack.c.l.b16 %v1136
          %v1224 = vunpack.c.l.b16 %v1137
          %v1225 = vunpack.c.l.b16 %v1138
          %v1226 = vunpack.c.l.b16 %v1139
          %v1227 = vunpack.c.l.b16 %v1140
          %v1228 = vunpack.c.l.b16 %v1141
          %v1229 = vunpack.c.l.b16 %v1142
          %v1230 = vunpack.c.l.b16 %v1143
          %v1231 = vunpack.c.l.b16 %v1144
          %v1232 = vunpack.c.l.b16 %v1145
          %v1233 = vunpack.c.l.b16 %v1146
          %v1234 = vunpack.c.l.b16 %v1147
          %v1235 = vunpack.c.l.b16 %v1148
          %v1236 = vpack.c.b16 %v1221, %v1220
          %v1237 = vpack.c.b16 %v1223, %v1222
          %v1238 = vpack.c.b16 %v1225, %v1224
          %v1239 = vpack.c.b16 %v1227, %v1226
          %v1240 = vpack.c.b16 %v1229, %v1228
          %v1241 = vpack.c.b16 %v1231, %v1230
          %v1242 = vpack.c.b16 %v1233, %v1232
          %v1243 = vpack.c.b16 %v1235, %v1234
          %1252 = vmatprep.subr.bf16.mxu0 0
          %1253 = vmatpush1.bf16.msra.mxu0 %v1236
          %1254 = vmatprep.subr.bf16.mxu0 0
          %1255 = vmatpush1.bf16.msra.mxu0 %v1237
          %1256 = vmatprep.subr.bf16.mxu0 0
          %1257 = vmatpush1.bf16.msra.mxu0 %v1238
          %1258 = vmatprep.subr.bf16.mxu0 0
          %1259 = vmatpush1.bf16.msra.mxu0 %v1239
          %1260 = vmatprep.subr.bf16.mxu0 0
          %1261 = vmatpush1.bf16.msra.mxu0 %v1240
          %1262 = vmatprep.subr.bf16.mxu0 0
          %1263 = vmatpush1.bf16.msra.mxu0 %v1241
          %1264 = vmatprep.subr.bf16.mxu0 0
          %1265 = vmatpush1.bf16.msra.mxu0 %v1242
          %1266 = vmatprep.subr.bf16.mxu0 0
          %1267 = vmatpush1.bf16.msra.mxu0 %v1243
          %1268 = vmatprep.subr.bf16.mxu0 0
          %1269 = vmatpush1.bf16.msra.mxu0 0
          %1270 = vmatprep.subr.bf16.mxu0 0
          %1271 = vmatpush1.bf16.msra.mxu0 0
          %1272 = vmatprep.subr.bf16.mxu0 0
          %1273 = vmatpush1.bf16.msra.mxu0 0
          %1274 = vmatprep.subr.bf16.mxu0 0
          %1275 = vmatpush1.bf16.msra.mxu0 0
          %1276 = vmatprep.subr.bf16.mxu0 0
          %1277 = vmatpush1.bf16.msra.mxu0 0
          %1278 = vmatprep.subr.bf16.mxu0 0
          %1279 = vmatpush1.bf16.msra.mxu0 0
          %1280 = vmatprep.subr.bf16.mxu0 0
          %1281 = vmatpush1.bf16.msra.mxu0 0
          %1282 = vmatprep.subr.bf16.mxu0 0
          %1283 = vmatpush1.bf16.msra.mxu0 0
          %1284 = vmatprep.mubr.bf16.mxu0 0
          %1285 = vmatmul.mubr.bf16.gmra.mrb[0].mxu0 %v1188
          %v1286 = vpop.f32.mrb[0].mxu0
          %v1287 = vadd.f32 %v1154, %v1286
          %v1288 = vpop.f32.mrb[0].mxu0
          %v1289 = vpop.f32.mrb[0].mxu0
          %v1290 = vadd.f32 %v1154, %v1289
          %v1291 = vpop.f32.mrb[0].mxu0
          %1292 = vmatprep.mubr.bf16.mxu0 0
          %1293 = vmatmul.mubr.bf16.gmra.mrb[0].mxu0 %v1189
          %v1294 = vpop.f32.mrb[0].mxu0
          %v1295 = vadd.f32 %v1154, %v1294
          %v1296 = vpop.f32.mrb[0].mxu0
          %v1297 = vpop.f32.mrb[0].mxu0
          %v1298 = vadd.f32 %v1154, %v1297
          %v1299 = vpop.f32.mrb[0].mxu0
          %1300 = vmatprep.mubr.bf16.mxu0 0
          %1301 = vmatmul.mubr.bf16.gmra.mrb[0].mxu0 %v1190
          %v1302 = vpop.f32.mrb[0].mxu0
          %v1303 = vadd.f32 %v1154, %v1302
          %v1304 = vpop.f32.mrb[0].mxu0
          %v1305 = vpop.f32.mrb[0].mxu0
          %v1306 = vadd.f32 %v1154, %v1305
          %v1307 = vpop.f32.mrb[0].mxu0
          %1308 = vmatprep.mubr.bf16.mxu0 0
          %1309 = vmatmul.mubr.bf16.gmra.mrb[0].mxu0 %v1191
          %v1310 = vpop.f32.mrb[0].mxu0
          %v1311 = vadd.f32 %v1154, %v1310
          %v1312 = vpop.f32.mrb[0].mxu0
          %v1313 = vpop.f32.mrb[0].mxu0
          %v1314 = vadd.f32 %v1154, %v1313
          %v1315 = vpop.f32.mrb[0].mxu0
          %1316 = vmatprep.mubr.bf16.mxu0 0
          %1317 = vmatmul.mubr.bf16.gmra.mrb[0].mxu0 %v1192
          %v1318 = vpop.f32.mrb[0].mxu0
          %v1319 = vadd.f32 %v1154, %v1318
          %v1320 = vpop.f32.mrb[0].mxu0
          %v1321 = vpop.f32.mrb[0].mxu0
          %v1322 = vadd.f32 %v1154, %v1321
          %v1323 = vpop.f32.mrb[0].mxu0
          %1324 = vmatprep.mubr.bf16.mxu0 0
          %1325 = vmatmul.mubr.bf16.gmra.mrb[0].mxu0 %v1193
          %v1326 = vpop.f32.mrb[0].mxu0
          %v1327 = vadd.f32 %v1154, %v1326
          %v1328 = vpop.f32.mrb[0].mxu0
          %v1329 = vpop.f32.mrb[0].mxu0
          %v1330 = vadd.f32 %v1154, %v1329
          %v1331 = vpop.f32.mrb[0].mxu0
          %1332 = vmatprep.mubr.bf16.mxu0 0
          %1333 = vmatmul.mubr.bf16.gmra.mrb[0].mxu0 %v1194
          %v1334 = vpop.f32.mrb[0].mxu0
          %v1335 = vadd.f32 %v1154, %v1334
          %v1336 = vpop.f32.mrb[0].mxu0
          %v1337 = vpop.f32.mrb[0].mxu0
          %v1338 = vadd.f32 %v1154, %v1337
          %v1339 = vpop.f32.mrb[0].mxu0
          %1340 = vmatprep.mubr.bf16.mxu0 0
          %1341 = vmatmul.mubr.bf16.gmra.mrb[0].mxu0 %v1195
          %v1342 = vpop.f32.mrb[0].mxu0
          %v1343 = vadd.f32 %v1154, %v1342
          %v1344 = vpop.f32.mrb[0].mxu0
          %v1345 = vpop.f32.mrb[0].mxu0
          %v1346 = vadd.f32 %v1154, %v1345
          %v1347 = vpop.f32.mrb[0].mxu0
          %1348 = vdwg.mxu0
          %v1349 = vmul.f32 %v1287, 0.5
          %v1350 = vmul.f32 %v1290, 0.5
          %v1351 = vmul.f32 %v1295, 0.5
          %v1352 = vmul.f32 %v1298, 0.5
          %v1353 = vmul.f32 %v1303, 0.5
          %v1354 = vmul.f32 %v1306, 0.5
          %v1355 = vmul.f32 %v1311, 0.5
          %v1356 = vmul.f32 %v1314, 0.5
          %v1357 = vmul.f32 %v1319, 0.5
          %v1358 = vmul.f32 %v1322, 0.5
          %v1359 = vmul.f32 %v1327, 0.5
          %v1360 = vmul.f32 %v1330, 0.5
          %v1361 = vmul.f32 %v1335, 0.5
          %v1362 = vmul.f32 %v1338, 0.5
          %v1363 = vmul.f32 %v1343, 0.5
          %v1364 = vmul.f32 %v1346, 0.5
          %v1365 = vmul.f32 %v1287, 0.70710677
          %v1366 = vmul.f32 %v1290, 0.70710677
          %v1367 = vmul.f32 %v1295, 0.70710677
          %v1368 = vmul.f32 %v1298, 0.70710677
          %v1369 = vmul.f32 %v1303, 0.70710677
          %v1370 = vmul.f32 %v1306, 0.70710677
          %v1371 = vmul.f32 %v1311, 0.70710677
          %v1372 = vmul.f32 %v1314, 0.70710677
          %v1373 = vmul.f32 %v1319, 0.70710677
          %v1374 = vmul.f32 %v1322, 0.70710677
          %v1375 = vmul.f32 %v1327, 0.70710677
          %v1376 = vmul.f32 %v1330, 0.70710677
          %v1377 = vmul.f32 %v1335, 0.70710677
          %v1378 = vmul.f32 %v1338, 0.70710677
          %v1379 = vmul.f32 %v1343, 0.70710677
          %v1380 = vmul.f32 %v1346, 0.70710677
          %v1381 = verf.f32.pop %v1365
          %v1382 = verf.f32.pop %v1366
          %v1383 = verf.f32.pop %v1367
          %v1384 = verf.f32.pop %v1368
          %v1385 = verf.f32.pop %v1369
          %v1386 = verf.f32.pop %v1370
          %v1387 = verf.f32.pop %v1371
          %v1388 = verf.f32.pop %v1372
          %v1389 = verf.f32.pop %v1373
          %v1390 = verf.f32.pop %v1374
          %v1391 = verf.f32.pop %v1375
          %v1392 = verf.f32.pop %v1376
          %v1393 = verf.f32.pop %v1377
          %v1394 = verf.f32.pop %v1378
          %v1395 = verf.f32.pop %v1379
          %v1396 = verf.f32.pop %v1380
          %v1397 = vadd.f32 %v1381, 1.0
          %v1398 = vadd.f32 %v1382, 1.0
          %v1399 = vadd.f32 %v1383, 1.0
          %v1400 = vadd.f32 %v1384, 1.0
          %v1401 = vadd.f32 %v1385, 1.0
          %v1402 = vadd.f32 %v1386, 1.0
          %v1403 = vadd.f32 %v1387, 1.0
          %v1404 = vadd.f32 %v1388, 1.0
          %v1405 = vadd.f32 %v1389, 1.0
          %v1406 = vadd.f32 %v1390, 1.0
          %v1407 = vadd.f32 %v1391, 1.0
          %v1408 = vadd.f32 %v1392, 1.0
          %v1409 = vadd.f32 %v1393, 1.0
          %v1410 = vadd.f32 %v1394, 1.0
          %v1411 = vadd.f32 %v1395, 1.0
          %v1412 = vadd.f32 %v1396, 1.0
          %v1413 = vmul.f32 %v1349, %v1397
          %v1414 = vmul.f32 %v1350, %v1398
          %v1415 = vmul.f32 %v1351, %v1399
          %v1416 = vmul.f32 %v1352, %v1400
          %v1417 = vmul.f32 %v1353, %v1401
          %v1418 = vmul.f32 %v1354, %v1402
          %v1419 = vmul.f32 %v1355, %v1403
          %v1420 = vmul.f32 %v1356, %v1404
          %v1421 = vmul.f32 %v1357, %v1405
          %v1422 = vmul.f32 %v1358, %v1406
          %v1423 = vmul.f32 %v1359, %v1407
          %v1424 = vmul.f32 %v1360, %v1408
          %v1425 = vmul.f32 %v1361, %v1409
          %v1426 = vmul.f32 %v1362, %v1410
          %v1427 = vmul.f32 %v1363, %v1411
          %v1428 = vmul.f32 %v1364, %v1412
          %1429 = vst [vmem:[#allocation2] sm:$0xff] %v1413
          %1430 = vst [vmem:[#allocation2 + $0x8] sm:$0xff] %v1414
          %1431 = vst [vmem:[#allocation2 + $0x10] sm:$0xff] %v1415
          %1432 = vst [vmem:[#allocation2 + $0x18] sm:$0xff] %v1416
          %1433 = vst [vmem:[#allocation2 + $0x20] sm:$0xff] %v1417
          %1434 = vst [vmem:[#allocation2 + $0x28] sm:$0xff] %v1418
          %1435 = vst [vmem:[#allocation2 + $0x30] sm:$0xff] %v1419
          %1436 = vst [vmem:[#allocation2 + $0x38] sm:$0xff] %v1420
          %1437 = vst [vmem:[#allocation2 + $0x40] sm:$0xff] %v1421
          %1438 = vst [vmem:[#allocation2 + $0x48] sm:$0xff] %v1422
          %1439 = vst [vmem:[#allocation2 + $0x50] sm:$0xff] %v1423
          %1440 = vst [vmem:[#allocation2 + $0x58] sm:$0xff] %v1424
          %1441 = vst [vmem:[#allocation2 + $0x60] sm:$0xff] %v1425
          %1442 = vst [vmem:[#allocation2 + $0x68] sm:$0xff] %v1426
          %1443 = vst [vmem:[#allocation2 + $0x70] sm:$0xff] %v1427
          %1444 = vst [vmem:[#allocation2 + $0x78] sm:$0xff] %v1428
          %v1445 = vld [vmem:[#allocation7] sm:$0xf]
          %v1446 = vld [vmem:[#allocation7 + $0x4] sm:$0xf]
          %v1447 = vld [vmem:[#allocation7 + $0x8] sm:$0xf]
          %v1448 = vld [vmem:[#allocation7 + $0xc] sm:$0xf]
          %v1449 = vld [vmem:[#allocation7 + $0x10] sm:$0xf]
          %v1450 = vld [vmem:[#allocation7 + $0x14] sm:$0xf]
          %v1451 = vld [vmem:[#allocation7 + $0x18] sm:$0xf]
          %v1452 = vld [vmem:[#allocation7 + $0x1c] sm:$0xf]
          %v1453 = vld [vmem:[#allocation7 + $0x20] sm:$0xf]
          %v1454 = vld [vmem:[#allocation7 + $0x24] sm:$0xf]
          %v1455 = vld [vmem:[#allocation7 + $0x28] sm:$0xf]
          %v1456 = vld [vmem:[#allocation7 + $0x2c] sm:$0xf]
          %v1457 = vld [vmem:[#allocation7 + $0x30] sm:$0xf]
          %v1458 = vld [vmem:[#allocation7 + $0x34] sm:$0xf]
          %v1459 = vld [vmem:[#allocation7 + $0x38] sm:$0xf]
          %v1460 = vld [vmem:[#allocation7 + $0x3c] sm:$0xf]
          %v1461 = vld [vmem:[#allocation12] sm:$0xf]
          %v1462 = vld [vmem:[#allocation12 + $0x4] sm:$0xf]
          %v1463 = vld [vmem:[#allocation12 + $0x8] sm:$0xf]
          %v1464 = vld [vmem:[#allocation12 + $0xc] sm:$0xf]
          %v1465 = vld [vmem:[#allocation12 + $0x10] sm:$0xf]
          %v1466 = vld [vmem:[#allocation12 + $0x14] sm:$0xf]
          %v1467 = vld [vmem:[#allocation12 + $0x18] sm:$0xf]
          %v1468 = vld [vmem:[#allocation12 + $0x1c] sm:$0xf]
          %v1469 = vld [vmem:[#allocation12 + $0x20] sm:$0xf]
          %v1470 = vld [vmem:[#allocation12 + $0x24] sm:$0xf]
          %v1471 = vld [vmem:[#allocation12 + $0x28] sm:$0xf]
          %v1472 = vld [vmem:[#allocation12 + $0x2c] sm:$0xf]
          %v1473 = vld [vmem:[#allocation12 + $0x30] sm:$0xf]
          %v1474 = vld [vmem:[#allocation12 + $0x34] sm:$0xf]
          %v1475 = vld [vmem:[#allocation12 + $0x38] sm:$0xf]
          %v1476 = vld [vmem:[#allocation12 + $0x3c] sm:$0xf]
          %v1477 = vld [vmem:[%s6] sm:$0x1]
          %v1479 = vlaneseq
          %v1480 = vshrl.u32 %v1479, 7
          %v1481 = vsub.s32 0, %v1480
          %v1482 = vrot.slane %v1477, %v1481
          %v1500 = vunpack.c.l.b16 %v1445
          %v1501 = vunpack.c.l.b16 %v1446
          %v1502 = vunpack.c.l.b16 %v1447
          %v1503 = vunpack.c.l.b16 %v1448
          %v1504 = vunpack.c.l.b16 %v1449
          %v1505 = vunpack.c.l.b16 %v1450
          %v1506 = vunpack.c.l.b16 %v1451
          %v1507 = vunpack.c.l.b16 %v1452
          %v1508 = vunpack.c.l.b16 %v1453
          %v1509 = vunpack.c.l.b16 %v1454
          %v1510 = vunpack.c.l.b16 %v1455
          %v1511 = vunpack.c.l.b16 %v1456
          %v1512 = vunpack.c.l.b16 %v1457
          %v1513 = vunpack.c.l.b16 %v1458
          %v1514 = vunpack.c.l.b16 %v1459
          %v1515 = vunpack.c.l.b16 %v1460
          %v1516 = vpack.c.b16 %v1501, %v1500
          %v1517 = vpack.c.b16 %v1503, %v1502
          %v1518 = vpack.c.b16 %v1505, %v1504
          %v1519 = vpack.c.b16 %v1507, %v1506
          %v1520 = vpack.c.b16 %v1509, %v1508
          %v1521 = vpack.c.b16 %v1511, %v1510
          %v1522 = vpack.c.b16 %v1513, %v1512
          %v1523 = vpack.c.b16 %v1515, %v1514
          %v1548 = vunpack.c.l.b16 %v1461
          %v1549 = vunpack.c.l.b16 %v1462
          %v1550 = vunpack.c.l.b16 %v1463
          %v1551 = vunpack.c.l.b16 %v1464
          %v1552 = vunpack.c.l.b16 %v1465
          %v1553 = vunpack.c.l.b16 %v1466
          %v1554 = vunpack.c.l.b16 %v1467
          %v1555 = vunpack.c.l.b16 %v1468
          %v1556 = vunpack.c.l.b16 %v1469
          %v1557 = vunpack.c.l.b16 %v1470
          %v1558 = vunpack.c.l.b16 %v1471
          %v1559 = vunpack.c.l.b16 %v1472
          %v1560 = vunpack.c.l.b16 %v1473
          %v1561 = vunpack.c.l.b16 %v1474
          %v1562 = vunpack.c.l.b16 %v1475
          %v1563 = vunpack.c.l.b16 %v1476
          %v1564 = vpack.c.b16 %v1549, %v1548
          %v1565 = vpack.c.b16 %v1551, %v1550
          %v1566 = vpack.c.b16 %v1553, %v1552
          %v1567 = vpack.c.b16 %v1555, %v1554
          %v1568 = vpack.c.b16 %v1557, %v1556
          %v1569 = vpack.c.b16 %v1559, %v1558
          %v1570 = vpack.c.b16 %v1561, %v1560
          %v1571 = vpack.c.b16 %v1563, %v1562
          %1580 = vmatprep.subr.bf16.mxu0 0
          %1581 = vmatpush1.bf16.msra.mxu0 %v1564
          %1582 = vmatprep.subr.bf16.mxu0 0
          %1583 = vmatpush1.bf16.msra.mxu0 %v1565
          %1584 = vmatprep.subr.bf16.mxu0 0
          %1585 = vmatpush1.bf16.msra.mxu0 %v1566
          %1586 = vmatprep.subr.bf16.mxu0 0
          %1587 = vmatpush1.bf16.msra.mxu0 %v1567
          %1588 = vmatprep.subr.bf16.mxu0 0
          %1589 = vmatpush1.bf16.msra.mxu0 %v1568
          %1590 = vmatprep.subr.bf16.mxu0 0
          %1591 = vmatpush1.bf16.msra.mxu0 %v1569
          %1592 = vmatprep.subr.bf16.mxu0 0
          %1593 = vmatpush1.bf16.msra.mxu0 %v1570
          %1594 = vmatprep.subr.bf16.mxu0 0
          %1595 = vmatpush1.bf16.msra.mxu0 %v1571
          %1596 = vmatprep.subr.bf16.mxu0 0
          %1597 = vmatpush1.bf16.msra.mxu0 0
          %1598 = vmatprep.subr.bf16.mxu0 0
          %1599 = vmatpush1.bf16.msra.mxu0 0
          %1600 = vmatprep.subr.bf16.mxu0 0
          %1601 = vmatpush1.bf16.msra.mxu0 0
          %1602 = vmatprep.subr.bf16.mxu0 0
          %1603 = vmatpush1.bf16.msra.mxu0 0
          %1604 = vmatprep.subr.bf16.mxu0 0
          %1605 = vmatpush1.bf16.msra.mxu0 0
          %1606 = vmatprep.subr.bf16.mxu0 0
          %1607 = vmatpush1.bf16.msra.mxu0 0
          %1608 = vmatprep.subr.bf16.mxu0 0
          %1609 = vmatpush1.bf16.msra.mxu0 0
          %1610 = vmatprep.subr.bf16.mxu0 0
          %1611 = vmatpush1.bf16.msra.mxu0 0
          %1612 = vmatprep.mubr.bf16.mxu0 0
          %1613 = vmatmul.mubr.bf16.gmra.mrb[0].mxu0 %v1516
          %v1614 = vpop.f32.mrb[0].mxu0
          %v1615 = vadd.f32 %v1482, %v1614
          %v1616 = vpop.f32.mrb[0].mxu0
          %v1617 = vpop.f32.mrb[0].mxu0
          %v1618 = vadd.f32 %v1482, %v1617
          %v1619 = vpop.f32.mrb[0].mxu0
          %1620 = vmatprep.mubr.bf16.mxu0 0
          %1621 = vmatmul.mubr.bf16.gmra.mrb[0].mxu0 %v1517
          %v1622 = vpop.f32.mrb[0].mxu0
          %v1623 = vadd.f32 %v1482, %v1622
          %v1624 = vpop.f32.mrb[0].mxu0
          %v1625 = vpop.f32.mrb[0].mxu0
          %v1626 = vadd.f32 %v1482, %v1625
          %v1627 = vpop.f32.mrb[0].mxu0
          %1628 = vmatprep.mubr.bf16.mxu0 0
          %1629 = vmatmul.mubr.bf16.gmra.mrb[0].mxu0 %v1518
          %v1630 = vpop.f32.mrb[0].mxu0
          %v1631 = vadd.f32 %v1482, %v1630
          %v1632 = vpop.f32.mrb[0].mxu0
          %v1633 = vpop.f32.mrb[0].mxu0
          %v1634 = vadd.f32 %v1482, %v1633
          %v1635 = vpop.f32.mrb[0].mxu0
          %1636 = vmatprep.mubr.bf16.mxu0 0
          %1637 = vmatmul.mubr.bf16.gmra.mrb[0].mxu0 %v1519
          %v1638 = vpop.f32.mrb[0].mxu0
          %v1639 = vadd.f32 %v1482, %v1638
          %v1640 = vpop.f32.mrb[0].mxu0
          %v1641 = vpop.f32.mrb[0].mxu0
          %v1642 = vadd.f32 %v1482, %v1641
          %v1643 = vpop.f32.mrb[0].mxu0
          %1644 = vmatprep.mubr.bf16.mxu0 0
          %1645 = vmatmul.mubr.bf16.gmra.mrb[0].mxu0 %v1520
          %v1646 = vpop.f32.mrb[0].mxu0
          %v1647 = vadd.f32 %v1482, %v1646
          %v1648 = vpop.f32.mrb[0].mxu0
          %v1649 = vpop.f32.mrb[0].mxu0
          %v1650 = vadd.f32 %v1482, %v1649
          %v1651 = vpop.f32.mrb[0].mxu0
          %1652 = vmatprep.mubr.bf16.mxu0 0
          %1653 = vmatmul.mubr.bf16.gmra.mrb[0].mxu0 %v1521
          %v1654 = vpop.f32.mrb[0].mxu0
          %v1655 = vadd.f32 %v1482, %v1654
          %v1656 = vpop.f32.mrb[0].mxu0
          %v1657 = vpop.f32.mrb[0].mxu0
          %v1658 = vadd.f32 %v1482, %v1657
          %v1659 = vpop.f32.mrb[0].mxu0
          %1660 = vmatprep.mubr.bf16.mxu0 0
          %1661 = vmatmul.mubr.bf16.gmra.mrb[0].mxu0 %v1522
          %v1662 = vpop.f32.mrb[0].mxu0
          %v1663 = vadd.f32 %v1482, %v1662
          %v1664 = vpop.f32.mrb[0].mxu0
          %v1665 = vpop.f32.mrb[0].mxu0
          %v1666 = vadd.f32 %v1482, %v1665
          %v1667 = vpop.f32.mrb[0].mxu0
          %1668 = vmatprep.mubr.bf16.mxu0 0
          %1669 = vmatmul.mubr.bf16.gmra.mrb[0].mxu0 %v1523
          %v1670 = vpop.f32.mrb[0].mxu0
          %v1671 = vadd.f32 %v1482, %v1670
          %v1672 = vpop.f32.mrb[0].mxu0
          %v1673 = vpop.f32.mrb[0].mxu0
          %v1674 = vadd.f32 %v1482, %v1673
          %v1675 = vpop.f32.mrb[0].mxu0
          %1676 = vdwg.mxu0
          %v1677 = vmul.f32 %v1615, 0.5
          %v1678 = vmul.f32 %v1618, 0.5
          %v1679 = vmul.f32 %v1623, 0.5
          %v1680 = vmul.f32 %v1626, 0.5
          %v1681 = vmul.f32 %v1631, 0.5
          %v1682 = vmul.f32 %v1634, 0.5
          %v1683 = vmul.f32 %v1639, 0.5
          %v1684 = vmul.f32 %v1642, 0.5
          %v1685 = vmul.f32 %v1647, 0.5
          %v1686 = vmul.f32 %v1650, 0.5
          %v1687 = vmul.f32 %v1655, 0.5
          %v1688 = vmul.f32 %v1658, 0.5
          %v1689 = vmul.f32 %v1663, 0.5
          %v1690 = vmul.f32 %v1666, 0.5
          %v1691 = vmul.f32 %v1671, 0.5
          %v1692 = vmul.f32 %v1674, 0.5
          %v1693 = vmul.f32 %v1615, 0.70710677
          %v1694 = vmul.f32 %v1618, 0.70710677
          %v1695 = vmul.f32 %v1623, 0.70710677
          %v1696 = vmul.f32 %v1626, 0.70710677
          %v1697 = vmul.f32 %v1631, 0.70710677
          %v1698 = vmul.f32 %v1634, 0.70710677
          %v1699 = vmul.f32 %v1639, 0.70710677
          %v1700 = vmul.f32 %v1642, 0.70710677
          %v1701 = vmul.f32 %v1647, 0.70710677
          %v1702 = vmul.f32 %v1650, 0.70710677
          %v1703 = vmul.f32 %v1655, 0.70710677
          %v1704 = vmul.f32 %v1658, 0.70710677
          %v1705 = vmul.f32 %v1663, 0.70710677
          %v1706 = vmul.f32 %v1666, 0.70710677
          %v1707 = vmul.f32 %v1671, 0.70710677
          %v1708 = vmul.f32 %v1674, 0.70710677
          %v1709 = verf.f32.pop %v1693
          %v1710 = verf.f32.pop %v1694
          %v1711 = verf.f32.pop %v1695
          %v1712 = verf.f32.pop %v1696
          %v1713 = verf.f32.pop %v1697
          %v1714 = verf.f32.pop %v1698
          %v1715 = verf.f32.pop %v1699
          %v1716 = verf.f32.pop %v1700
          %v1717 = verf.f32.pop %v1701
          %v1718 = verf.f32.pop %v1702
          %v1719 = verf.f32.pop %v1703
          %v1720 = verf.f32.pop %v1704
          %v1721 = verf.f32.pop %v1705
          %v1722 = verf.f32.pop %v1706
          %v1723 = verf.f32.pop %v1707
          %v1724 = verf.f32.pop %v1708
          %v1725 = vadd.f32 %v1709, 1.0
          %v1726 = vadd.f32 %v1710, 1.0
          %v1727 = vadd.f32 %v1711, 1.0
          %v1728 = vadd.f32 %v1712, 1.0
          %v1729 = vadd.f32 %v1713, 1.0
          %v1730 = vadd.f32 %v1714, 1.0
          %v1731 = vadd.f32 %v1715, 1.0
          %v1732 = vadd.f32 %v1716, 1.0
          %v1733 = vadd.f32 %v1717, 1.0
          %v1734 = vadd.f32 %v1718, 1.0
          %v1735 = vadd.f32 %v1719, 1.0
          %v1736 = vadd.f32 %v1720, 1.0
          %v1737 = vadd.f32 %v1721, 1.0
          %v1738 = vadd.f32 %v1722, 1.0
          %v1739 = vadd.f32 %v1723, 1.0
          %v1740 = vadd.f32 %v1724, 1.0
          %v1741 = vmul.f32 %v1677, %v1725
          %v1742 = vmul.f32 %v1678, %v1726
          %v1743 = vmul.f32 %v1679, %v1727
          %v1744 = vmul.f32 %v1680, %v1728
          %v1745 = vmul.f32 %v1681, %v1729
          %v1746 = vmul.f32 %v1682, %v1730
          %v1747 = vmul.f32 %v1683, %v1731
          %v1748 = vmul.f32 %v1684, %v1732
          %v1749 = vmul.f32 %v1685, %v1733
          %v1750 = vmul.f32 %v1686, %v1734
          %v1751 = vmul.f32 %v1687, %v1735
          %v1752 = vmul.f32 %v1688, %v1736
          %v1753 = vmul.f32 %v1689, %v1737
          %v1754 = vmul.f32 %v1690, %v1738
          %v1755 = vmul.f32 %v1691, %v1739
          %v1756 = vmul.f32 %v1692, %v1740
          %1757 = vst [vmem:[#allocation3] sm:$0xff] %v1741
          %1758 = vst [vmem:[#allocation3 + $0x8] sm:$0xff] %v1742
          %1759 = vst [vmem:[#allocation3 + $0x10] sm:$0xff] %v1743
          %1760 = vst [vmem:[#allocation3 + $0x18] sm:$0xff] %v1744
          %1761 = vst [vmem:[#allocation3 + $0x20] sm:$0xff] %v1745
          %1762 = vst [vmem:[#allocation3 + $0x28] sm:$0xff] %v1746
          %1763 = vst [vmem:[#allocation3 + $0x30] sm:$0xff] %v1747
          %1764 = vst [vmem:[#allocation3 + $0x38] sm:$0xff] %v1748
          %1765 = vst [vmem:[#allocation3 + $0x40] sm:$0xff] %v1749
          %1766 = vst [vmem:[#allocation3 + $0x48] sm:$0xff] %v1750
          %1767 = vst [vmem:[#allocation3 + $0x50] sm:$0xff] %v1751
          %1768 = vst [vmem:[#allocation3 + $0x58] sm:$0xff] %v1752
          %1769 = vst [vmem:[#allocation3 + $0x60] sm:$0xff] %v1753
          %1770 = vst [vmem:[#allocation3 + $0x68] sm:$0xff] %v1754
          %1771 = vst [vmem:[#allocation3 + $0x70] sm:$0xff] %v1755
          %1772 = vst [vmem:[#allocation3 + $0x78] sm:$0xff] %v1756
        $region168: #{tpu_custom_call.1} parent=123 // pred_fallthru
          _
        %p1773 = scmp.lt.s32.totalorder %s48, 2
        // Predicated region
        $region169: #{tpu_custom_call.1} parent=123 // pred_check
          %p1774 = pneg %p1773
        $region170: #{tpu_custom_call.1} parent=123 // pred_check_branch
          %1776 = sbr.rel (%p1774) target = $region172
        $region171: #{tpu_custom_call.1} parent=123 // pred_region
          %v1777 = vld [vmem:[#allocation2] sm:$0xff]
          %v1778 = vld [vmem:[#allocation2 + $0x8] sm:$0xff]
          %v1779 = vld [vmem:[#allocation2 + $0x10] sm:$0xff]
          %v1780 = vld [vmem:[#allocation2 + $0x18] sm:$0xff]
          %v1781 = vld [vmem:[#allocation2 + $0x20] sm:$0xff]
          %v1782 = vld [vmem:[#allocation2 + $0x28] sm:$0xff]
          %v1783 = vld [vmem:[#allocation2 + $0x30] sm:$0xff]
          %v1784 = vld [vmem:[#allocation2 + $0x38] sm:$0xff]
          %v1785 = vld [vmem:[#allocation2 + $0x40] sm:$0xff]
          %v1786 = vld [vmem:[#allocation2 + $0x48] sm:$0xff]
          %v1787 = vld [vmem:[#allocation2 + $0x50] sm:$0xff]
          %v1788 = vld [vmem:[#allocation2 + $0x58] sm:$0xff]
          %v1789 = vld [vmem:[#allocation2 + $0x60] sm:$0xff]
          %v1790 = vld [vmem:[#allocation2 + $0x68] sm:$0xff]
          %v1791 = vld [vmem:[#allocation2 + $0x70] sm:$0xff]
          %v1792 = vld [vmem:[#allocation2 + $0x78] sm:$0xff]
          %v1793 = vld [vmem:[%s1090] sm:$0x1]
          %v1794 = vld [vmem:[%s1093] sm:$0x1]
          %1795 = vadd.xlane.f32.xlu0 %v1777
          %v1796 = vpop.xlane.xlu0 %1795
          %1797 = vadd.xlane.f32.xlu0 %v1778
          %v1798 = vpop.xlane.xlu0 %1797
          %1799 = vadd.xlane.f32.xlu0 %v1779
          %v1800 = vpop.xlane.xlu0 %1799
          %1801 = vadd.xlane.f32.xlu0 %v1780
          %v1802 = vpop.xlane.xlu0 %1801
          %1803 = vadd.xlane.f32.xlu0 %v1781
          %v1804 = vpop.xlane.xlu0 %1803
          %1805 = vadd.xlane.f32.xlu0 %v1782
          %v1806 = vpop.xlane.xlu0 %1805
          %1807 = vadd.xlane.f32.xlu0 %v1783
          %v1808 = vpop.xlane.xlu0 %1807
          %1809 = vadd.xlane.f32.xlu0 %v1784
          %v1810 = vpop.xlane.xlu0 %1809
          %1811 = vadd.xlane.f32.xlu0 %v1785
          %v1812 = vpop.xlane.xlu0 %1811
          %1813 = vadd.xlane.f32.xlu0 %v1786
          %v1814 = vpop.xlane.xlu0 %1813
          %1815 = vadd.xlane.f32.xlu0 %v1787
          %v1816 = vpop.xlane.xlu0 %1815
          %1817 = vadd.xlane.f32.xlu0 %v1788
          %v1818 = vpop.xlane.xlu0 %1817
          %1819 = vadd.xlane.f32.xlu0 %v1789
          %v1820 = vpop.xlane.xlu0 %1819
          %1821 = vadd.xlane.f32.xlu0 %v1790
          %v1822 = vpop.xlane.xlu0 %1821
          %1823 = vadd.xlane.f32.xlu0 %v1791
          %v1824 = vpop.xlane.xlu0 %1823
          %1825 = vadd.xlane.f32.xlu0 %v1792
          %v1826 = vpop.xlane.xlu0 %1825
          %v1827 = vmul.f32 %v1796, 0.03125
          %v1828 = vmul.f32 %v1798, 0.03125
          %v1829 = vmul.f32 %v1800, 0.03125
          %v1830 = vmul.f32 %v1802, 0.03125
          %v1831 = vmul.f32 %v1804, 0.03125
          %v1832 = vmul.f32 %v1806, 0.03125
          %v1833 = vmul.f32 %v1808, 0.03125
          %v1834 = vmul.f32 %v1810, 0.03125
          %v1835 = vmul.f32 %v1812, 0.03125
          %v1836 = vmul.f32 %v1814, 0.03125
          %v1837 = vmul.f32 %v1816, 0.03125
          %v1838 = vmul.f32 %v1818, 0.03125
          %v1839 = vmul.f32 %v1820, 0.03125
          %v1840 = vmul.f32 %v1822, 0.03125
          %v1841 = vmul.f32 %v1824, 0.03125
          %v1842 = vmul.f32 %v1826, 0.03125
          %v1843 = vlaneseq
          %v1844 = vand.u32 %v1843, 127
          %vm1845 = vcmp.lt.s32.totalorder %v1844, 32
          %v1846 = vsub.f32 %v1777, %v1827
          %v1847 = vsub.f32 %v1778, %v1828
          %v1848 = vsub.f32 %v1779, %v1829
          %v1849 = vsub.f32 %v1780, %v1830
          %v1850 = vsub.f32 %v1781, %v1831
          %v1851 = vsub.f32 %v1782, %v1832
          %v1852 = vsub.f32 %v1783, %v1833
          %v1853 = vsub.f32 %v1784, %v1834
          %v1854 = vsub.f32 %v1785, %v1835
          %v1855 = vsub.f32 %v1786, %v1836
          %v1856 = vsub.f32 %v1787, %v1837
          %v1857 = vsub.f32 %v1788, %v1838
          %v1858 = vsub.f32 %v1789, %v1839
          %v1859 = vsub.f32 %v1790, %v1840
          %v1860 = vsub.f32 %v1791, %v1841
          %v1861 = vsub.f32 %v1792, %v1842
          %v1862 = vsel %vm1845, %v1846, 0.0
          %v1863 = vsel %vm1845, %v1847, 0.0
          %v1864 = vsel %vm1845, %v1848, 0.0
          %v1865 = vsel %vm1845, %v1849, 0.0
          %v1866 = vsel %vm1845, %v1850, 0.0
          %v1867 = vsel %vm1845, %v1851, 0.0
          %v1868 = vsel %vm1845, %v1852, 0.0
          %v1869 = vsel %vm1845, %v1853, 0.0
          %v1870 = vsel %vm1845, %v1854, 0.0
          %v1871 = vsel %vm1845, %v1855, 0.0
          %v1872 = vsel %vm1845, %v1856, 0.0
          %v1873 = vsel %vm1845, %v1857, 0.0
          %v1874 = vsel %vm1845, %v1858, 0.0
          %v1875 = vsel %vm1845, %v1859, 0.0
          %v1876 = vsel %vm1845, %v1860, 0.0
          %v1877 = vsel %vm1845, %v1861, 0.0
          %v1878 = vmul.f32 %v1862, %v1862
          %v1879 = vmul.f32 %v1863, %v1863
          %v1880 = vmul.f32 %v1864, %v1864
          %v1881 = vmul.f32 %v1865, %v1865
          %v1882 = vmul.f32 %v1866, %v1866
          %v1883 = vmul.f32 %v1867, %v1867
          %v1884 = vmul.f32 %v1868, %v1868
          %v1885 = vmul.f32 %v1869, %v1869
          %v1886 = vmul.f32 %v1870, %v1870
          %v1887 = vmul.f32 %v1871, %v1871
          %v1888 = vmul.f32 %v1872, %v1872
          %v1889 = vmul.f32 %v1873, %v1873
          %v1890 = vmul.f32 %v1874, %v1874
          %v1891 = vmul.f32 %v1875, %v1875
          %v1892 = vmul.f32 %v1876, %v1876
          %v1893 = vmul.f32 %v1877, %v1877
          %1894 = vadd.xlane.f32.xlu0 %v1878
          %v1895 = vpop.xlane.xlu0 %1894
          %1896 = vadd.xlane.f32.xlu0 %v1879
          %v1897 = vpop.xlane.xlu0 %1896
          %1898 = vadd.xlane.f32.xlu0 %v1880
          %v1899 = vpop.xlane.xlu0 %1898
          %1900 = vadd.xlane.f32.xlu0 %v1881
          %v1901 = vpop.xlane.xlu0 %1900
          %1902 = vadd.xlane.f32.xlu0 %v1882
          %v1903 = vpop.xlane.xlu0 %1902
          %1904 = vadd.xlane.f32.xlu0 %v1883
          %v1905 = vpop.xlane.xlu0 %1904
          %1906 = vadd.xlane.f32.xlu0 %v1884
          %v1907 = vpop.xlane.xlu0 %1906
          %1908 = vadd.xlane.f32.xlu0 %v1885
          %v1909 = vpop.xlane.xlu0 %1908
          %1910 = vadd.xlane.f32.xlu0 %v1886
          %v1911 = vpop.xlane.xlu0 %1910
          %1912 = vadd.xlane.f32.xlu0 %v1887
          %v1913 = vpop.xlane.xlu0 %1912
          %1914 = vadd.xlane.f32.xlu0 %v1888
          %v1915 = vpop.xlane.xlu0 %1914
          %1916 = vadd.xlane.f32.xlu0 %v1889
          %v1917 = vpop.xlane.xlu0 %1916
          %1918 = vadd.xlane.f32.xlu0 %v1890
          %v1919 = vpop.xlane.xlu0 %1918
          %1920 = vadd.xlane.f32.xlu0 %v1891
          %v1921 = vpop.xlane.xlu0 %1920
          %1922 = vadd.xlane.f32.xlu0 %v1892
          %v1923 = vpop.xlane.xlu0 %1922
          %1924 = vadd.xlane.f32.xlu0 %v1893
          %v1925 = vpop.xlane.xlu0 %1924
          %v1926 = vmul.f32 %v1895, 0.03125
          %v1927 = vmul.f32 %v1897, 0.03125
          %v1928 = vmul.f32 %v1899, 0.03125
          %v1929 = vmul.f32 %v1901, 0.03125
          %v1930 = vmul.f32 %v1903, 0.03125
          %v1931 = vmul.f32 %v1905, 0.03125
          %v1932 = vmul.f32 %v1907, 0.03125
          %v1933 = vmul.f32 %v1909, 0.03125
          %v1934 = vmul.f32 %v1911, 0.03125
          %v1935 = vmul.f32 %v1913, 0.03125
          %v1936 = vmul.f32 %v1915, 0.03125
          %v1937 = vmul.f32 %v1917, 0.03125
          %v1938 = vmul.f32 %v1919, 0.03125
          %v1939 = vmul.f32 %v1921, 0.03125
          %v1940 = vmul.f32 %v1923, 0.03125
          %v1941 = vmul.f32 %v1925, 0.03125
          %v1942 = vadd.f32 %v1926, 1e-05
          %v1943 = vadd.f32 %v1927, 1e-05
          %v1944 = vadd.f32 %v1928, 1e-05
          %v1945 = vadd.f32 %v1929, 1e-05
          %v1946 = vadd.f32 %v1930, 1e-05
          %v1947 = vadd.f32 %v1931, 1e-05
          %v1948 = vadd.f32 %v1932, 1e-05
          %v1949 = vadd.f32 %v1933, 1e-05
          %v1950 = vadd.f32 %v1934, 1e-05
          %v1951 = vadd.f32 %v1935, 1e-05
          %v1952 = vadd.f32 %v1936, 1e-05
          %v1953 = vadd.f32 %v1937, 1e-05
          %v1954 = vadd.f32 %v1938, 1e-05
          %v1955 = vadd.f32 %v1939, 1e-05
          %v1956 = vadd.f32 %v1940, 1e-05
          %v1957 = vadd.f32 %v1941, 1e-05
          %v1958 = vrsqrt.pop %v1942
          %v1959 = vrsqrt.pop %v1943
          %v1960 = vrsqrt.pop %v1944
          %v1961 = vrsqrt.pop %v1945
          %v1962 = vrsqrt.pop %v1946
          %v1963 = vrsqrt.pop %v1947
          %v1964 = vrsqrt.pop %v1948
          %v1965 = vrsqrt.pop %v1949
          %v1966 = vrsqrt.pop %v1950
          %v1967 = vrsqrt.pop %v1951
          %v1968 = vrsqrt.pop %v1952
          %v1969 = vrsqrt.pop %v1953
          %v1970 = vrsqrt.pop %v1954
          %v1971 = vrsqrt.pop %v1955
          %v1972 = vrsqrt.pop %v1956
          %v1973 = vrsqrt.pop %v1957
          %v1974 = vmul.f32 %v1862, %v1958
          %v1975 = vmul.f32 %v1863, %v1959
          %v1976 = vmul.f32 %v1864, %v1960
          %v1977 = vmul.f32 %v1865, %v1961
          %v1978 = vmul.f32 %v1866, %v1962
          %v1979 = vmul.f32 %v1867, %v1963
          %v1980 = vmul.f32 %v1868, %v1964
          %v1981 = vmul.f32 %v1869, %v1965
          %v1982 = vmul.f32 %v1870, %v1966
          %v1983 = vmul.f32 %v1871, %v1967
          %v1984 = vmul.f32 %v1872, %v1968
          %v1985 = vmul.f32 %v1873, %v1969
          %v1986 = vmul.f32 %v1874, %v1970
          %v1987 = vmul.f32 %v1875, %v1971
          %v1988 = vmul.f32 %v1876, %v1972
          %v1989 = vmul.f32 %v1877, %v1973
          %v1991 = vlaneseq
          %v1992 = vshrl.u32 %v1991, 7
          %v1993 = vsub.s32 0, %v1992
          %v1994 = vrot.slane %v1793, %v1993
          %v1996 = vmul.f32 %v1974, %v1994
          %v1997 = vmul.f32 %v1975, %v1994
          %v1998 = vmul.f32 %v1976, %v1994
          %v1999 = vmul.f32 %v1977, %v1994
          %v2000 = vmul.f32 %v1978, %v1994
          %v2001 = vmul.f32 %v1979, %v1994
          %v2002 = vmul.f32 %v1980, %v1994
          %v2003 = vmul.f32 %v1981, %v1994
          %v2004 = vmul.f32 %v1982, %v1994
          %v2005 = vmul.f32 %v1983, %v1994
          %v2006 = vmul.f32 %v1984, %v1994
          %v2007 = vmul.f32 %v1985, %v1994
          %v2008 = vmul.f32 %v1986, %v1994
          %v2009 = vmul.f32 %v1987, %v1994
          %v2010 = vmul.f32 %v1988, %v1994
          %v2011 = vmul.f32 %v1989, %v1994
          %v2013 = vlaneseq
          %v2014 = vshrl.u32 %v2013, 7
          %v2015 = vsub.s32 0, %v2014
          %v2016 = vrot.slane %v1794, %v2015
          %v2018 = vadd.f32 %v1996, %v2016
          %v2019 = vadd.f32 %v1997, %v2016
          %v2020 = vadd.f32 %v1998, %v2016
          %v2021 = vadd.f32 %v1999, %v2016
          %v2022 = vadd.f32 %v2000, %v2016
          %v2023 = vadd.f32 %v2001, %v2016
          %v2024 = vadd.f32 %v2002, %v2016
          %v2025 = vadd.f32 %v2003, %v2016
          %v2026 = vadd.f32 %v2004, %v2016
          %v2027 = vadd.f32 %v2005, %v2016
          %v2028 = vadd.f32 %v2006, %v2016
          %v2029 = vadd.f32 %v2007, %v2016
          %v2030 = vadd.f32 %v2008, %v2016
          %v2031 = vadd.f32 %v2009, %v2016
          %v2032 = vadd.f32 %v2010, %v2016
          %v2033 = vadd.f32 %v2011, %v2016
          %v2034 = vld [vmem:[#allocation9] sm:$0xf]
          %v2035 = vld [vmem:[#allocation9 + $0x4] sm:$0xf]
          %v2036 = vld [vmem:[#allocation9 + $0x8] sm:$0xf]
          %v2037 = vld [vmem:[#allocation9 + $0xc] sm:$0xf]
          %v2038 = vld [vmem:[#allocation9 + $0x10] sm:$0xf]
          %v2039 = vld [vmem:[#allocation9 + $0x14] sm:$0xf]
          %v2040 = vld [vmem:[#allocation9 + $0x18] sm:$0xf]
          %v2041 = vld [vmem:[#allocation9 + $0x1c] sm:$0xf]
          %v2042 = vld [vmem:[#allocation9 + $0x20] sm:$0xf]
          %v2043 = vld [vmem:[#allocation9 + $0x24] sm:$0xf]
          %v2044 = vld [vmem:[#allocation9 + $0x28] sm:$0xf]
          %v2045 = vld [vmem:[#allocation9 + $0x2c] sm:$0xf]
          %v2046 = vld [vmem:[#allocation9 + $0x30] sm:$0xf]
          %v2047 = vld [vmem:[#allocation9 + $0x34] sm:$0xf]
          %v2048 = vld [vmem:[#allocation9 + $0x38] sm:$0xf]
          %v2049 = vld [vmem:[#allocation9 + $0x3c] sm:$0xf]
          %v2050 = vpack.c.bf16 %v2019, %v2018
          %v2051 = vpack.c.bf16 %v2021, %v2020
          %v2052 = vpack.c.bf16 %v2023, %v2022
          %v2053 = vpack.c.bf16 %v2025, %v2024
          %v2054 = vpack.c.bf16 %v2027, %v2026
          %v2055 = vpack.c.bf16 %v2029, %v2028
          %v2056 = vpack.c.bf16 %v2031, %v2030
          %v2057 = vpack.c.bf16 %v2033, %v2032
          %v2074 = vunpack.c.l.b16 %v2034
          %v2075 = vunpack.c.l.b16 %v2035
          %v2076 = vunpack.c.l.b16 %v2036
          %v2077 = vunpack.c.l.b16 %v2037
          %v2078 = vunpack.c.l.b16 %v2038
          %v2079 = vunpack.c.l.b16 %v2039
          %v2080 = vunpack.c.l.b16 %v2040
          %v2081 = vunpack.c.l.b16 %v2041
          %v2082 = vunpack.c.l.b16 %v2042
          %v2083 = vunpack.c.l.b16 %v2043
          %v2084 = vunpack.c.l.b16 %v2044
          %v2085 = vunpack.c.l.b16 %v2045
          %v2086 = vunpack.c.l.b16 %v2046
          %v2087 = vunpack.c.l.b16 %v2047
          %v2088 = vunpack.c.l.b16 %v2048
          %v2089 = vunpack.c.l.b16 %v2049
          %v2090 = vpack.c.b16 %v2075, %v2074
          %v2091 = vpack.c.b16 %v2077, %v2076
          %v2092 = vpack.c.b16 %v2079, %v2078
          %v2093 = vpack.c.b16 %v2081, %v2080
          %v2094 = vpack.c.b16 %v2083, %v2082
          %v2095 = vpack.c.b16 %v2085, %v2084
          %v2096 = vpack.c.b16 %v2087, %v2086
          %v2097 = vpack.c.b16 %v2089, %v2088
          %2106 = vmatprep.subr.bf16.mxu0 0
          %2107 = vmatpush1.bf16.msra.mxu0 %v2050
          %2108 = vmatprep.subr.bf16.mxu0 0
          %2109 = vmatpush1.bf16.msra.mxu0 %v2051
          %2110 = vmatprep.subr.bf16.mxu0 0
          %2111 = vmatpush1.bf16.msra.mxu0 %v2052
          %2112 = vmatprep.subr.bf16.mxu0 0
          %2113 = vmatpush1.bf16.msra.mxu0 %v2053
          %2114 = vmatprep.subr.bf16.mxu0 0
          %2115 = vmatpush1.bf16.msra.mxu0 %v2054
          %2116 = vmatprep.subr.bf16.mxu0 0
          %2117 = vmatpush1.bf16.msra.mxu0 %v2055
          %2118 = vmatprep.subr.bf16.mxu0 0
          %2119 = vmatpush1.bf16.msra.mxu0 %v2056
          %2120 = vmatprep.subr.bf16.mxu0 0
          %2121 = vmatpush1.bf16.msra.mxu0 %v2057
          %2122 = vmatprep.subr.bf16.mxu0 0
          %2123 = vmatpush1.bf16.msra.mxu0 0
          %2124 = vmatprep.subr.bf16.mxu0 0
          %2125 = vmatpush1.bf16.msra.mxu0 0
          %2126 = vmatprep.subr.bf16.mxu0 0
          %2127 = vmatpush1.bf16.msra.mxu0 0
          %2128 = vmatprep.subr.bf16.mxu0 0
          %2129 = vmatpush1.bf16.msra.mxu0 0
          %2130 = vmatprep.subr.bf16.mxu0 0
          %2131 = vmatpush1.bf16.msra.mxu0 0
          %2132 = vmatprep.subr.bf16.mxu0 0
          %2133 = vmatpush1.bf16.msra.mxu0 0
          %2134 = vmatprep.subr.bf16.mxu0 0
          %2135 = vmatpush1.bf16.msra.mxu0 0
          %2136 = vmatprep.subr.bf16.mxu0 0
          %2137 = vmatpush1.bf16.msra.mxu0 0
          %2138 = vmatprep.mubr.bf16.mxu0 0
          %2139 = vmatmul.mubr.bf16.gmra.mrb[0].mxu0 %v2090
          %v2140 = vpop.f32.mrb[0].mxu0
          %v2141 = vadd.f32 0.0, %v2140
          %v2142 = vpop.f32.mrb[0].mxu0
          %v2143 = vpop.f32.mrb[0].mxu0
          %v2144 = vadd.f32 0.0, %v2143
          %v2145 = vpop.f32.mrb[0].mxu0
          %2146 = vmatprep.mubr.bf16.mxu0 0
          %2147 = vmatmul.mubr.bf16.gmra.mrb[0].mxu0 %v2091
          %v2148 = vpop.f32.mrb[0].mxu0
          %v2149 = vadd.f32 0.0, %v2148
          %v2150 = vpop.f32.mrb[0].mxu0
          %v2151 = vpop.f32.mrb[0].mxu0
          %v2152 = vadd.f32 0.0, %v2151
          %v2153 = vpop.f32.mrb[0].mxu0
          %2154 = vmatprep.mubr.bf16.mxu0 0
          %2155 = vmatmul.mubr.bf16.gmra.mrb[0].mxu0 %v2092
          %v2156 = vpop.f32.mrb[0].mxu0
          %v2157 = vadd.f32 0.0, %v2156
          %v2158 = vpop.f32.mrb[0].mxu0
          %v2159 = vpop.f32.mrb[0].mxu0
          %v2160 = vadd.f32 0.0, %v2159
          %v2161 = vpop.f32.mrb[0].mxu0
          %2162 = vmatprep.mubr.bf16.mxu0 0
          %2163 = vmatmul.mubr.bf16.gmra.mrb[0].mxu0 %v2093
          %v2164 = vpop.f32.mrb[0].mxu0
          %v2165 = vadd.f32 0.0, %v2164
          %v2166 = vpop.f32.mrb[0].mxu0
          %v2167 = vpop.f32.mrb[0].mxu0
          %v2168 = vadd.f32 0.0, %v2167
          %v2169 = vpop.f32.mrb[0].mxu0
          %2170 = vmatprep.mubr.bf16.mxu0 0
          %2171 = vmatmul.mubr.bf16.gmra.mrb[0].mxu0 %v2094
          %v2172 = vpop.f32.mrb[0].mxu0
          %v2173 = vadd.f32 0.0, %v2172
          %v2174 = vpop.f32.mrb[0].mxu0
          %v2175 = vpop.f32.mrb[0].mxu0
          %v2176 = vadd.f32 0.0, %v2175
          %v2177 = vpop.f32.mrb[0].mxu0
          %2178 = vmatprep.mubr.bf16.mxu0 0
          %2179 = vmatmul.mubr.bf16.gmra.mrb[0].mxu0 %v2095
          %v2180 = vpop.f32.mrb[0].mxu0
          %v2181 = vadd.f32 0.0, %v2180
          %v2182 = vpop.f32.mrb[0].mxu0
          %v2183 = vpop.f32.mrb[0].mxu0
          %v2184 = vadd.f32 0.0, %v2183
          %v2185 = vpop.f32.mrb[0].mxu0
          %2186 = vmatprep.mubr.bf16.mxu0 0
          %2187 = vmatmul.mubr.bf16.gmra.mrb[0].mxu0 %v2096
          %v2188 = vpop.f32.mrb[0].mxu0
          %v2189 = vadd.f32 0.0, %v2188
          %v2190 = vpop.f32.mrb[0].mxu0
          %v2191 = vpop.f32.mrb[0].mxu0
          %v2192 = vadd.f32 0.0, %v2191
          %v2193 = vpop.f32.mrb[0].mxu0
          %2194 = vmatprep.mubr.bf16.mxu0 0
          %2195 = vmatmul.mubr.bf16.gmra.mrb[0].mxu0 %v2097
          %v2196 = vpop.f32.mrb[0].mxu0
          %v2197 = vadd.f32 0.0, %v2196
          %v2198 = vpop.f32.mrb[0].mxu0
          %v2199 = vpop.f32.mrb[0].mxu0
          %v2200 = vadd.f32 0.0, %v2199
          %v2201 = vpop.f32.mrb[0].mxu0
          %2202 = vdwg.mxu0
          %v2203 = vld [vmem:[%s954] sm:$0xf]
          %v2204 = vld [vmem:[%s954 + $0x4] sm:$0xf]
          %v2205 = vld [vmem:[%s954 + $0x8] sm:$0xf]
          %v2206 = vld [vmem:[%s954 + $0xc] sm:$0xf]
          %v2207 = vld [vmem:[%s954 + $0x10] sm:$0xf]
          %v2208 = vld [vmem:[%s954 + $0x14] sm:$0xf]
          %v2209 = vld [vmem:[%s954 + $0x18] sm:$0xf]
          %v2210 = vld [vmem:[%s954 + $0x1c] sm:$0xf]
          %v2211 = vld [vmem:[%s954 + $0x20] sm:$0xf]
          %v2212 = vld [vmem:[%s954 + $0x24] sm:$0xf]
          %v2213 = vld [vmem:[%s954 + $0x28] sm:$0xf]
          %v2214 = vld [vmem:[%s954 + $0x2c] sm:$0xf]
          %v2215 = vld [vmem:[%s954 + $0x30] sm:$0xf]
          %v2216 = vld [vmem:[%s954 + $0x34] sm:$0xf]
          %v2217 = vld [vmem:[%s954 + $0x38] sm:$0xf]
          %v2218 = vld [vmem:[%s954 + $0x3c] sm:$0xf]
          %v2219 = vld [vmem:[%s1096] sm:$0x1]
          %v2220 = vld [vmem:[%s963] sm:$0xf]
          %v2221 = vld [vmem:[%s963 + $0x4] sm:$0xf]
          %v2222 = vld [vmem:[%s963 + $0x8] sm:$0xf]
          %v2223 = vld [vmem:[%s963 + $0xc] sm:$0xf]
          %v2224 = vld [vmem:[%s963 + $0x10] sm:$0xf]
          %v2225 = vld [vmem:[%s963 + $0x14] sm:$0xf]
          %v2226 = vld [vmem:[%s963 + $0x18] sm:$0xf]
          %v2227 = vld [vmem:[%s963 + $0x1c] sm:$0xf]
          %v2228 = vld [vmem:[%s963 + $0x20] sm:$0xf]
          %v2229 = vld [vmem:[%s963 + $0x24] sm:$0xf]
          %v2230 = vld [vmem:[%s963 + $0x28] sm:$0xf]
          %v2231 = vld [vmem:[%s963 + $0x2c] sm:$0xf]
          %v2232 = vld [vmem:[%s963 + $0x30] sm:$0xf]
          %v2233 = vld [vmem:[%s963 + $0x34] sm:$0xf]
          %v2234 = vld [vmem:[%s963 + $0x38] sm:$0xf]
          %v2235 = vld [vmem:[%s963 + $0x3c] sm:$0xf]
          %v2236 = vld [vmem:[%s1099] sm:$0x1]
          %v2237 = vpack.c.bf16 %v2144, %v2141
          %v2238 = vpack.c.bf16 %v2152, %v2149
          %v2239 = vpack.c.bf16 %v2160, %v2157
          %v2240 = vpack.c.bf16 %v2168, %v2165
          %v2241 = vpack.c.bf16 %v2176, %v2173
          %v2242 = vpack.c.bf16 %v2184, %v2181
          %v2243 = vpack.c.bf16 %v2192, %v2189
          %v2244 = vpack.c.bf16 %v2200, %v2197
          %v2246 = vlaneseq
          %v2247 = vshrl.u32 %v2246, 7
          %v2248 = vsub.s32 0, %v2247
          %v2249 = vrot.slane %v2219, %v2248
          %v2267 = vunpack.c.l.b16 %v2203
          %v2268 = vunpack.c.l.b16 %v2204
          %v2269 = vunpack.c.l.b16 %v2205
          %v2270 = vunpack.c.l.b16 %v2206
          %v2271 = vunpack.c.l.b16 %v2207
          %v2272 = vunpack.c.l.b16 %v2208
          %v2273 = vunpack.c.l.b16 %v2209
          %v2274 = vunpack.c.l.b16 %v2210
          %v2275 = vunpack.c.l.b16 %v2211
          %v2276 = vunpack.c.l.b16 %v2212
          %v2277 = vunpack.c.l.b16 %v2213
          %v2278 = vunpack.c.l.b16 %v2214
          %v2279 = vunpack.c.l.b16 %v2215
          %v2280 = vunpack.c.l.b16 %v2216
          %v2281 = vunpack.c.l.b16 %v2217
          %v2282 = vunpack.c.l.b16 %v2218
          %v2283 = vpack.c.b16 %v2268, %v2267
          %v2284 = vpack.c.b16 %v2270, %v2269
          %v2285 = vpack.c.b16 %v2272, %v2271
          %v2286 = vpack.c.b16 %v2274, %v2273
          %v2287 = vpack.c.b16 %v2276, %v2275
          %v2288 = vpack.c.b16 %v2278, %v2277
          %v2289 = vpack.c.b16 %v2280, %v2279
          %v2290 = vpack.c.b16 %v2282, %v2281
          %2299 = vmatprep.subr.bf16.mxu0 0
          %2300 = vmatpush1.bf16.msra.mxu0 %v2283
          %2301 = vmatprep.subr.bf16.mxu0 0
          %2302 = vmatpush1.bf16.msra.mxu0 %v2284
          %2303 = vmatprep.subr.bf16.mxu0 0
          %2304 = vmatpush1.bf16.msra.mxu0 %v2285
          %2305 = vmatprep.subr.bf16.mxu0 0
          %2306 = vmatpush1.bf16.msra.mxu0 %v2286
          %2307 = vmatprep.subr.bf16.mxu0 0
          %2308 = vmatpush1.bf16.msra.mxu0 %v2287
          %2309 = vmatprep.subr.bf16.mxu0 0
          %2310 = vmatpush1.bf16.msra.mxu0 %v2288
          %2311 = vmatprep.subr.bf16.mxu0 0
          %2312 = vmatpush1.bf16.msra.mxu0 %v2289
          %2313 = vmatprep.subr.bf16.mxu0 0
          %2314 = vmatpush1.bf16.msra.mxu0 %v2290
          %2315 = vmatprep.subr.bf16.mxu0 0
          %2316 = vmatpush1.bf16.msra.mxu0 0
          %2317 = vmatprep.subr.bf16.mxu0 0
          %2318 = vmatpush1.bf16.msra.mxu0 0
          %2319 = vmatprep.subr.bf16.mxu0 0
          %2320 = vmatpush1.bf16.msra.mxu0 0
          %2321 = vmatprep.subr.bf16.mxu0 0
          %2322 = vmatpush1.bf16.msra.mxu0 0
          %2323 = vmatprep.subr.bf16.mxu0 0
          %2324 = vmatpush1.bf16.msra.mxu0 0
          %2325 = vmatprep.subr.bf16.mxu0 0
          %2326 = vmatpush1.bf16.msra.mxu0 0
          %2327 = vmatprep.subr.bf16.mxu0 0
          %2328 = vmatpush1.bf16.msra.mxu0 0
          %2329 = vmatprep.subr.bf16.mxu0 0
          %2330 = vmatpush1.bf16.msra.mxu0 0
          %2331 = vmatprep.mubr.bf16.mxu0 0
          %2332 = vmatmul.mubr.bf16.gmra.mrb[0].mxu0 %v2237
          %v2333 = vpop.f32.mrb[0].mxu0
          %v2334 = vadd.f32 %v2249, %v2333
          %v2335 = vpop.f32.mrb[0].mxu0
          %v2336 = vpop.f32.mrb[0].mxu0
          %v2337 = vadd.f32 %v2249, %v2336
          %v2338 = vpop.f32.mrb[0].mxu0
          %2339 = vmatprep.mubr.bf16.mxu0 0
          %2340 = vmatmul.mubr.bf16.gmra.mrb[0].mxu0 %v2238
          %v2341 = vpop.f32.mrb[0].mxu0
          %v2342 = vadd.f32 %v2249, %v2341
          %v2343 = vpop.f32.mrb[0].mxu0
          %v2344 = vpop.f32.mrb[0].mxu0
          %v2345 = vadd.f32 %v2249, %v2344
          %v2346 = vpop.f32.mrb[0].mxu0
          %2347 = vmatprep.mubr.bf16.mxu0 0
          %2348 = vmatmul.mubr.bf16.gmra.mrb[0].mxu0 %v2239
          %v2349 = vpop.f32.mrb[0].mxu0
          %v2350 = vadd.f32 %v2249, %v2349
          %v2351 = vpop.f32.mrb[0].mxu0
          %v2352 = vpop.f32.mrb[0].mxu0
          %v2353 = vadd.f32 %v2249, %v2352
          %v2354 = vpop.f32.mrb[0].mxu0
          %2355 = vmatprep.mubr.bf16.mxu0 0
          %2356 = vmatmul.mubr.bf16.gmra.mrb[0].mxu0 %v2240
          %v2357 = vpop.f32.mrb[0].mxu0
          %v2358 = vadd.f32 %v2249, %v2357
          %v2359 = vpop.f32.mrb[0].mxu0
          %v2360 = vpop.f32.mrb[0].mxu0
          %v2361 = vadd.f32 %v2249, %v2360
          %v2362 = vpop.f32.mrb[0].mxu0
          %2363 = vmatprep.mubr.bf16.mxu0 0
          %2364 = vmatmul.mubr.bf16.gmra.mrb[0].mxu0 %v2241
          %v2365 = vpop.f32.mrb[0].mxu0
          %v2366 = vadd.f32 %v2249, %v2365
          %v2367 = vpop.f32.mrb[0].mxu0
          %v2368 = vpop.f32.mrb[0].mxu0
          %v2369 = vadd.f32 %v2249, %v2368
          %v2370 = vpop.f32.mrb[0].mxu0
          %2371 = vmatprep.mubr.bf16.mxu0 0
          %2372 = vmatmul.mubr.bf16.gmra.mrb[0].mxu0 %v2242
          %v2373 = vpop.f32.mrb[0].mxu0
          %v2374 = vadd.f32 %v2249, %v2373
          %v2375 = vpop.f32.mrb[0].mxu0
          %v2376 = vpop.f32.mrb[0].mxu0
          %v2377 = vadd.f32 %v2249, %v2376
          %v2378 = vpop.f32.mrb[0].mxu0
          %2379 = vmatprep.mubr.bf16.mxu0 0
          %2380 = vmatmul.mubr.bf16.gmra.mrb[0].mxu0 %v2243
          %v2381 = vpop.f32.mrb[0].mxu0
          %v2382 = vadd.f32 %v2249, %v2381
          %v2383 = vpop.f32.mrb[0].mxu0
          %v2384 = vpop.f32.mrb[0].mxu0
          %v2385 = vadd.f32 %v2249, %v2384
          %v2386 = vpop.f32.mrb[0].mxu0
          %2387 = vmatprep.mubr.bf16.mxu0 0
          %2388 = vmatmul.mubr.bf16.gmra.mrb[0].mxu0 %v2244
          %v2389 = vpop.f32.mrb[0].mxu0
          %v2390 = vadd.f32 %v2249, %v2389
          %v2391 = vpop.f32.mrb[0].mxu0
          %v2392 = vpop.f32.mrb[0].mxu0
          %v2393 = vadd.f32 %v2249, %v2392
          %v2394 = vpop.f32.mrb[0].mxu0
          %2395 = vdwg.mxu0
          %v2396 = vmul.f32 %v2334, 0.5
          %v2397 = vmul.f32 %v2337, 0.5
          %v2398 = vmul.f32 %v2342, 0.5
          %v2399 = vmul.f32 %v2345, 0.5
          %v2400 = vmul.f32 %v2350, 0.5
          %v2401 = vmul.f32 %v2353, 0.5
          %v2402 = vmul.f32 %v2358, 0.5
          %v2403 = vmul.f32 %v2361, 0.5
          %v2404 = vmul.f32 %v2366, 0.5
          %v2405 = vmul.f32 %v2369, 0.5
          %v2406 = vmul.f32 %v2374, 0.5
          %v2407 = vmul.f32 %v2377, 0.5
          %v2408 = vmul.f32 %v2382, 0.5
          %v2409 = vmul.f32 %v2385, 0.5
          %v2410 = vmul.f32 %v2390, 0.5
          %v2411 = vmul.f32 %v2393, 0.5
          %v2412 = vmul.f32 %v2334, 0.70710677
          %v2413 = vmul.f32 %v2337, 0.70710677
          %v2414 = vmul.f32 %v2342, 0.70710677
          %v2415 = vmul.f32 %v2345, 0.70710677
          %v2416 = vmul.f32 %v2350, 0.70710677
          %v2417 = vmul.f32 %v2353, 0.70710677
          %v2418 = vmul.f32 %v2358, 0.70710677
          %v2419 = vmul.f32 %v2361, 0.70710677
          %v2420 = vmul.f32 %v2366, 0.70710677
          %v2421 = vmul.f32 %v2369, 0.70710677
          %v2422 = vmul.f32 %v2374, 0.70710677
          %v2423 = vmul.f32 %v2377, 0.70710677
          %v2424 = vmul.f32 %v2382, 0.70710677
          %v2425 = vmul.f32 %v2385, 0.70710677
          %v2426 = vmul.f32 %v2390, 0.70710677
          %v2427 = vmul.f32 %v2393, 0.70710677
          %v2428 = verf.f32.pop %v2412
          %v2429 = verf.f32.pop %v2413
          %v2430 = verf.f32.pop %v2414
          %v2431 = verf.f32.pop %v2415
          %v2432 = verf.f32.pop %v2416
          %v2433 = verf.f32.pop %v2417
          %v2434 = verf.f32.pop %v2418
          %v2435 = verf.f32.pop %v2419
          %v2436 = verf.f32.pop %v2420
          %v2437 = verf.f32.pop %v2421
          %v2438 = verf.f32.pop %v2422
          %v2439 = verf.f32.pop %v2423
          %v2440 = verf.f32.pop %v2424
          %v2441 = verf.f32.pop %v2425
          %v2442 = verf.f32.pop %v2426
          %v2443 = verf.f32.pop %v2427
          %v2444 = vadd.f32 %v2428, 1.0
          %v2445 = vadd.f32 %v2429, 1.0
          %v2446 = vadd.f32 %v2430, 1.0
          %v2447 = vadd.f32 %v2431, 1.0
          %v2448 = vadd.f32 %v2432, 1.0
          %v2449 = vadd.f32 %v2433, 1.0
          %v2450 = vadd.f32 %v2434, 1.0
          %v2451 = vadd.f32 %v2435, 1.0
          %v2452 = vadd.f32 %v2436, 1.0
          %v2453 = vadd.f32 %v2437, 1.0
          %v2454 = vadd.f32 %v2438, 1.0
          %v2455 = vadd.f32 %v2439, 1.0
          %v2456 = vadd.f32 %v2440, 1.0
          %v2457 = vadd.f32 %v2441, 1.0
          %v2458 = vadd.f32 %v2442, 1.0
          %v2459 = vadd.f32 %v2443, 1.0
          %v2460 = vmul.f32 %v2396, %v2444
          %v2461 = vmul.f32 %v2397, %v2445
          %v2462 = vmul.f32 %v2398, %v2446
          %v2463 = vmul.f32 %v2399, %v2447
          %v2464 = vmul.f32 %v2400, %v2448
          %v2465 = vmul.f32 %v2401, %v2449
          %v2466 = vmul.f32 %v2402, %v2450
          %v2467 = vmul.f32 %v2403, %v2451
          %v2468 = vmul.f32 %v2404, %v2452
          %v2469 = vmul.f32 %v2405, %v2453
          %v2470 = vmul.f32 %v2406, %v2454
          %v2471 = vmul.f32 %v2407, %v2455
          %v2472 = vmul.f32 %v2408, %v2456
          %v2473 = vmul.f32 %v2409, %v2457
          %v2474 = vmul.f32 %v2410, %v2458
          %v2475 = vmul.f32 %v2411, %v2459
          %v2476 = vpack.c.bf16 %v2461, %v2460
          %v2477 = vpack.c.bf16 %v2463, %v2462
          %v2478 = vpack.c.bf16 %v2465, %v2464
          %v2479 = vpack.c.bf16 %v2467, %v2466
          %v2480 = vpack.c.bf16 %v2469, %v2468
          %v2481 = vpack.c.bf16 %v2471, %v2470
          %v2482 = vpack.c.bf16 %v2473, %v2472
          %v2483 = vpack.c.bf16 %v2475, %v2474
          %v2485 = vlaneseq
          %v2486 = vshrl.u32 %v2485, 7
          %v2487 = vsub.s32 0, %v2486
          %v2488 = vrot.slane %v2236, %v2487
          %v2506 = vunpack.c.l.b16 %v2220
          %v2507 = vunpack.c.l.b16 %v2221
          %v2508 = vunpack.c.l.b16 %v2222
          %v2509 = vunpack.c.l.b16 %v2223
          %v2510 = vunpack.c.l.b16 %v2224
          %v2511 = vunpack.c.l.b16 %v2225
          %v2512 = vunpack.c.l.b16 %v2226
          %v2513 = vunpack.c.l.b16 %v2227
          %v2514 = vunpack.c.l.b16 %v2228
          %v2515 = vunpack.c.l.b16 %v2229
          %v2516 = vunpack.c.l.b16 %v2230
          %v2517 = vunpack.c.l.b16 %v2231
          %v2518 = vunpack.c.l.b16 %v2232
          %v2519 = vunpack.c.l.b16 %v2233
          %v2520 = vunpack.c.l.b16 %v2234
          %v2521 = vunpack.c.l.b16 %v2235
          %v2522 = vpack.c.b16 %v2507, %v2506
          %v2523 = vpack.c.b16 %v2509, %v2508
          %v2524 = vpack.c.b16 %v2511, %v2510
          %v2525 = vpack.c.b16 %v2513, %v2512
          %v2526 = vpack.c.b16 %v2515, %v2514
          %v2527 = vpack.c.b16 %v2517, %v2516
          %v2528 = vpack.c.b16 %v2519, %v2518
          %v2529 = vpack.c.b16 %v2521, %v2520
          %2538 = vmatprep.subr.bf16.mxu0 0
          %2539 = vmatpush1.bf16.msra.mxu0 %v2522
          %2540 = vmatprep.subr.bf16.mxu0 0
          %2541 = vmatpush1.bf16.msra.mxu0 %v2523
          %2542 = vmatprep.subr.bf16.mxu0 0
          %2543 = vmatpush1.bf16.msra.mxu0 %v2524
          %2544 = vmatprep.subr.bf16.mxu0 0
          %2545 = vmatpush1.bf16.msra.mxu0 %v2525
          %2546 = vmatprep.subr.bf16.mxu0 0
          %2547 = vmatpush1.bf16.msra.mxu0 %v2526
          %2548 = vmatprep.subr.bf16.mxu0 0
          %2549 = vmatpush1.bf16.msra.mxu0 %v2527
          %2550 = vmatprep.subr.bf16.mxu0 0
          %2551 = vmatpush1.bf16.msra.mxu0 %v2528
          %2552 = vmatprep.subr.bf16.mxu0 0
          %2553 = vmatpush1.bf16.msra.mxu0 %v2529
          %2554 = vmatprep.subr.bf16.mxu0 0
          %2555 = vmatpush1.bf16.msra.mxu0 0
          %2556 = vmatprep.subr.bf16.mxu0 0
          %2557 = vmatpush1.bf16.msra.mxu0 0
          %2558 = vmatprep.subr.bf16.mxu0 0
          %2559 = vmatpush1.bf16.msra.mxu0 0
          %2560 = vmatprep.subr.bf16.mxu0 0
          %2561 = vmatpush1.bf16.msra.mxu0 0
          %2562 = vmatprep.subr.bf16.mxu0 0
          %2563 = vmatpush1.bf16.msra.mxu0 0
          %2564 = vmatprep.subr.bf16.mxu0 0
          %2565 = vmatpush1.bf16.msra.mxu0 0
          %2566 = vmatprep.subr.bf16.mxu0 0
          %2567 = vmatpush1.bf16.msra.mxu0 0
          %2568 = vmatprep.subr.bf16.mxu0 0
          %2569 = vmatpush1.bf16.msra.mxu0 0
          %2570 = vmatprep.mubr.bf16.mxu0 0
          %2571 = vmatmul.mubr.bf16.gmra.mrb[0].mxu0 %v2476
          %v2572 = vpop.f32.mrb[0].mxu0
          %v2573 = vadd.f32 %v2488, %v2572
          %v2574 = vpop.f32.mrb[0].mxu0
          %v2575 = vpop.f32.mrb[0].mxu0
          %v2576 = vadd.f32 %v2488, %v2575
          %v2577 = vpop.f32.mrb[0].mxu0
          %2578 = vmatprep.mubr.bf16.mxu0 0
          %2579 = vmatmul.mubr.bf16.gmra.mrb[0].mxu0 %v2477
          %v2580 = vpop.f32.mrb[0].mxu0
          %v2581 = vadd.f32 %v2488, %v2580
          %v2582 = vpop.f32.mrb[0].mxu0
          %v2583 = vpop.f32.mrb[0].mxu0
          %v2584 = vadd.f32 %v2488, %v2583
          %v2585 = vpop.f32.mrb[0].mxu0
          %2586 = vmatprep.mubr.bf16.mxu0 0
          %2587 = vmatmul.mubr.bf16.gmra.mrb[0].mxu0 %v2478
          %v2588 = vpop.f32.mrb[0].mxu0
          %v2589 = vadd.f32 %v2488, %v2588
          %v2590 = vpop.f32.mrb[0].mxu0
          %v2591 = vpop.f32.mrb[0].mxu0
          %v2592 = vadd.f32 %v2488, %v2591
          %v2593 = vpop.f32.mrb[0].mxu0
          %2594 = vmatprep.mubr.bf16.mxu0 0
          %2595 = vmatmul.mubr.bf16.gmra.mrb[0].mxu0 %v2479
          %v2596 = vpop.f32.mrb[0].mxu0
          %v2597 = vadd.f32 %v2488, %v2596
          %v2598 = vpop.f32.mrb[0].mxu0
          %v2599 = vpop.f32.mrb[0].mxu0
          %v2600 = vadd.f32 %v2488, %v2599
          %v2601 = vpop.f32.mrb[0].mxu0
          %2602 = vmatprep.mubr.bf16.mxu0 0
          %2603 = vmatmul.mubr.bf16.gmra.mrb[0].mxu0 %v2480
          %v2604 = vpop.f32.mrb[0].mxu0
          %v2605 = vadd.f32 %v2488, %v2604
          %v2606 = vpop.f32.mrb[0].mxu0
          %v2607 = vpop.f32.mrb[0].mxu0
          %v2608 = vadd.f32 %v2488, %v2607
          %v2609 = vpop.f32.mrb[0].mxu0
          %2610 = vmatprep.mubr.bf16.mxu0 0
          %2611 = vmatmul.mubr.bf16.gmra.mrb[0].mxu0 %v2481
          %v2612 = vpop.f32.mrb[0].mxu0
          %v2613 = vadd.f32 %v2488, %v2612
          %v2614 = vpop.f32.mrb[0].mxu0
          %v2615 = vpop.f32.mrb[0].mxu0
          %v2616 = vadd.f32 %v2488, %v2615
          %v2617 = vpop.f32.mrb[0].mxu0
          %2618 = vmatprep.mubr.bf16.mxu0 0
          %2619 = vmatmul.mubr.bf16.gmra.mrb[0].mxu0 %v2482
          %v2620 = vpop.f32.mrb[0].mxu0
          %v2621 = vadd.f32 %v2488, %v2620
          %v2622 = vpop.f32.mrb[0].mxu0
          %v2623 = vpop.f32.mrb[0].mxu0
          %v2624 = vadd.f32 %v2488, %v2623
          %v2625 = vpop.f32.mrb[0].mxu0
          %2626 = vmatprep.mubr.bf16.mxu0 0
          %2627 = vmatmul.mubr.bf16.gmra.mrb[0].mxu0 %v2483
          %v2628 = vpop.f32.mrb[0].mxu0
          %v2629 = vadd.f32 %v2488, %v2628
          %v2630 = vpop.f32.mrb[0].mxu0
          %v2631 = vpop.f32.mrb[0].mxu0
          %v2632 = vadd.f32 %v2488, %v2631
          %v2633 = vpop.f32.mrb[0].mxu0
          %2634 = vdwg.mxu0
          %v2635 = vadd.f32 %v1777, %v2573
          %v2636 = vadd.f32 %v1778, %v2576
          %v2637 = vadd.f32 %v1779, %v2581
          %v2638 = vadd.f32 %v1780, %v2584
          %v2639 = vadd.f32 %v1781, %v2589
          %v2640 = vadd.f32 %v1782, %v2592
          %v2641 = vadd.f32 %v1783, %v2597
          %v2642 = vadd.f32 %v1784, %v2600
          %v2643 = vadd.f32 %v1785, %v2605
          %v2644 = vadd.f32 %v1786, %v2608
          %v2645 = vadd.f32 %v1787, %v2613
          %v2646 = vadd.f32 %v1788, %v2616
          %v2647 = vadd.f32 %v1789, %v2621
          %v2648 = vadd.f32 %v1790, %v2624
          %v2649 = vadd.f32 %v1791, %v2629
          %v2650 = vadd.f32 %v1792, %v2632
          %2651 = vst [vmem:[#allocation2] sm:$0xff] %v2635
          %2652 = vst [vmem:[#allocation2 + $0x8] sm:$0xff] %v2636
          %2653 = vst [vmem:[#allocation2 + $0x10] sm:$0xff] %v2637
          %2654 = vst [vmem:[#allocation2 + $0x18] sm:$0xff] %v2638
          %2655 = vst [vmem:[#allocation2 + $0x20] sm:$0xff] %v2639
          %2656 = vst [vmem:[#allocation2 + $0x28] sm:$0xff] %v2640
          %2657 = vst [vmem:[#allocation2 + $0x30] sm:$0xff] %v2641
          %2658 = vst [vmem:[#allocation2 + $0x38] sm:$0xff] %v2642
          %2659 = vst [vmem:[#allocation2 + $0x40] sm:$0xff] %v2643
          %2660 = vst [vmem:[#allocation2 + $0x48] sm:$0xff] %v2644
          %2661 = vst [vmem:[#allocation2 + $0x50] sm:$0xff] %v2645
          %2662 = vst [vmem:[#allocation2 + $0x58] sm:$0xff] %v2646
          %2663 = vst [vmem:[#allocation2 + $0x60] sm:$0xff] %v2647
          %2664 = vst [vmem:[#allocation2 + $0x68] sm:$0xff] %v2648
          %2665 = vst [vmem:[#allocation2 + $0x70] sm:$0xff] %v2649
          %2666 = vst [vmem:[#allocation2 + $0x78] sm:$0xff] %v2650
          %v2667 = vld [vmem:[#allocation3] sm:$0xff]
          %v2668 = vld [vmem:[#allocation3 + $0x8] sm:$0xff]
          %v2669 = vld [vmem:[#allocation3 + $0x10] sm:$0xff]
          %v2670 = vld [vmem:[#allocation3 + $0x18] sm:$0xff]
          %v2671 = vld [vmem:[#allocation3 + $0x20] sm:$0xff]
          %v2672 = vld [vmem:[#allocation3 + $0x28] sm:$0xff]
          %v2673 = vld [vmem:[#allocation3 + $0x30] sm:$0xff]
          %v2674 = vld [vmem:[#allocation3 + $0x38] sm:$0xff]
          %v2675 = vld [vmem:[#allocation3 + $0x40] sm:$0xff]
          %v2676 = vld [vmem:[#allocation3 + $0x48] sm:$0xff]
          %v2677 = vld [vmem:[#allocation3 + $0x50] sm:$0xff]
          %v2678 = vld [vmem:[#allocation3 + $0x58] sm:$0xff]
          %v2679 = vld [vmem:[#allocation3 + $0x60] sm:$0xff]
          %v2680 = vld [vmem:[#allocation3 + $0x68] sm:$0xff]
          %v2681 = vld [vmem:[#allocation3 + $0x70] sm:$0xff]
          %v2682 = vld [vmem:[#allocation3 + $0x78] sm:$0xff]
          %v2683 = vld [vmem:[%s1102] sm:$0x1]
          %v2684 = vld [vmem:[%s1105] sm:$0x1]
          %2685 = vadd.xlane.f32.xlu0 %v2667
          %v2686 = vpop.xlane.xlu0 %2685
          %2687 = vadd.xlane.f32.xlu0 %v2668
          %v2688 = vpop.xlane.xlu0 %2687
          %2689 = vadd.xlane.f32.xlu0 %v2669
          %v2690 = vpop.xlane.xlu0 %2689
          %2691 = vadd.xlane.f32.xlu0 %v2670
          %v2692 = vpop.xlane.xlu0 %2691
          %2693 = vadd.xlane.f32.xlu0 %v2671
          %v2694 = vpop.xlane.xlu0 %2693
          %2695 = vadd.xlane.f32.xlu0 %v2672
          %v2696 = vpop.xlane.xlu0 %2695
          %2697 = vadd.xlane.f32.xlu0 %v2673
          %v2698 = vpop.xlane.xlu0 %2697
          %2699 = vadd.xlane.f32.xlu0 %v2674
          %v2700 = vpop.xlane.xlu0 %2699
          %2701 = vadd.xlane.f32.xlu0 %v2675
          %v2702 = vpop.xlane.xlu0 %2701
          %2703 = vadd.xlane.f32.xlu0 %v2676
          %v2704 = vpop.xlane.xlu0 %2703
          %2705 = vadd.xlane.f32.xlu0 %v2677
          %v2706 = vpop.xlane.xlu0 %2705
          %2707 = vadd.xlane.f32.xlu0 %v2678
          %v2708 = vpop.xlane.xlu0 %2707
          %2709 = vadd.xlane.f32.xlu0 %v2679
          %v2710 = vpop.xlane.xlu0 %2709
          %2711 = vadd.xlane.f32.xlu0 %v2680
          %v2712 = vpop.xlane.xlu0 %2711
          %2713 = vadd.xlane.f32.xlu0 %v2681
          %v2714 = vpop.xlane.xlu0 %2713
          %2715 = vadd.xlane.f32.xlu0 %v2682
          %v2716 = vpop.xlane.xlu0 %2715
          %v2717 = vmul.f32 %v2686, 0.041666668
          %v2718 = vmul.f32 %v2688, 0.041666668
          %v2719 = vmul.f32 %v2690, 0.041666668
          %v2720 = vmul.f32 %v2692, 0.041666668
          %v2721 = vmul.f32 %v2694, 0.041666668
          %v2722 = vmul.f32 %v2696, 0.041666668
          %v2723 = vmul.f32 %v2698, 0.041666668
          %v2724 = vmul.f32 %v2700, 0.041666668
          %v2725 = vmul.f32 %v2702, 0.041666668
          %v2726 = vmul.f32 %v2704, 0.041666668
          %v2727 = vmul.f32 %v2706, 0.041666668
          %v2728 = vmul.f32 %v2708, 0.041666668
          %v2729 = vmul.f32 %v2710, 0.041666668
          %v2730 = vmul.f32 %v2712, 0.041666668
          %v2731 = vmul.f32 %v2714, 0.041666668
          %v2732 = vmul.f32 %v2716, 0.041666668
          %vm2733 = vcmp.lt.s32.totalorder %v1844, 24
          %v2734 = vsub.f32 %v2667, %v2717
          %v2735 = vsub.f32 %v2668, %v2718
          %v2736 = vsub.f32 %v2669, %v2719
          %v2737 = vsub.f32 %v2670, %v2720
          %v2738 = vsub.f32 %v2671, %v2721
          %v2739 = vsub.f32 %v2672, %v2722
          %v2740 = vsub.f32 %v2673, %v2723
          %v2741 = vsub.f32 %v2674, %v2724
          %v2742 = vsub.f32 %v2675, %v2725
          %v2743 = vsub.f32 %v2676, %v2726
          %v2744 = vsub.f32 %v2677, %v2727
          %v2745 = vsub.f32 %v2678, %v2728
          %v2746 = vsub.f32 %v2679, %v2729
          %v2747 = vsub.f32 %v2680, %v2730
          %v2748 = vsub.f32 %v2681, %v2731
          %v2749 = vsub.f32 %v2682, %v2732
          %v2750 = vsel %vm2733, %v2734, 0.0
          %v2751 = vsel %vm2733, %v2735, 0.0
          %v2752 = vsel %vm2733, %v2736, 0.0
          %v2753 = vsel %vm2733, %v2737, 0.0
          %v2754 = vsel %vm2733, %v2738, 0.0
          %v2755 = vsel %vm2733, %v2739, 0.0
          %v2756 = vsel %vm2733, %v2740, 0.0
          %v2757 = vsel %vm2733, %v2741, 0.0
          %v2758 = vsel %vm2733, %v2742, 0.0
          %v2759 = vsel %vm2733, %v2743, 0.0
          %v2760 = vsel %vm2733, %v2744, 0.0
          %v2761 = vsel %vm2733, %v2745, 0.0
          %v2762 = vsel %vm2733, %v2746, 0.0
          %v2763 = vsel %vm2733, %v2747, 0.0
          %v2764 = vsel %vm2733, %v2748, 0.0
          %v2765 = vsel %vm2733, %v2749, 0.0
          %v2766 = vmul.f32 %v2750, %v2750
          %v2767 = vmul.f32 %v2751, %v2751
          %v2768 = vmul.f32 %v2752, %v2752
          %v2769 = vmul.f32 %v2753, %v2753
          %v2770 = vmul.f32 %v2754, %v2754
          %v2771 = vmul.f32 %v2755, %v2755
          %v2772 = vmul.f32 %v2756, %v2756
          %v2773 = vmul.f32 %v2757, %v2757
          %v2774 = vmul.f32 %v2758, %v2758
          %v2775 = vmul.f32 %v2759, %v2759
          %v2776 = vmul.f32 %v2760, %v2760
          %v2777 = vmul.f32 %v2761, %v2761
          %v2778 = vmul.f32 %v2762, %v2762
          %v2779 = vmul.f32 %v2763, %v2763
          %v2780 = vmul.f32 %v2764, %v2764
          %v2781 = vmul.f32 %v2765, %v2765
          %2782 = vadd.xlane.f32.xlu0 %v2766
          %v2783 = vpop.xlane.xlu0 %2782
          %2784 = vadd.xlane.f32.xlu0 %v2767
          %v2785 = vpop.xlane.xlu0 %2784
          %2786 = vadd.xlane.f32.xlu0 %v2768
          %v2787 = vpop.xlane.xlu0 %2786
          %2788 = vadd.xlane.f32.xlu0 %v2769
          %v2789 = vpop.xlane.xlu0 %2788
          %2790 = vadd.xlane.f32.xlu0 %v2770
          %v2791 = vpop.xlane.xlu0 %2790
          %2792 = vadd.xlane.f32.xlu0 %v2771
          %v2793 = vpop.xlane.xlu0 %2792
          %2794 = vadd.xlane.f32.xlu0 %v2772
          %v2795 = vpop.xlane.xlu0 %2794
          %2796 = vadd.xlane.f32.xlu0 %v2773
          %v2797 = vpop.xlane.xlu0 %2796
          %2798 = vadd.xlane.f32.xlu0 %v2774
          %v2799 = vpop.xlane.xlu0 %2798
          %2800 = vadd.xlane.f32.xlu0 %v2775
          %v2801 = vpop.xlane.xlu0 %2800
          %2802 = vadd.xlane.f32.xlu0 %v2776
          %v2803 = vpop.xlane.xlu0 %2802
          %2804 = vadd.xlane.f32.xlu0 %v2777
          %v2805 = vpop.xlane.xlu0 %2804
          %2806 = vadd.xlane.f32.xlu0 %v2778
          %v2807 = vpop.xlane.xlu0 %2806
          %2808 = vadd.xlane.f32.xlu0 %v2779
          %v2809 = vpop.xlane.xlu0 %2808
          %2810 = vadd.xlane.f32.xlu0 %v2780
          %v2811 = vpop.xlane.xlu0 %2810
          %2812 = vadd.xlane.f32.xlu0 %v2781
          %v2813 = vpop.xlane.xlu0 %2812
          %v2814 = vmul.f32 %v2783, 0.041666668
          %v2815 = vmul.f32 %v2785, 0.041666668
          %v2816 = vmul.f32 %v2787, 0.041666668
          %v2817 = vmul.f32 %v2789, 0.041666668
          %v2818 = vmul.f32 %v2791, 0.041666668
          %v2819 = vmul.f32 %v2793, 0.041666668
          %v2820 = vmul.f32 %v2795, 0.041666668
          %v2821 = vmul.f32 %v2797, 0.041666668
          %v2822 = vmul.f32 %v2799, 0.041666668
          %v2823 = vmul.f32 %v2801, 0.041666668
          %v2824 = vmul.f32 %v2803, 0.041666668
          %v2825 = vmul.f32 %v2805, 0.041666668
          %v2826 = vmul.f32 %v2807, 0.041666668
          %v2827 = vmul.f32 %v2809, 0.041666668
          %v2828 = vmul.f32 %v2811, 0.041666668
          %v2829 = vmul.f32 %v2813, 0.041666668
          %v2830 = vadd.f32 %v2814, 1e-05
          %v2831 = vadd.f32 %v2815, 1e-05
          %v2832 = vadd.f32 %v2816, 1e-05
          %v2833 = vadd.f32 %v2817, 1e-05
          %v2834 = vadd.f32 %v2818, 1e-05
          %v2835 = vadd.f32 %v2819, 1e-05
          %v2836 = vadd.f32 %v2820, 1e-05
          %v2837 = vadd.f32 %v2821, 1e-05
          %v2838 = vadd.f32 %v2822, 1e-05
          %v2839 = vadd.f32 %v2823, 1e-05
          %v2840 = vadd.f32 %v2824, 1e-05
          %v2841 = vadd.f32 %v2825, 1e-05
          %v2842 = vadd.f32 %v2826, 1e-05
          %v2843 = vadd.f32 %v2827, 1e-05
          %v2844 = vadd.f32 %v2828, 1e-05
          %v2845 = vadd.f32 %v2829, 1e-05
          %v2846 = vrsqrt.pop %v2830
          %v2847 = vrsqrt.pop %v2831
          %v2848 = vrsqrt.pop %v2832
          %v2849 = vrsqrt.pop %v2833
          %v2850 = vrsqrt.pop %v2834
          %v2851 = vrsqrt.pop %v2835
          %v2852 = vrsqrt.pop %v2836
          %v2853 = vrsqrt.pop %v2837
          %v2854 = vrsqrt.pop %v2838
          %v2855 = vrsqrt.pop %v2839
          %v2856 = vrsqrt.pop %v2840
          %v2857 = vrsqrt.pop %v2841
          %v2858 = vrsqrt.pop %v2842
          %v2859 = vrsqrt.pop %v2843
          %v2860 = vrsqrt.pop %v2844
          %v2861 = vrsqrt.pop %v2845
          %v2862 = vmul.f32 %v2750, %v2846
          %v2863 = vmul.f32 %v2751, %v2847
          %v2864 = vmul.f32 %v2752, %v2848
          %v2865 = vmul.f32 %v2753, %v2849
          %v2866 = vmul.f32 %v2754, %v2850
          %v2867 = vmul.f32 %v2755, %v2851
          %v2868 = vmul.f32 %v2756, %v2852
          %v2869 = vmul.f32 %v2757, %v2853
          %v2870 = vmul.f32 %v2758, %v2854
          %v2871 = vmul.f32 %v2759, %v2855
          %v2872 = vmul.f32 %v2760, %v2856
          %v2873 = vmul.f32 %v2761, %v2857
          %v2874 = vmul.f32 %v2762, %v2858
          %v2875 = vmul.f32 %v2763, %v2859
          %v2876 = vmul.f32 %v2764, %v2860
          %v2877 = vmul.f32 %v2765, %v2861
          %v2879 = vlaneseq
          %v2880 = vshrl.u32 %v2879, 7
          %v2881 = vsub.s32 0, %v2880
          %v2882 = vrot.slane %v2683, %v2881
          %v2884 = vmul.f32 %v2862, %v2882
          %v2885 = vmul.f32 %v2863, %v2882
          %v2886 = vmul.f32 %v2864, %v2882
          %v2887 = vmul.f32 %v2865, %v2882
          %v2888 = vmul.f32 %v2866, %v2882
          %v2889 = vmul.f32 %v2867, %v2882
          %v2890 = vmul.f32 %v2868, %v2882
          %v2891 = vmul.f32 %v2869, %v2882
          %v2892 = vmul.f32 %v2870, %v2882
          %v2893 = vmul.f32 %v2871, %v2882
          %v2894 = vmul.f32 %v2872, %v2882
          %v2895 = vmul.f32 %v2873, %v2882
          %v2896 = vmul.f32 %v2874, %v2882
          %v2897 = vmul.f32 %v2875, %v2882
          %v2898 = vmul.f32 %v2876, %v2882
          %v2899 = vmul.f32 %v2877, %v2882
          %v2901 = vlaneseq
          %v2902 = vshrl.u32 %v2901, 7
          %v2903 = vsub.s32 0, %v2902
          %v2904 = vrot.slane %v2684, %v2903
          %v2906 = vadd.f32 %v2884, %v2904
          %v2907 = vadd.f32 %v2885, %v2904
          %v2908 = vadd.f32 %v2886, %v2904
          %v2909 = vadd.f32 %v2887, %v2904
          %v2910 = vadd.f32 %v2888, %v2904
          %v2911 = vadd.f32 %v2889, %v2904
          %v2912 = vadd.f32 %v2890, %v2904
          %v2913 = vadd.f32 %v2891, %v2904
          %v2914 = vadd.f32 %v2892, %v2904
          %v2915 = vadd.f32 %v2893, %v2904
          %v2916 = vadd.f32 %v2894, %v2904
          %v2917 = vadd.f32 %v2895, %v2904
          %v2918 = vadd.f32 %v2896, %v2904
          %v2919 = vadd.f32 %v2897, %v2904
          %v2920 = vadd.f32 %v2898, %v2904
          %v2921 = vadd.f32 %v2899, %v2904
          %v2922 = vld [vmem:[%s972] sm:$0xf]
          %v2923 = vld [vmem:[%s972 + $0x4] sm:$0xf]
          %v2924 = vld [vmem:[%s972 + $0x8] sm:$0xf]
          %v2925 = vld [vmem:[%s972 + $0xc] sm:$0xf]
          %v2926 = vld [vmem:[%s972 + $0x10] sm:$0xf]
          %v2927 = vld [vmem:[%s972 + $0x14] sm:$0xf]
          %v2928 = vld [vmem:[%s972 + $0x18] sm:$0xf]
          %v2929 = vld [vmem:[%s972 + $0x1c] sm:$0xf]
          %v2930 = vld [vmem:[%s972 + $0x20] sm:$0xf]
          %v2931 = vld [vmem:[%s972 + $0x24] sm:$0xf]
          %v2932 = vld [vmem:[%s972 + $0x28] sm:$0xf]
          %v2933 = vld [vmem:[%s972 + $0x2c] sm:$0xf]
          %v2934 = vld [vmem:[%s972 + $0x30] sm:$0xf]
          %v2935 = vld [vmem:[%s972 + $0x34] sm:$0xf]
          %v2936 = vld [vmem:[%s972 + $0x38] sm:$0xf]
          %v2937 = vld [vmem:[%s972 + $0x3c] sm:$0xf]
          %v2938 = vld [vmem:[%s1108] sm:$0x1]
          %v2939 = vld [vmem:[%s981] sm:$0xf]
          %v2940 = vld [vmem:[%s981 + $0x4] sm:$0xf]
          %v2941 = vld [vmem:[%s981 + $0x8] sm:$0xf]
          %v2942 = vld [vmem:[%s981 + $0xc] sm:$0xf]
          %v2943 = vld [vmem:[%s981 + $0x10] sm:$0xf]
          %v2944 = vld [vmem:[%s981 + $0x14] sm:$0xf]
          %v2945 = vld [vmem:[%s981 + $0x18] sm:$0xf]
          %v2946 = vld [vmem:[%s981 + $0x1c] sm:$0xf]
          %v2947 = vld [vmem:[%s981 + $0x20] sm:$0xf]
          %v2948 = vld [vmem:[%s981 + $0x24] sm:$0xf]
          %v2949 = vld [vmem:[%s981 + $0x28] sm:$0xf]
          %v2950 = vld [vmem:[%s981 + $0x2c] sm:$0xf]
          %v2951 = vld [vmem:[%s981 + $0x30] sm:$0xf]
          %v2952 = vld [vmem:[%s981 + $0x34] sm:$0xf]
          %v2953 = vld [vmem:[%s981 + $0x38] sm:$0xf]
          %v2954 = vld [vmem:[%s981 + $0x3c] sm:$0xf]
          %v2955 = vld [vmem:[%s1111] sm:$0x1]
          %v2956 = vpack.c.bf16 %v2907, %v2906
          %v2957 = vpack.c.bf16 %v2909, %v2908
          %v2958 = vpack.c.bf16 %v2911, %v2910
          %v2959 = vpack.c.bf16 %v2913, %v2912
          %v2960 = vpack.c.bf16 %v2915, %v2914
          %v2961 = vpack.c.bf16 %v2917, %v2916
          %v2962 = vpack.c.bf16 %v2919, %v2918
          %v2963 = vpack.c.bf16 %v2921, %v2920
          %v2965 = vlaneseq
          %v2966 = vshrl.u32 %v2965, 7
          %v2967 = vsub.s32 0, %v2966
          %v2968 = vrot.slane %v2938, %v2967
          %v2986 = vunpack.c.l.b16 %v2922
          %v2987 = vunpack.c.l.b16 %v2923
          %v2988 = vunpack.c.l.b16 %v2924
          %v2989 = vunpack.c.l.b16 %v2925
          %v2990 = vunpack.c.l.b16 %v2926
          %v2991 = vunpack.c.l.b16 %v2927
          %v2992 = vunpack.c.l.b16 %v2928
          %v2993 = vunpack.c.l.b16 %v2929
          %v2994 = vunpack.c.l.b16 %v2930
          %v2995 = vunpack.c.l.b16 %v2931
          %v2996 = vunpack.c.l.b16 %v2932
          %v2997 = vunpack.c.l.b16 %v2933
          %v2998 = vunpack.c.l.b16 %v2934
          %v2999 = vunpack.c.l.b16 %v2935
          %v3000 = vunpack.c.l.b16 %v2936
          %v3001 = vunpack.c.l.b16 %v2937
          %v3002 = vpack.c.b16 %v2987, %v2986
          %v3003 = vpack.c.b16 %v2989, %v2988
          %v3004 = vpack.c.b16 %v2991, %v2990
          %v3005 = vpack.c.b16 %v2993, %v2992
          %v3006 = vpack.c.b16 %v2995, %v2994
          %v3007 = vpack.c.b16 %v2997, %v2996
          %v3008 = vpack.c.b16 %v2999, %v2998
          %v3009 = vpack.c.b16 %v3001, %v3000
          %3018 = vmatprep.subr.bf16.mxu0 0
          %3019 = vmatpush1.bf16.msra.mxu0 %v3002
          %3020 = vmatprep.subr.bf16.mxu0 0
          %3021 = vmatpush1.bf16.msra.mxu0 %v3003
          %3022 = vmatprep.subr.bf16.mxu0 0
          %3023 = vmatpush1.bf16.msra.mxu0 %v3004
          %3024 = vmatprep.subr.bf16.mxu0 0
          %3025 = vmatpush1.bf16.msra.mxu0 %v3005
          %3026 = vmatprep.subr.bf16.mxu0 0
          %3027 = vmatpush1.bf16.msra.mxu0 %v3006
          %3028 = vmatprep.subr.bf16.mxu0 0
          %3029 = vmatpush1.bf16.msra.mxu0 %v3007
          %3030 = vmatprep.subr.bf16.mxu0 0
          %3031 = vmatpush1.bf16.msra.mxu0 %v3008
          %3032 = vmatprep.subr.bf16.mxu0 0
          %3033 = vmatpush1.bf16.msra.mxu0 %v3009
          %3034 = vmatprep.subr.bf16.mxu0 0
          %3035 = vmatpush1.bf16.msra.mxu0 0
          %3036 = vmatprep.subr.bf16.mxu0 0
          %3037 = vmatpush1.bf16.msra.mxu0 0
          %3038 = vmatprep.subr.bf16.mxu0 0
          %3039 = vmatpush1.bf16.msra.mxu0 0
          %3040 = vmatprep.subr.bf16.mxu0 0
          %3041 = vmatpush1.bf16.msra.mxu0 0
          %3042 = vmatprep.subr.bf16.mxu0 0
          %3043 = vmatpush1.bf16.msra.mxu0 0
          %3044 = vmatprep.subr.bf16.mxu0 0
          %3045 = vmatpush1.bf16.msra.mxu0 0
          %3046 = vmatprep.subr.bf16.mxu0 0
          %3047 = vmatpush1.bf16.msra.mxu0 0
          %3048 = vmatprep.subr.bf16.mxu0 0
          %3049 = vmatpush1.bf16.msra.mxu0 0
          %3050 = vmatprep.mubr.bf16.mxu0 0
          %3051 = vmatmul.mubr.bf16.gmra.mrb[0].mxu0 %v2956
          %v3052 = vpop.f32.mrb[0].mxu0
          %v3053 = vadd.f32 %v2968, %v3052
          %v3054 = vpop.f32.mrb[0].mxu0
          %v3055 = vpop.f32.mrb[0].mxu0
          %v3056 = vadd.f32 %v2968, %v3055
          %v3057 = vpop.f32.mrb[0].mxu0
          %3058 = vmatprep.mubr.bf16.mxu0 0
          %3059 = vmatmul.mubr.bf16.gmra.mrb[0].mxu0 %v2957
          %v3060 = vpop.f32.mrb[0].mxu0
          %v3061 = vadd.f32 %v2968, %v3060
          %v3062 = vpop.f32.mrb[0].mxu0
          %v3063 = vpop.f32.mrb[0].mxu0
          %v3064 = vadd.f32 %v2968, %v3063
          %v3065 = vpop.f32.mrb[0].mxu0
          %3066 = vmatprep.mubr.bf16.mxu0 0
          %3067 = vmatmul.mubr.bf16.gmra.mrb[0].mxu0 %v2958
          %v3068 = vpop.f32.mrb[0].mxu0
          %v3069 = vadd.f32 %v2968, %v3068
          %v3070 = vpop.f32.mrb[0].mxu0
          %v3071 = vpop.f32.mrb[0].mxu0
          %v3072 = vadd.f32 %v2968, %v3071
          %v3073 = vpop.f32.mrb[0].mxu0
          %3074 = vmatprep.mubr.bf16.mxu0 0
          %3075 = vmatmul.mubr.bf16.gmra.mrb[0].mxu0 %v2959
          %v3076 = vpop.f32.mrb[0].mxu0
          %v3077 = vadd.f32 %v2968, %v3076
          %v3078 = vpop.f32.mrb[0].mxu0
          %v3079 = vpop.f32.mrb[0].mxu0
          %v3080 = vadd.f32 %v2968, %v3079
          %v3081 = vpop.f32.mrb[0].mxu0
          %3082 = vmatprep.mubr.bf16.mxu0 0
          %3083 = vmatmul.mubr.bf16.gmra.mrb[0].mxu0 %v2960
          %v3084 = vpop.f32.mrb[0].mxu0
          %v3085 = vadd.f32 %v2968, %v3084
          %v3086 = vpop.f32.mrb[0].mxu0
          %v3087 = vpop.f32.mrb[0].mxu0
          %v3088 = vadd.f32 %v2968, %v3087
          %v3089 = vpop.f32.mrb[0].mxu0
          %3090 = vmatprep.mubr.bf16.mxu0 0
          %3091 = vmatmul.mubr.bf16.gmra.mrb[0].mxu0 %v2961
          %v3092 = vpop.f32.mrb[0].mxu0
          %v3093 = vadd.f32 %v2968, %v3092
          %v3094 = vpop.f32.mrb[0].mxu0
          %v3095 = vpop.f32.mrb[0].mxu0
          %v3096 = vadd.f32 %v2968, %v3095
          %v3097 = vpop.f32.mrb[0].mxu0
          %3098 = vmatprep.mubr.bf16.mxu0 0
          %3099 = vmatmul.mubr.bf16.gmra.mrb[0].mxu0 %v2962
          %v3100 = vpop.f32.mrb[0].mxu0
          %v3101 = vadd.f32 %v2968, %v3100
          %v3102 = vpop.f32.mrb[0].mxu0
          %v3103 = vpop.f32.mrb[0].mxu0
          %v3104 = vadd.f32 %v2968, %v3103
          %v3105 = vpop.f32.mrb[0].mxu0
          %3106 = vmatprep.mubr.bf16.mxu0 0
          %3107 = vmatmul.mubr.bf16.gmra.mrb[0].mxu0 %v2963
          %v3108 = vpop.f32.mrb[0].mxu0
          %v3109 = vadd.f32 %v2968, %v3108
          %v3110 = vpop.f32.mrb[0].mxu0
          %v3111 = vpop.f32.mrb[0].mxu0
          %v3112 = vadd.f32 %v2968, %v3111
          %v3113 = vpop.f32.mrb[0].mxu0
          %3114 = vdwg.mxu0
          %v3115 = vmul.f32 %v3053, 0.5
          %v3116 = vmul.f32 %v3056, 0.5
          %v3117 = vmul.f32 %v3061, 0.5
          %v3118 = vmul.f32 %v3064, 0.5
          %v3119 = vmul.f32 %v3069, 0.5
          %v3120 = vmul.f32 %v3072, 0.5
          %v3121 = vmul.f32 %v3077, 0.5
          %v3122 = vmul.f32 %v3080, 0.5
          %v3123 = vmul.f32 %v3085, 0.5
          %v3124 = vmul.f32 %v3088, 0.5
          %v3125 = vmul.f32 %v3093, 0.5
          %v3126 = vmul.f32 %v3096, 0.5
          %v3127 = vmul.f32 %v3101, 0.5
          %v3128 = vmul.f32 %v3104, 0.5
          %v3129 = vmul.f32 %v3109, 0.5
          %v3130 = vmul.f32 %v3112, 0.5
          %v3131 = vmul.f32 %v3053, 0.70710677
          %v3132 = vmul.f32 %v3056, 0.70710677
          %v3133 = vmul.f32 %v3061, 0.70710677
          %v3134 = vmul.f32 %v3064, 0.70710677
          %v3135 = vmul.f32 %v3069, 0.70710677
          %v3136 = vmul.f32 %v3072, 0.70710677
          %v3137 = vmul.f32 %v3077, 0.70710677
          %v3138 = vmul.f32 %v3080, 0.70710677
          %v3139 = vmul.f32 %v3085, 0.70710677
          %v3140 = vmul.f32 %v3088, 0.70710677
          %v3141 = vmul.f32 %v3093, 0.70710677
          %v3142 = vmul.f32 %v3096, 0.70710677
          %v3143 = vmul.f32 %v3101, 0.70710677
          %v3144 = vmul.f32 %v3104, 0.70710677
          %v3145 = vmul.f32 %v3109, 0.70710677
          %v3146 = vmul.f32 %v3112, 0.70710677
          %v3147 = verf.f32.pop %v3131
          %v3148 = verf.f32.pop %v3132
          %v3149 = verf.f32.pop %v3133
          %v3150 = verf.f32.pop %v3134
          %v3151 = verf.f32.pop %v3135
          %v3152 = verf.f32.pop %v3136
          %v3153 = verf.f32.pop %v3137
          %v3154 = verf.f32.pop %v3138
          %v3155 = verf.f32.pop %v3139
          %v3156 = verf.f32.pop %v3140
          %v3157 = verf.f32.pop %v3141
          %v3158 = verf.f32.pop %v3142
          %v3159 = verf.f32.pop %v3143
          %v3160 = verf.f32.pop %v3144
          %v3161 = verf.f32.pop %v3145
          %v3162 = verf.f32.pop %v3146
          %v3163 = vadd.f32 %v3147, 1.0
          %v3164 = vadd.f32 %v3148, 1.0
          %v3165 = vadd.f32 %v3149, 1.0
          %v3166 = vadd.f32 %v3150, 1.0
          %v3167 = vadd.f32 %v3151, 1.0
          %v3168 = vadd.f32 %v3152, 1.0
          %v3169 = vadd.f32 %v3153, 1.0
          %v3170 = vadd.f32 %v3154, 1.0
          %v3171 = vadd.f32 %v3155, 1.0
          %v3172 = vadd.f32 %v3156, 1.0
          %v3173 = vadd.f32 %v3157, 1.0
          %v3174 = vadd.f32 %v3158, 1.0
          %v3175 = vadd.f32 %v3159, 1.0
          %v3176 = vadd.f32 %v3160, 1.0
          %v3177 = vadd.f32 %v3161, 1.0
          %v3178 = vadd.f32 %v3162, 1.0
          %v3179 = vmul.f32 %v3115, %v3163
          %v3180 = vmul.f32 %v3116, %v3164
          %v3181 = vmul.f32 %v3117, %v3165
          %v3182 = vmul.f32 %v3118, %v3166
          %v3183 = vmul.f32 %v3119, %v3167
          %v3184 = vmul.f32 %v3120, %v3168
          %v3185 = vmul.f32 %v3121, %v3169
          %v3186 = vmul.f32 %v3122, %v3170
          %v3187 = vmul.f32 %v3123, %v3171
          %v3188 = vmul.f32 %v3124, %v3172
          %v3189 = vmul.f32 %v3125, %v3173
          %v3190 = vmul.f32 %v3126, %v3174
          %v3191 = vmul.f32 %v3127, %v3175
          %v3192 = vmul.f32 %v3128, %v3176
          %v3193 = vmul.f32 %v3129, %v3177
          %v3194 = vmul.f32 %v3130, %v3178
          %v3195 = vpack.c.bf16 %v3180, %v3179
          %v3196 = vpack.c.bf16 %v3182, %v3181
          %v3197 = vpack.c.bf16 %v3184, %v3183
          %v3198 = vpack.c.bf16 %v3186, %v3185
          %v3199 = vpack.c.bf16 %v3188, %v3187
          %v3200 = vpack.c.bf16 %v3190, %v3189
          %v3201 = vpack.c.bf16 %v3192, %v3191
          %v3202 = vpack.c.bf16 %v3194, %v3193
          %v3204 = vlaneseq
          %v3205 = vshrl.u32 %v3204, 7
          %v3206 = vsub.s32 0, %v3205
          %v3207 = vrot.slane %v2955, %v3206
          %v3225 = vunpack.c.l.b16 %v2939
          %v3226 = vunpack.c.l.b16 %v2940
          %v3227 = vunpack.c.l.b16 %v2941
          %v3228 = vunpack.c.l.b16 %v2942
          %v3229 = vunpack.c.l.b16 %v2943
          %v3230 = vunpack.c.l.b16 %v2944
          %v3231 = vunpack.c.l.b16 %v2945
          %v3232 = vunpack.c.l.b16 %v2946
          %v3233 = vunpack.c.l.b16 %v2947
          %v3234 = vunpack.c.l.b16 %v2948
          %v3235 = vunpack.c.l.b16 %v2949
          %v3236 = vunpack.c.l.b16 %v2950
          %v3237 = vunpack.c.l.b16 %v2951
          %v3238 = vunpack.c.l.b16 %v2952
          %v3239 = vunpack.c.l.b16 %v2953
          %v3240 = vunpack.c.l.b16 %v2954
          %v3241 = vpack.c.b16 %v3226, %v3225
          %v3242 = vpack.c.b16 %v3228, %v3227
          %v3243 = vpack.c.b16 %v3230, %v3229
          %v3244 = vpack.c.b16 %v3232, %v3231
          %v3245 = vpack.c.b16 %v3234, %v3233
          %v3246 = vpack.c.b16 %v3236, %v3235
          %v3247 = vpack.c.b16 %v3238, %v3237
          %v3248 = vpack.c.b16 %v3240, %v3239
          %3257 = vmatprep.subr.bf16.mxu0 0
          %3258 = vmatpush1.bf16.msra.mxu0 %v3241
          %3259 = vmatprep.subr.bf16.mxu0 0
          %3260 = vmatpush1.bf16.msra.mxu0 %v3242
          %3261 = vmatprep.subr.bf16.mxu0 0
          %3262 = vmatpush1.bf16.msra.mxu0 %v3243
          %3263 = vmatprep.subr.bf16.mxu0 0
          %3264 = vmatpush1.bf16.msra.mxu0 %v3244
          %3265 = vmatprep.subr.bf16.mxu0 0
          %3266 = vmatpush1.bf16.msra.mxu0 %v3245
          %3267 = vmatprep.subr.bf16.mxu0 0
          %3268 = vmatpush1.bf16.msra.mxu0 %v3246
          %3269 = vmatprep.subr.bf16.mxu0 0
          %3270 = vmatpush1.bf16.msra.mxu0 %v3247
          %3271 = vmatprep.subr.bf16.mxu0 0
          %3272 = vmatpush1.bf16.msra.mxu0 %v3248
          %3273 = vmatprep.subr.bf16.mxu0 0
          %3274 = vmatpush1.bf16.msra.mxu0 0
          %3275 = vmatprep.subr.bf16.mxu0 0
          %3276 = vmatpush1.bf16.msra.mxu0 0
          %3277 = vmatprep.subr.bf16.mxu0 0
          %3278 = vmatpush1.bf16.msra.mxu0 0
          %3279 = vmatprep.subr.bf16.mxu0 0
          %3280 = vmatpush1.bf16.msra.mxu0 0
          %3281 = vmatprep.subr.bf16.mxu0 0
          %3282 = vmatpush1.bf16.msra.mxu0 0
          %3283 = vmatprep.subr.bf16.mxu0 0
          %3284 = vmatpush1.bf16.msra.mxu0 0
          %3285 = vmatprep.subr.bf16.mxu0 0
          %3286 = vmatpush1.bf16.msra.mxu0 0
          %3287 = vmatprep.subr.bf16.mxu0 0
          %3288 = vmatpush1.bf16.msra.mxu0 0
          %3289 = vmatprep.mubr.bf16.mxu0 0
          %3290 = vmatmul.mubr.bf16.gmra.mrb[0].mxu0 %v3195
          %v3291 = vpop.f32.mrb[0].mxu0
          %v3292 = vadd.f32 %v3207, %v3291
          %v3293 = vpop.f32.mrb[0].mxu0
          %v3294 = vpop.f32.mrb[0].mxu0
          %v3295 = vadd.f32 %v3207, %v3294
          %v3296 = vpop.f32.mrb[0].mxu0
          %3297 = vmatprep.mubr.bf16.mxu0 0
          %3298 = vmatmul.mubr.bf16.gmra.mrb[0].mxu0 %v3196
          %v3299 = vpop.f32.mrb[0].mxu0
          %v3300 = vadd.f32 %v3207, %v3299
          %v3301 = vpop.f32.mrb[0].mxu0
          %v3302 = vpop.f32.mrb[0].mxu0
          %v3303 = vadd.f32 %v3207, %v3302
          %v3304 = vpop.f32.mrb[0].mxu0
          %3305 = vmatprep.mubr.bf16.mxu0 0
          %3306 = vmatmul.mubr.bf16.gmra.mrb[0].mxu0 %v3197
          %v3307 = vpop.f32.mrb[0].mxu0
          %v3308 = vadd.f32 %v3207, %v3307
          %v3309 = vpop.f32.mrb[0].mxu0
          %v3310 = vpop.f32.mrb[0].mxu0
          %v3311 = vadd.f32 %v3207, %v3310
          %v3312 = vpop.f32.mrb[0].mxu0
          %3313 = vmatprep.mubr.bf16.mxu0 0
          %3314 = vmatmul.mubr.bf16.gmra.mrb[0].mxu0 %v3198
          %v3315 = vpop.f32.mrb[0].mxu0
          %v3316 = vadd.f32 %v3207, %v3315
          %v3317 = vpop.f32.mrb[0].mxu0
          %v3318 = vpop.f32.mrb[0].mxu0
          %v3319 = vadd.f32 %v3207, %v3318
          %v3320 = vpop.f32.mrb[0].mxu0
          %3321 = vmatprep.mubr.bf16.mxu0 0
          %3322 = vmatmul.mubr.bf16.gmra.mrb[0].mxu0 %v3199
          %v3323 = vpop.f32.mrb[0].mxu0
          %v3324 = vadd.f32 %v3207, %v3323
          %v3325 = vpop.f32.mrb[0].mxu0
          %v3326 = vpop.f32.mrb[0].mxu0
          %v3327 = vadd.f32 %v3207, %v3326
          %v3328 = vpop.f32.mrb[0].mxu0
          %3329 = vmatprep.mubr.bf16.mxu0 0
          %3330 = vmatmul.mubr.bf16.gmra.mrb[0].mxu0 %v3200
          %v3331 = vpop.f32.mrb[0].mxu0
          %v3332 = vadd.f32 %v3207, %v3331
          %v3333 = vpop.f32.mrb[0].mxu0
          %v3334 = vpop.f32.mrb[0].mxu0
          %v3335 = vadd.f32 %v3207, %v3334
          %v3336 = vpop.f32.mrb[0].mxu0
          %3337 = vmatprep.mubr.bf16.mxu0 0
          %3338 = vmatmul.mubr.bf16.gmra.mrb[0].mxu0 %v3201
          %v3339 = vpop.f32.mrb[0].mxu0
          %v3340 = vadd.f32 %v3207, %v3339
          %v3341 = vpop.f32.mrb[0].mxu0
          %v3342 = vpop.f32.mrb[0].mxu0
          %v3343 = vadd.f32 %v3207, %v3342
          %v3344 = vpop.f32.mrb[0].mxu0
          %3345 = vmatprep.mubr.bf16.mxu0 0
          %3346 = vmatmul.mubr.bf16.gmra.mrb[0].mxu0 %v3202
          %v3347 = vpop.f32.mrb[0].mxu0
          %v3348 = vadd.f32 %v3207, %v3347
          %v3349 = vpop.f32.mrb[0].mxu0
          %v3350 = vpop.f32.mrb[0].mxu0
          %v3351 = vadd.f32 %v3207, %v3350
          %v3352 = vpop.f32.mrb[0].mxu0
          %3353 = vdwg.mxu0
          %v3354 = vadd.f32 %v2667, %v3292
          %v3355 = vadd.f32 %v2668, %v3295
          %v3356 = vadd.f32 %v2669, %v3300
          %v3357 = vadd.f32 %v2670, %v3303
          %v3358 = vadd.f32 %v2671, %v3308
          %v3359 = vadd.f32 %v2672, %v3311
          %v3360 = vadd.f32 %v2673, %v3316
          %v3361 = vadd.f32 %v2674, %v3319
          %v3362 = vadd.f32 %v2675, %v3324
          %v3363 = vadd.f32 %v2676, %v3327
          %v3364 = vadd.f32 %v2677, %v3332
          %v3365 = vadd.f32 %v2678, %v3335
          %v3366 = vadd.f32 %v2679, %v3340
          %v3367 = vadd.f32 %v2680, %v3343
          %v3368 = vadd.f32 %v2681, %v3348
          %v3369 = vadd.f32 %v2682, %v3351
          %3370 = vst [vmem:[#allocation3] sm:$0xff] %v3354
          %3371 = vst [vmem:[#allocation3 + $0x8] sm:$0xff] %v3355
          %3372 = vst [vmem:[#allocation3 + $0x10] sm:$0xff] %v3356
          %3373 = vst [vmem:[#allocation3 + $0x18] sm:$0xff] %v3357
          %3374 = vst [vmem:[#allocation3 + $0x20] sm:$0xff] %v3358
          %3375 = vst [vmem:[#allocation3 + $0x28] sm:$0xff] %v3359
          %3376 = vst [vmem:[#allocation3 + $0x30] sm:$0xff] %v3360
          %3377 = vst [vmem:[#allocation3 + $0x38] sm:$0xff] %v3361
          %3378 = vst [vmem:[#allocation3 + $0x40] sm:$0xff] %v3362
          %3379 = vst [vmem:[#allocation3 + $0x48] sm:$0xff] %v3363
          %3380 = vst [vmem:[#allocation3 + $0x50] sm:$0xff] %v3364
          %3381 = vst [vmem:[#allocation3 + $0x58] sm:$0xff] %v3365
          %3382 = vst [vmem:[#allocation3 + $0x60] sm:$0xff] %v3366
          %3383 = vst [vmem:[#allocation3 + $0x68] sm:$0xff] %v3367
          %3384 = vst [vmem:[#allocation3 + $0x70] sm:$0xff] %v3368
          %3385 = vst [vmem:[#allocation3 + $0x78] sm:$0xff] %v3369
        $region172: #{tpu_custom_call.1} parent=123 // pred_fallthru
          _
        %p3386 = scmp.eq.s32.totalorder %s48, 1
        // Predicated region
        $region173: #{tpu_custom_call.1} parent=123 // pred_check
          %p3387 = pneg %p3386
        $region174: #{tpu_custom_call.1} parent=123 // pred_check_branch
          %3389 = sbr.rel (%p3387) target = $region176
        $region175: #{tpu_custom_call.1} parent=123 // pred_region
          %v3390 = vld [vmem:[#allocation2] sm:$0xff]
          %v3391 = vld [vmem:[#allocation2 + $0x8] sm:$0xff]
          %v3392 = vld [vmem:[#allocation2 + $0x10] sm:$0xff]
          %v3393 = vld [vmem:[#allocation2 + $0x18] sm:$0xff]
          %v3394 = vld [vmem:[#allocation2 + $0x20] sm:$0xff]
          %v3395 = vld [vmem:[#allocation2 + $0x28] sm:$0xff]
          %v3396 = vld [vmem:[#allocation2 + $0x30] sm:$0xff]
          %v3397 = vld [vmem:[#allocation2 + $0x38] sm:$0xff]
          %v3398 = vld [vmem:[#allocation2 + $0x40] sm:$0xff]
          %v3399 = vld [vmem:[#allocation2 + $0x48] sm:$0xff]
          %v3400 = vld [vmem:[#allocation2 + $0x50] sm:$0xff]
          %v3401 = vld [vmem:[#allocation2 + $0x58] sm:$0xff]
          %v3402 = vld [vmem:[#allocation2 + $0x60] sm:$0xff]
          %v3403 = vld [vmem:[#allocation2 + $0x68] sm:$0xff]
          %v3404 = vld [vmem:[#allocation2 + $0x70] sm:$0xff]
          %v3405 = vld [vmem:[#allocation2 + $0x78] sm:$0xff]
          %v3406 = vld [vmem:[%s19] sm:$0x1]
          %v3407 = vld [vmem:[%s20] sm:$0x1]
          %3408 = vadd.xlane.f32.xlu0 %v3390
          %v3409 = vpop.xlane.xlu0 %3408
          %3410 = vadd.xlane.f32.xlu0 %v3391
          %v3411 = vpop.xlane.xlu0 %3410
          %3412 = vadd.xlane.f32.xlu0 %v3392
          %v3413 = vpop.xlane.xlu0 %3412
          %3414 = vadd.xlane.f32.xlu0 %v3393
          %v3415 = vpop.xlane.xlu0 %3414
          %3416 = vadd.xlane.f32.xlu0 %v3394
          %v3417 = vpop.xlane.xlu0 %3416
          %3418 = vadd.xlane.f32.xlu0 %v3395
          %v3419 = vpop.xlane.xlu0 %3418
          %3420 = vadd.xlane.f32.xlu0 %v3396
          %v3421 = vpop.xlane.xlu0 %3420
          %3422 = vadd.xlane.f32.xlu0 %v3397
          %v3423 = vpop.xlane.xlu0 %3422
          %3424 = vadd.xlane.f32.xlu0 %v3398
          %v3425 = vpop.xlane.xlu0 %3424
          %3426 = vadd.xlane.f32.xlu0 %v3399
          %v3427 = vpop.xlane.xlu0 %3426
          %3428 = vadd.xlane.f32.xlu0 %v3400
          %v3429 = vpop.xlane.xlu0 %3428
          %3430 = vadd.xlane.f32.xlu0 %v3401
          %v3431 = vpop.xlane.xlu0 %3430
          %3432 = vadd.xlane.f32.xlu0 %v3402
          %v3433 = vpop.xlane.xlu0 %3432
          %3434 = vadd.xlane.f32.xlu0 %v3403
          %v3435 = vpop.xlane.xlu0 %3434
          %3436 = vadd.xlane.f32.xlu0 %v3404
          %v3437 = vpop.xlane.xlu0 %3436
          %3438 = vadd.xlane.f32.xlu0 %v3405
          %v3439 = vpop.xlane.xlu0 %3438
          %v3440 = vmul.f32 %v3409, 0.03125
          %v3441 = vmul.f32 %v3411, 0.03125
          %v3442 = vmul.f32 %v3413, 0.03125
          %v3443 = vmul.f32 %v3415, 0.03125
          %v3444 = vmul.f32 %v3417, 0.03125
          %v3445 = vmul.f32 %v3419, 0.03125
          %v3446 = vmul.f32 %v3421, 0.03125
          %v3447 = vmul.f32 %v3423, 0.03125
          %v3448 = vmul.f32 %v3425, 0.03125
          %v3449 = vmul.f32 %v3427, 0.03125
          %v3450 = vmul.f32 %v3429, 0.03125
          %v3451 = vmul.f32 %v3431, 0.03125
          %v3452 = vmul.f32 %v3433, 0.03125
          %v3453 = vmul.f32 %v3435, 0.03125
          %v3454 = vmul.f32 %v3437, 0.03125
          %v3455 = vmul.f32 %v3439, 0.03125
          %v3456 = vlaneseq
          %v3457 = vand.u32 %v3456, 127
          %vm3458 = vcmp.lt.s32.totalorder %v3457, 32
          %v3459 = vsub.f32 %v3390, %v3440
          %v3460 = vsub.f32 %v3391, %v3441
          %v3461 = vsub.f32 %v3392, %v3442
          %v3462 = vsub.f32 %v3393, %v3443
          %v3463 = vsub.f32 %v3394, %v3444
          %v3464 = vsub.f32 %v3395, %v3445
          %v3465 = vsub.f32 %v3396, %v3446
          %v3466 = vsub.f32 %v3397, %v3447
          %v3467 = vsub.f32 %v3398, %v3448
          %v3468 = vsub.f32 %v3399, %v3449
          %v3469 = vsub.f32 %v3400, %v3450
          %v3470 = vsub.f32 %v3401, %v3451
          %v3471 = vsub.f32 %v3402, %v3452
          %v3472 = vsub.f32 %v3403, %v3453
          %v3473 = vsub.f32 %v3404, %v3454
          %v3474 = vsub.f32 %v3405, %v3455
          %v3475 = vsel %vm3458, %v3459, 0.0
          %v3476 = vsel %vm3458, %v3460, 0.0
          %v3477 = vsel %vm3458, %v3461, 0.0
          %v3478 = vsel %vm3458, %v3462, 0.0
          %v3479 = vsel %vm3458, %v3463, 0.0
          %v3480 = vsel %vm3458, %v3464, 0.0
          %v3481 = vsel %vm3458, %v3465, 0.0
          %v3482 = vsel %vm3458, %v3466, 0.0
          %v3483 = vsel %vm3458, %v3467, 0.0
          %v3484 = vsel %vm3458, %v3468, 0.0
          %v3485 = vsel %vm3458, %v3469, 0.0
          %v3486 = vsel %vm3458, %v3470, 0.0
          %v3487 = vsel %vm3458, %v3471, 0.0
          %v3488 = vsel %vm3458, %v3472, 0.0
          %v3489 = vsel %vm3458, %v3473, 0.0
          %v3490 = vsel %vm3458, %v3474, 0.0
          %v3491 = vmul.f32 %v3475, %v3475
          %v3492 = vmul.f32 %v3476, %v3476
          %v3493 = vmul.f32 %v3477, %v3477
          %v3494 = vmul.f32 %v3478, %v3478
          %v3495 = vmul.f32 %v3479, %v3479
          %v3496 = vmul.f32 %v3480, %v3480
          %v3497 = vmul.f32 %v3481, %v3481
          %v3498 = vmul.f32 %v3482, %v3482
          %v3499 = vmul.f32 %v3483, %v3483
          %v3500 = vmul.f32 %v3484, %v3484
          %v3501 = vmul.f32 %v3485, %v3485
          %v3502 = vmul.f32 %v3486, %v3486
          %v3503 = vmul.f32 %v3487, %v3487
          %v3504 = vmul.f32 %v3488, %v3488
          %v3505 = vmul.f32 %v3489, %v3489
          %v3506 = vmul.f32 %v3490, %v3490
          %3507 = vadd.xlane.f32.xlu0 %v3491
          %v3508 = vpop.xlane.xlu0 %3507
          %3509 = vadd.xlane.f32.xlu0 %v3492
          %v3510 = vpop.xlane.xlu0 %3509
          %3511 = vadd.xlane.f32.xlu0 %v3493
          %v3512 = vpop.xlane.xlu0 %3511
          %3513 = vadd.xlane.f32.xlu0 %v3494
          %v3514 = vpop.xlane.xlu0 %3513
          %3515 = vadd.xlane.f32.xlu0 %v3495
          %v3516 = vpop.xlane.xlu0 %3515
          %3517 = vadd.xlane.f32.xlu0 %v3496
          %v3518 = vpop.xlane.xlu0 %3517
          %3519 = vadd.xlane.f32.xlu0 %v3497
          %v3520 = vpop.xlane.xlu0 %3519
          %3521 = vadd.xlane.f32.xlu0 %v3498
          %v3522 = vpop.xlane.xlu0 %3521
          %3523 = vadd.xlane.f32.xlu0 %v3499
          %v3524 = vpop.xlane.xlu0 %3523
          %3525 = vadd.xlane.f32.xlu0 %v3500
          %v3526 = vpop.xlane.xlu0 %3525
          %3527 = vadd.xlane.f32.xlu0 %v3501
          %v3528 = vpop.xlane.xlu0 %3527
          %3529 = vadd.xlane.f32.xlu0 %v3502
          %v3530 = vpop.xlane.xlu0 %3529
          %3531 = vadd.xlane.f32.xlu0 %v3503
          %v3532 = vpop.xlane.xlu0 %3531
          %3533 = vadd.xlane.f32.xlu0 %v3504
          %v3534 = vpop.xlane.xlu0 %3533
          %3535 = vadd.xlane.f32.xlu0 %v3505
          %v3536 = vpop.xlane.xlu0 %3535
          %3537 = vadd.xlane.f32.xlu0 %v3506
          %v3538 = vpop.xlane.xlu0 %3537
          %v3539 = vmul.f32 %v3508, 0.03125
          %v3540 = vmul.f32 %v3510, 0.03125
          %v3541 = vmul.f32 %v3512, 0.03125
          %v3542 = vmul.f32 %v3514, 0.03125
          %v3543 = vmul.f32 %v3516, 0.03125
          %v3544 = vmul.f32 %v3518, 0.03125
          %v3545 = vmul.f32 %v3520, 0.03125
          %v3546 = vmul.f32 %v3522, 0.03125
          %v3547 = vmul.f32 %v3524, 0.03125
          %v3548 = vmul.f32 %v3526, 0.03125
          %v3549 = vmul.f32 %v3528, 0.03125
          %v3550 = vmul.f32 %v3530, 0.03125
          %v3551 = vmul.f32 %v3532, 0.03125
          %v3552 = vmul.f32 %v3534, 0.03125
          %v3553 = vmul.f32 %v3536, 0.03125
          %v3554 = vmul.f32 %v3538, 0.03125
          %v3555 = vadd.f32 %v3539, 1e-05
          %v3556 = vadd.f32 %v3540, 1e-05
          %v3557 = vadd.f32 %v3541, 1e-05
          %v3558 = vadd.f32 %v3542, 1e-05
          %v3559 = vadd.f32 %v3543, 1e-05
          %v3560 = vadd.f32 %v3544, 1e-05
          %v3561 = vadd.f32 %v3545, 1e-05
          %v3562 = vadd.f32 %v3546, 1e-05
          %v3563 = vadd.f32 %v3547, 1e-05
          %v3564 = vadd.f32 %v3548, 1e-05
          %v3565 = vadd.f32 %v3549, 1e-05
          %v3566 = vadd.f32 %v3550, 1e-05
          %v3567 = vadd.f32 %v3551, 1e-05
          %v3568 = vadd.f32 %v3552, 1e-05
          %v3569 = vadd.f32 %v3553, 1e-05
          %v3570 = vadd.f32 %v3554, 1e-05
          %v3571 = vrsqrt.pop %v3555
          %v3572 = vrsqrt.pop %v3556
          %v3573 = vrsqrt.pop %v3557
          %v3574 = vrsqrt.pop %v3558
          %v3575 = vrsqrt.pop %v3559
          %v3576 = vrsqrt.pop %v3560
          %v3577 = vrsqrt.pop %v3561
          %v3578 = vrsqrt.pop %v3562
          %v3579 = vrsqrt.pop %v3563
          %v3580 = vrsqrt.pop %v3564
          %v3581 = vrsqrt.pop %v3565
          %v3582 = vrsqrt.pop %v3566
          %v3583 = vrsqrt.pop %v3567
          %v3584 = vrsqrt.pop %v3568
          %v3585 = vrsqrt.pop %v3569
          %v3586 = vrsqrt.pop %v3570
          %v3587 = vmul.f32 %v3475, %v3571
          %v3588 = vmul.f32 %v3476, %v3572
          %v3589 = vmul.f32 %v3477, %v3573
          %v3590 = vmul.f32 %v3478, %v3574
          %v3591 = vmul.f32 %v3479, %v3575
          %v3592 = vmul.f32 %v3480, %v3576
          %v3593 = vmul.f32 %v3481, %v3577
          %v3594 = vmul.f32 %v3482, %v3578
          %v3595 = vmul.f32 %v3483, %v3579
          %v3596 = vmul.f32 %v3484, %v3580
          %v3597 = vmul.f32 %v3485, %v3581
          %v3598 = vmul.f32 %v3486, %v3582
          %v3599 = vmul.f32 %v3487, %v3583
          %v3600 = vmul.f32 %v3488, %v3584
          %v3601 = vmul.f32 %v3489, %v3585
          %v3602 = vmul.f32 %v3490, %v3586
          %v3604 = vlaneseq
          %v3605 = vshrl.u32 %v3604, 7
          %v3606 = vsub.s32 0, %v3605
          %v3607 = vrot.slane %v3406, %v3606
          %v3609 = vmul.f32 %v3587, %v3607
          %v3610 = vmul.f32 %v3588, %v3607
          %v3611 = vmul.f32 %v3589, %v3607
          %v3612 = vmul.f32 %v3590, %v3607
          %v3613 = vmul.f32 %v3591, %v3607
          %v3614 = vmul.f32 %v3592, %v3607
          %v3615 = vmul.f32 %v3593, %v3607
          %v3616 = vmul.f32 %v3594, %v3607
          %v3617 = vmul.f32 %v3595, %v3607
          %v3618 = vmul.f32 %v3596, %v3607
          %v3619 = vmul.f32 %v3597, %v3607
          %v3620 = vmul.f32 %v3598, %v3607
          %v3621 = vmul.f32 %v3599, %v3607
          %v3622 = vmul.f32 %v3600, %v3607
          %v3623 = vmul.f32 %v3601, %v3607
          %v3624 = vmul.f32 %v3602, %v3607
          %v3626 = vlaneseq
          %v3627 = vshrl.u32 %v3626, 7
          %v3628 = vsub.s32 0, %v3627
          %v3629 = vrot.slane %v3407, %v3628
          %v3631 = vadd.f32 %v3609, %v3629
          %v3632 = vadd.f32 %v3610, %v3629
          %v3633 = vadd.f32 %v3611, %v3629
          %v3634 = vadd.f32 %v3612, %v3629
          %v3635 = vadd.f32 %v3613, %v3629
          %v3636 = vadd.f32 %v3614, %v3629
          %v3637 = vadd.f32 %v3615, %v3629
          %v3638 = vadd.f32 %v3616, %v3629
          %v3639 = vadd.f32 %v3617, %v3629
          %v3640 = vadd.f32 %v3618, %v3629
          %v3641 = vadd.f32 %v3619, %v3629
          %v3642 = vadd.f32 %v3620, %v3629
          %v3643 = vadd.f32 %v3621, %v3629
          %v3644 = vadd.f32 %v3622, %v3629
          %v3645 = vadd.f32 %v3623, %v3629
          %v3646 = vadd.f32 %v3624, %v3629
          %v3647 = vld [vmem:[#allocation3] sm:$0xff]
          %v3648 = vld [vmem:[#allocation3 + $0x8] sm:$0xff]
          %v3649 = vld [vmem:[#allocation3 + $0x10] sm:$0xff]
          %v3650 = vld [vmem:[#allocation3 + $0x18] sm:$0xff]
          %v3651 = vld [vmem:[#allocation3 + $0x20] sm:$0xff]
          %v3652 = vld [vmem:[#allocation3 + $0x28] sm:$0xff]
          %v3653 = vld [vmem:[#allocation3 + $0x30] sm:$0xff]
          %v3654 = vld [vmem:[#allocation3 + $0x38] sm:$0xff]
          %v3655 = vld [vmem:[#allocation3 + $0x40] sm:$0xff]
          %v3656 = vld [vmem:[#allocation3 + $0x48] sm:$0xff]
          %v3657 = vld [vmem:[#allocation3 + $0x50] sm:$0xff]
          %v3658 = vld [vmem:[#allocation3 + $0x58] sm:$0xff]
          %v3659 = vld [vmem:[#allocation3 + $0x60] sm:$0xff]
          %v3660 = vld [vmem:[#allocation3 + $0x68] sm:$0xff]
          %v3661 = vld [vmem:[#allocation3 + $0x70] sm:$0xff]
          %v3662 = vld [vmem:[#allocation3 + $0x78] sm:$0xff]
          %v3663 = vld [vmem:[%s21] sm:$0x1]
          %v3664 = vld [vmem:[%s22] sm:$0x1]
          %3665 = vadd.xlane.f32.xlu0 %v3647
          %v3666 = vpop.xlane.xlu0 %3665
          %3667 = vadd.xlane.f32.xlu0 %v3648
          %v3668 = vpop.xlane.xlu0 %3667
          %3669 = vadd.xlane.f32.xlu0 %v3649
          %v3670 = vpop.xlane.xlu0 %3669
          %3671 = vadd.xlane.f32.xlu0 %v3650
          %v3672 = vpop.xlane.xlu0 %3671
          %3673 = vadd.xlane.f32.xlu0 %v3651
          %v3674 = vpop.xlane.xlu0 %3673
          %3675 = vadd.xlane.f32.xlu0 %v3652
          %v3676 = vpop.xlane.xlu0 %3675
          %3677 = vadd.xlane.f32.xlu0 %v3653
          %v3678 = vpop.xlane.xlu0 %3677
          %3679 = vadd.xlane.f32.xlu0 %v3654
          %v3680 = vpop.xlane.xlu0 %3679
          %3681 = vadd.xlane.f32.xlu0 %v3655
          %v3682 = vpop.xlane.xlu0 %3681
          %3683 = vadd.xlane.f32.xlu0 %v3656
          %v3684 = vpop.xlane.xlu0 %3683
          %3685 = vadd.xlane.f32.xlu0 %v3657
          %v3686 = vpop.xlane.xlu0 %3685
          %3687 = vadd.xlane.f32.xlu0 %v3658
          %v3688 = vpop.xlane.xlu0 %3687
          %3689 = vadd.xlane.f32.xlu0 %v3659
          %v3690 = vpop.xlane.xlu0 %3689
          %3691 = vadd.xlane.f32.xlu0 %v3660
          %v3692 = vpop.xlane.xlu0 %3691
          %3693 = vadd.xlane.f32.xlu0 %v3661
          %v3694 = vpop.xlane.xlu0 %3693
          %3695 = vadd.xlane.f32.xlu0 %v3662
          %v3696 = vpop.xlane.xlu0 %3695
          %v3697 = vmul.f32 %v3666, 0.041666668
          %v3698 = vmul.f32 %v3668, 0.041666668
          %v3699 = vmul.f32 %v3670, 0.041666668
          %v3700 = vmul.f32 %v3672, 0.041666668
          %v3701 = vmul.f32 %v3674, 0.041666668
          %v3702 = vmul.f32 %v3676, 0.041666668
          %v3703 = vmul.f32 %v3678, 0.041666668
          %v3704 = vmul.f32 %v3680, 0.041666668
          %v3705 = vmul.f32 %v3682, 0.041666668
          %v3706 = vmul.f32 %v3684, 0.041666668
          %v3707 = vmul.f32 %v3686, 0.041666668
          %v3708 = vmul.f32 %v3688, 0.041666668
          %v3709 = vmul.f32 %v3690, 0.041666668
          %v3710 = vmul.f32 %v3692, 0.041666668
          %v3711 = vmul.f32 %v3694, 0.041666668
          %v3712 = vmul.f32 %v3696, 0.041666668
          %vm3713 = vcmp.lt.s32.totalorder %v3457, 24
          %v3714 = vsub.f32 %v3647, %v3697
          %v3715 = vsub.f32 %v3648, %v3698
          %v3716 = vsub.f32 %v3649, %v3699
          %v3717 = vsub.f32 %v3650, %v3700
          %v3718 = vsub.f32 %v3651, %v3701
          %v3719 = vsub.f32 %v3652, %v3702
          %v3720 = vsub.f32 %v3653, %v3703
          %v3721 = vsub.f32 %v3654, %v3704
          %v3722 = vsub.f32 %v3655, %v3705
          %v3723 = vsub.f32 %v3656, %v3706
          %v3724 = vsub.f32 %v3657, %v3707
          %v3725 = vsub.f32 %v3658, %v3708
          %v3726 = vsub.f32 %v3659, %v3709
          %v3727 = vsub.f32 %v3660, %v3710
          %v3728 = vsub.f32 %v3661, %v3711
          %v3729 = vsub.f32 %v3662, %v3712
          %v3730 = vsel %vm3713, %v3714, 0.0
          %v3731 = vsel %vm3713, %v3715, 0.0
          %v3732 = vsel %vm3713, %v3716, 0.0
          %v3733 = vsel %vm3713, %v3717, 0.0
          %v3734 = vsel %vm3713, %v3718, 0.0
          %v3735 = vsel %vm3713, %v3719, 0.0
          %v3736 = vsel %vm3713, %v3720, 0.0
          %v3737 = vsel %vm3713, %v3721, 0.0
          %v3738 = vsel %vm3713, %v3722, 0.0
          %v3739 = vsel %vm3713, %v3723, 0.0
          %v3740 = vsel %vm3713, %v3724, 0.0
          %v3741 = vsel %vm3713, %v3725, 0.0
          %v3742 = vsel %vm3713, %v3726, 0.0
          %v3743 = vsel %vm3713, %v3727, 0.0
          %v3744 = vsel %vm3713, %v3728, 0.0
          %v3745 = vsel %vm3713, %v3729, 0.0
          %v3746 = vmul.f32 %v3730, %v3730
          %v3747 = vmul.f32 %v3731, %v3731
          %v3748 = vmul.f32 %v3732, %v3732
          %v3749 = vmul.f32 %v3733, %v3733
          %v3750 = vmul.f32 %v3734, %v3734
          %v3751 = vmul.f32 %v3735, %v3735
          %v3752 = vmul.f32 %v3736, %v3736
          %v3753 = vmul.f32 %v3737, %v3737
          %v3754 = vmul.f32 %v3738, %v3738
          %v3755 = vmul.f32 %v3739, %v3739
          %v3756 = vmul.f32 %v3740, %v3740
          %v3757 = vmul.f32 %v3741, %v3741
          %v3758 = vmul.f32 %v3742, %v3742
          %v3759 = vmul.f32 %v3743, %v3743
          %v3760 = vmul.f32 %v3744, %v3744
          %v3761 = vmul.f32 %v3745, %v3745
          %3762 = vadd.xlane.f32.xlu0 %v3746
          %v3763 = vpop.xlane.xlu0 %3762
          %3764 = vadd.xlane.f32.xlu0 %v3747
          %v3765 = vpop.xlane.xlu0 %3764
          %3766 = vadd.xlane.f32.xlu0 %v3748
          %v3767 = vpop.xlane.xlu0 %3766
          %3768 = vadd.xlane.f32.xlu0 %v3749
          %v3769 = vpop.xlane.xlu0 %3768
          %3770 = vadd.xlane.f32.xlu0 %v3750
          %v3771 = vpop.xlane.xlu0 %3770
          %3772 = vadd.xlane.f32.xlu0 %v3751
          %v3773 = vpop.xlane.xlu0 %3772
          %3774 = vadd.xlane.f32.xlu0 %v3752
          %v3775 = vpop.xlane.xlu0 %3774
          %3776 = vadd.xlane.f32.xlu0 %v3753
          %v3777 = vpop.xlane.xlu0 %3776
          %3778 = vadd.xlane.f32.xlu0 %v3754
          %v3779 = vpop.xlane.xlu0 %3778
          %3780 = vadd.xlane.f32.xlu0 %v3755
          %v3781 = vpop.xlane.xlu0 %3780
          %3782 = vadd.xlane.f32.xlu0 %v3756
          %v3783 = vpop.xlane.xlu0 %3782
          %3784 = vadd.xlane.f32.xlu0 %v3757
          %v3785 = vpop.xlane.xlu0 %3784
          %3786 = vadd.xlane.f32.xlu0 %v3758
          %v3787 = vpop.xlane.xlu0 %3786
          %3788 = vadd.xlane.f32.xlu0 %v3759
          %v3789 = vpop.xlane.xlu0 %3788
          %3790 = vadd.xlane.f32.xlu0 %v3760
          %v3791 = vpop.xlane.xlu0 %3790
          %3792 = vadd.xlane.f32.xlu0 %v3761
          %v3793 = vpop.xlane.xlu0 %3792
          %v3794 = vmul.f32 %v3763, 0.041666668
          %v3795 = vmul.f32 %v3765, 0.041666668
          %v3796 = vmul.f32 %v3767, 0.041666668
          %v3797 = vmul.f32 %v3769, 0.041666668
          %v3798 = vmul.f32 %v3771, 0.041666668
          %v3799 = vmul.f32 %v3773, 0.041666668
          %v3800 = vmul.f32 %v3775, 0.041666668
          %v3801 = vmul.f32 %v3777, 0.041666668
          %v3802 = vmul.f32 %v3779, 0.041666668
          %v3803 = vmul.f32 %v3781, 0.041666668
          %v3804 = vmul.f32 %v3783, 0.041666668
          %v3805 = vmul.f32 %v3785, 0.041666668
          %v3806 = vmul.f32 %v3787, 0.041666668
          %v3807 = vmul.f32 %v3789, 0.041666668
          %v3808 = vmul.f32 %v3791, 0.041666668
          %v3809 = vmul.f32 %v3793, 0.041666668
          %v3810 = vadd.f32 %v3794, 1e-05
          %v3811 = vadd.f32 %v3795, 1e-05
          %v3812 = vadd.f32 %v3796, 1e-05
          %v3813 = vadd.f32 %v3797, 1e-05
          %v3814 = vadd.f32 %v3798, 1e-05
          %v3815 = vadd.f32 %v3799, 1e-05
          %v3816 = vadd.f32 %v3800, 1e-05
          %v3817 = vadd.f32 %v3801, 1e-05
          %v3818 = vadd.f32 %v3802, 1e-05
          %v3819 = vadd.f32 %v3803, 1e-05
          %v3820 = vadd.f32 %v3804, 1e-05
          %v3821 = vadd.f32 %v3805, 1e-05
          %v3822 = vadd.f32 %v3806, 1e-05
          %v3823 = vadd.f32 %v3807, 1e-05
          %v3824 = vadd.f32 %v3808, 1e-05
          %v3825 = vadd.f32 %v3809, 1e-05
          %v3826 = vrsqrt.pop %v3810
          %v3827 = vrsqrt.pop %v3811
          %v3828 = vrsqrt.pop %v3812
          %v3829 = vrsqrt.pop %v3813
          %v3830 = vrsqrt.pop %v3814
          %v3831 = vrsqrt.pop %v3815
          %v3832 = vrsqrt.pop %v3816
          %v3833 = vrsqrt.pop %v3817
          %v3834 = vrsqrt.pop %v3818
          %v3835 = vrsqrt.pop %v3819
          %v3836 = vrsqrt.pop %v3820
          %v3837 = vrsqrt.pop %v3821
          %v3838 = vrsqrt.pop %v3822
          %v3839 = vrsqrt.pop %v3823
          %v3840 = vrsqrt.pop %v3824
          %v3841 = vrsqrt.pop %v3825
          %v3842 = vmul.f32 %v3730, %v3826
          %v3843 = vmul.f32 %v3731, %v3827
          %v3844 = vmul.f32 %v3732, %v3828
          %v3845 = vmul.f32 %v3733, %v3829
          %v3846 = vmul.f32 %v3734, %v3830
          %v3847 = vmul.f32 %v3735, %v3831
          %v3848 = vmul.f32 %v3736, %v3832
          %v3849 = vmul.f32 %v3737, %v3833
          %v3850 = vmul.f32 %v3738, %v3834
          %v3851 = vmul.f32 %v3739, %v3835
          %v3852 = vmul.f32 %v3740, %v3836
          %v3853 = vmul.f32 %v3741, %v3837
          %v3854 = vmul.f32 %v3742, %v3838
          %v3855 = vmul.f32 %v3743, %v3839
          %v3856 = vmul.f32 %v3744, %v3840
          %v3857 = vmul.f32 %v3745, %v3841
          %v3859 = vlaneseq
          %v3860 = vshrl.u32 %v3859, 7
          %v3861 = vsub.s32 0, %v3860
          %v3862 = vrot.slane %v3663, %v3861
          %v3864 = vmul.f32 %v3842, %v3862
          %v3865 = vmul.f32 %v3843, %v3862
          %v3866 = vmul.f32 %v3844, %v3862
          %v3867 = vmul.f32 %v3845, %v3862
          %v3868 = vmul.f32 %v3846, %v3862
          %v3869 = vmul.f32 %v3847, %v3862
          %v3870 = vmul.f32 %v3848, %v3862
          %v3871 = vmul.f32 %v3849, %v3862
          %v3872 = vmul.f32 %v3850, %v3862
          %v3873 = vmul.f32 %v3851, %v3862
          %v3874 = vmul.f32 %v3852, %v3862
          %v3875 = vmul.f32 %v3853, %v3862
          %v3876 = vmul.f32 %v3854, %v3862
          %v3877 = vmul.f32 %v3855, %v3862
          %v3878 = vmul.f32 %v3856, %v3862
          %v3879 = vmul.f32 %v3857, %v3862
          %v3881 = vlaneseq
          %v3882 = vshrl.u32 %v3881, 7
          %v3883 = vsub.s32 0, %v3882
          %v3884 = vrot.slane %v3664, %v3883
          %v3886 = vadd.f32 %v3864, %v3884
          %v3887 = vadd.f32 %v3865, %v3884
          %v3888 = vadd.f32 %v3866, %v3884
          %v3889 = vadd.f32 %v3867, %v3884
          %v3890 = vadd.f32 %v3868, %v3884
          %v3891 = vadd.f32 %v3869, %v3884
          %v3892 = vadd.f32 %v3870, %v3884
          %v3893 = vadd.f32 %v3871, %v3884
          %v3894 = vadd.f32 %v3872, %v3884
          %v3895 = vadd.f32 %v3873, %v3884
          %v3896 = vadd.f32 %v3874, %v3884
          %v3897 = vadd.f32 %v3875, %v3884
          %v3898 = vadd.f32 %v3876, %v3884
          %v3899 = vadd.f32 %v3877, %v3884
          %v3900 = vadd.f32 %v3878, %v3884
          %v3901 = vadd.f32 %v3879, %v3884
          %v3902 = vpack.c.bf16 %v3632, %v3631
          %v3903 = vpack.c.bf16 %v3634, %v3633
          %v3904 = vpack.c.bf16 %v3636, %v3635
          %v3905 = vpack.c.bf16 %v3638, %v3637
          %v3906 = vpack.c.bf16 %v3640, %v3639
          %v3907 = vpack.c.bf16 %v3642, %v3641
          %v3908 = vpack.c.bf16 %v3644, %v3643
          %v3909 = vpack.c.bf16 %v3646, %v3645
          %v3910 = vld [vmem:[%s23] sm:$0xf]
          %v3911 = vld [vmem:[%s23 + $0x4] sm:$0xf]
          %v3912 = vld [vmem:[%s23 + $0x8] sm:$0xf]
          %v3913 = vld [vmem:[%s23 + $0xc] sm:$0xf]
          %v3914 = vld [vmem:[%s23 + $0x10] sm:$0xf]
          %v3915 = vld [vmem:[%s23 + $0x14] sm:$0xf]
          %v3916 = vld [vmem:[%s23 + $0x18] sm:$0xf]
          %v3917 = vld [vmem:[%s23 + $0x1c] sm:$0xf]
          %v3918 = vld [vmem:[%s23 + $0x20] sm:$0xf]
          %v3919 = vld [vmem:[%s23 + $0x24] sm:$0xf]
          %v3920 = vld [vmem:[%s23 + $0x28] sm:$0xf]
          %v3921 = vld [vmem:[%s23 + $0x2c] sm:$0xf]
          %v3922 = vld [vmem:[%s23 + $0x30] sm:$0xf]
          %v3923 = vld [vmem:[%s23 + $0x34] sm:$0xf]
          %v3924 = vld [vmem:[%s23 + $0x38] sm:$0xf]
          %v3925 = vld [vmem:[%s23 + $0x3c] sm:$0xf]
          %v3926 = vpack.c.bf16 %v3887, %v3886
          %v3927 = vpack.c.bf16 %v3889, %v3888
          %v3928 = vpack.c.bf16 %v3891, %v3890
          %v3929 = vpack.c.bf16 %v3893, %v3892
          %v3930 = vpack.c.bf16 %v3895, %v3894
          %v3931 = vpack.c.bf16 %v3897, %v3896
          %v3932 = vpack.c.bf16 %v3899, %v3898
          %v3933 = vpack.c.bf16 %v3901, %v3900
          %v3934 = vld [vmem:[#allocation19] sm:$0xf]
          %v3935 = vld [vmem:[#allocation19 + $0x4] sm:$0xf]
          %v3936 = vld [vmem:[#allocation19 + $0x8] sm:$0xf]
          %v3937 = vld [vmem:[#allocation19 + $0xc] sm:$0xf]
          %v3938 = vld [vmem:[#allocation19 + $0x10] sm:$0xf]
          %v3939 = vld [vmem:[#allocation19 + $0x14] sm:$0xf]
          %v3940 = vld [vmem:[#allocation19 + $0x18] sm:$0xf]
          %v3941 = vld [vmem:[#allocation19 + $0x1c] sm:$0xf]
          %v3942 = vld [vmem:[#allocation19 + $0x20] sm:$0xf]
          %v3943 = vld [vmem:[#allocation19 + $0x24] sm:$0xf]
          %v3944 = vld [vmem:[#allocation19 + $0x28] sm:$0xf]
          %v3945 = vld [vmem:[#allocation19 + $0x2c] sm:$0xf]
          %v3946 = vld [vmem:[#allocation19 + $0x30] sm:$0xf]
          %v3947 = vld [vmem:[#allocation19 + $0x34] sm:$0xf]
          %v3948 = vld [vmem:[#allocation19 + $0x38] sm:$0xf]
          %v3949 = vld [vmem:[#allocation19 + $0x3c] sm:$0xf]
          %v3966 = vunpack.c.l.b16 %v3934
          %v3967 = vunpack.c.l.b16 %v3935
          %v3968 = vunpack.c.l.b16 %v3936
          %v3969 = vunpack.c.l.b16 %v3937
          %v3970 = vunpack.c.l.b16 %v3938
          %v3971 = vunpack.c.l.b16 %v3939
          %v3972 = vunpack.c.l.b16 %v3940
          %v3973 = vunpack.c.l.b16 %v3941
          %v3974 = vunpack.c.l.b16 %v3942
          %v3975 = vunpack.c.l.b16 %v3943
          %v3976 = vunpack.c.l.b16 %v3944
          %v3977 = vunpack.c.l.b16 %v3945
          %v3978 = vunpack.c.l.b16 %v3946
          %v3979 = vunpack.c.l.b16 %v3947
          %v3980 = vunpack.c.l.b16 %v3948
          %v3981 = vunpack.c.l.b16 %v3949
          %v3982 = vpack.c.b16 %v3967, %v3966
          %v3983 = vpack.c.b16 %v3969, %v3968
          %v3984 = vpack.c.b16 %v3971, %v3970
          %v3985 = vpack.c.b16 %v3973, %v3972
          %v3986 = vpack.c.b16 %v3975, %v3974
          %v3987 = vpack.c.b16 %v3977, %v3976
          %v3988 = vpack.c.b16 %v3979, %v3978
          %v3989 = vpack.c.b16 %v3981, %v3980
          %3998 = vmatprep.subr.bf16.mxu0 0
          %3999 = vmatpush1.bf16.msra.mxu0 %v3982
          %4000 = vmatprep.subr.bf16.mxu0 0
          %4001 = vmatpush1.bf16.msra.mxu0 %v3983
          %4002 = vmatprep.subr.bf16.mxu0 0
          %4003 = vmatpush1.bf16.msra.mxu0 %v3984
          %4004 = vmatprep.subr.bf16.mxu0 0
          %4005 = vmatpush1.bf16.msra.mxu0 %v3985
          %4006 = vmatprep.subr.bf16.mxu0 0
          %4007 = vmatpush1.bf16.msra.mxu0 %v3986
          %4008 = vmatprep.subr.bf16.mxu0 0
          %4009 = vmatpush1.bf16.msra.mxu0 %v3987
          %4010 = vmatprep.subr.bf16.mxu0 0
          %4011 = vmatpush1.bf16.msra.mxu0 %v3988
          %4012 = vmatprep.subr.bf16.mxu0 0
          %4013 = vmatpush1.bf16.msra.mxu0 %v3989
          %4014 = vmatprep.subr.bf16.mxu0 0
          %4015 = vmatpush1.bf16.msra.mxu0 0
          %4016 = vmatprep.subr.bf16.mxu0 0
          %4017 = vmatpush1.bf16.msra.mxu0 0
          %4018 = vmatprep.subr.bf16.mxu0 0
          %4019 = vmatpush1.bf16.msra.mxu0 0
          %4020 = vmatprep.subr.bf16.mxu0 0
          %4021 = vmatpush1.bf16.msra.mxu0 0
          %4022 = vmatprep.subr.bf16.mxu0 0
          %4023 = vmatpush1.bf16.msra.mxu0 0
          %4024 = vmatprep.subr.bf16.mxu0 0
          %4025 = vmatpush1.bf16.msra.mxu0 0
          %4026 = vmatprep.subr.bf16.mxu0 0
          %4027 = vmatpush1.bf16.msra.mxu0 0
          %4028 = vmatprep.subr.bf16.mxu0 0
          %4029 = vmatpush1.bf16.msra.mxu0 0
          %4030 = vmatprep.mubr.bf16.mxu0 0
          %4031 = vmatmul.mubr.bf16.gmra.mrb[0].mxu0 %v3926
          %v4032 = vpop.f32.mrb[0].mxu0
          %v4033 = vadd.f32 0.0, %v4032
          %v4034 = vpop.f32.mrb[0].mxu0
          %v4035 = vpop.f32.mrb[0].mxu0
          %v4036 = vadd.f32 0.0, %v4035
          %v4037 = vpop.f32.mrb[0].mxu0
          %4038 = vmatprep.mubr.bf16.mxu0 0
          %4039 = vmatmul.mubr.bf16.gmra.mrb[0].mxu0 %v3927
          %v4040 = vpop.f32.mrb[0].mxu0
          %v4041 = vadd.f32 0.0, %v4040
          %v4042 = vpop.f32.mrb[0].mxu0
          %v4043 = vpop.f32.mrb[0].mxu0
          %v4044 = vadd.f32 0.0, %v4043
          %v4045 = vpop.f32.mrb[0].mxu0
          %4046 = vmatprep.mubr.bf16.mxu0 0
          %4047 = vmatmul.mubr.bf16.gmra.mrb[0].mxu0 %v3928
          %v4048 = vpop.f32.mrb[0].mxu0
          %v4049 = vadd.f32 0.0, %v4048
          %v4050 = vpop.f32.mrb[0].mxu0
          %v4051 = vpop.f32.mrb[0].mxu0
          %v4052 = vadd.f32 0.0, %v4051
          %v4053 = vpop.f32.mrb[0].mxu0
          %4054 = vmatprep.mubr.bf16.mxu0 0
          %4055 = vmatmul.mubr.bf16.gmra.mrb[0].mxu0 %v3929
          %v4056 = vpop.f32.mrb[0].mxu0
          %v4057 = vadd.f32 0.0, %v4056
          %v4058 = vpop.f32.mrb[0].mxu0
          %v4059 = vpop.f32.mrb[0].mxu0
          %v4060 = vadd.f32 0.0, %v4059
          %v4061 = vpop.f32.mrb[0].mxu0
          %4062 = vmatprep.mubr.bf16.mxu0 0
          %4063 = vmatmul.mubr.bf16.gmra.mrb[0].mxu0 %v3930
          %v4064 = vpop.f32.mrb[0].mxu0
          %v4065 = vadd.f32 0.0, %v4064
          %v4066 = vpop.f32.mrb[0].mxu0
          %v4067 = vpop.f32.mrb[0].mxu0
          %v4068 = vadd.f32 0.0, %v4067
          %v4069 = vpop.f32.mrb[0].mxu0
          %4070 = vmatprep.mubr.bf16.mxu0 0
          %4071 = vmatmul.mubr.bf16.gmra.mrb[0].mxu0 %v3931
          %v4072 = vpop.f32.mrb[0].mxu0
          %v4073 = vadd.f32 0.0, %v4072
          %v4074 = vpop.f32.mrb[0].mxu0
          %v4075 = vpop.f32.mrb[0].mxu0
          %v4076 = vadd.f32 0.0, %v4075
          %v4077 = vpop.f32.mrb[0].mxu0
          %4078 = vmatprep.mubr.bf16.mxu0 0
          %4079 = vmatmul.mubr.bf16.gmra.mrb[0].mxu0 %v3932
          %v4080 = vpop.f32.mrb[0].mxu0
          %v4081 = vadd.f32 0.0, %v4080
          %v4082 = vpop.f32.mrb[0].mxu0
          %v4083 = vpop.f32.mrb[0].mxu0
          %v4084 = vadd.f32 0.0, %v4083
          %v4085 = vpop.f32.mrb[0].mxu0
          %4086 = vmatprep.mubr.bf16.mxu0 0
          %4087 = vmatmul.mubr.bf16.gmra.mrb[0].mxu0 %v3933
          %v4088 = vpop.f32.mrb[0].mxu0
          %v4089 = vadd.f32 0.0, %v4088
          %v4090 = vpop.f32.mrb[0].mxu0
          %v4091 = vpop.f32.mrb[0].mxu0
          %v4092 = vadd.f32 0.0, %v4091
          %v4093 = vpop.f32.mrb[0].mxu0
          %4094 = vdwg.mxu0
          %v4111 = vunpack.c.l.b16 %v3910
          %v4112 = vunpack.c.l.b16 %v3911
          %v4113 = vunpack.c.l.b16 %v3912
          %v4114 = vunpack.c.l.b16 %v3913
          %v4115 = vunpack.c.l.b16 %v3914
          %v4116 = vunpack.c.l.b16 %v3915
          %v4117 = vunpack.c.l.b16 %v3916
          %v4118 = vunpack.c.l.b16 %v3917
          %v4119 = vunpack.c.l.b16 %v3918
          %v4120 = vunpack.c.l.b16 %v3919
          %v4121 = vunpack.c.l.b16 %v3920
          %v4122 = vunpack.c.l.b16 %v3921
          %v4123 = vunpack.c.l.b16 %v3922
          %v4124 = vunpack.c.l.b16 %v3923
          %v4125 = vunpack.c.l.b16 %v3924
          %v4126 = vunpack.c.l.b16 %v3925
          %v4127 = vpack.c.b16 %v4112, %v4111
          %v4128 = vpack.c.b16 %v4114, %v4113
          %v4129 = vpack.c.b16 %v4116, %v4115
          %v4130 = vpack.c.b16 %v4118, %v4117
          %v4131 = vpack.c.b16 %v4120, %v4119
          %v4132 = vpack.c.b16 %v4122, %v4121
          %v4133 = vpack.c.b16 %v4124, %v4123
          %v4134 = vpack.c.b16 %v4126, %v4125
          %4143 = vmatprep.subr.bf16.mxu0 0
          %4144 = vmatpush1.bf16.msra.mxu0 %v4127
          %4145 = vmatprep.subr.bf16.mxu0 0
          %4146 = vmatpush1.bf16.msra.mxu0 %v4128
          %4147 = vmatprep.subr.bf16.mxu0 0
          %4148 = vmatpush1.bf16.msra.mxu0 %v4129
          %4149 = vmatprep.subr.bf16.mxu0 0
          %4150 = vmatpush1.bf16.msra.mxu0 %v4130
          %4151 = vmatprep.subr.bf16.mxu0 0
          %4152 = vmatpush1.bf16.msra.mxu0 %v4131
          %4153 = vmatprep.subr.bf16.mxu0 0
          %4154 = vmatpush1.bf16.msra.mxu0 %v4132
          %4155 = vmatprep.subr.bf16.mxu0 0
          %4156 = vmatpush1.bf16.msra.mxu0 %v4133
          %4157 = vmatprep.subr.bf16.mxu0 0
          %4158 = vmatpush1.bf16.msra.mxu0 %v4134
          %4159 = vmatprep.subr.bf16.mxu0 0
          %4160 = vmatpush1.bf16.msra.mxu0 0
          %4161 = vmatprep.subr.bf16.mxu0 0
          %4162 = vmatpush1.bf16.msra.mxu0 0
          %4163 = vmatprep.subr.bf16.mxu0 0
          %4164 = vmatpush1.bf16.msra.mxu0 0
          %4165 = vmatprep.subr.bf16.mxu0 0
          %4166 = vmatpush1.bf16.msra.mxu0 0
          %4167 = vmatprep.subr.bf16.mxu0 0
          %4168 = vmatpush1.bf16.msra.mxu0 0
          %4169 = vmatprep.subr.bf16.mxu0 0
          %4170 = vmatpush1.bf16.msra.mxu0 0
          %4171 = vmatprep.subr.bf16.mxu0 0
          %4172 = vmatpush1.bf16.msra.mxu0 0
          %4173 = vmatprep.subr.bf16.mxu0 0
          %4174 = vmatpush1.bf16.msra.mxu0 0
          %4175 = vmatprep.mubr.bf16.mxu0 0
          %4176 = vmatmul.mubr.bf16.gmra.mrb[0].mxu0 %v3902
          %v4177 = vpop.f32.mrb[0].mxu0
          %v4178 = vadd.f32 %v4033, %v4177
          %v4179 = vpop.f32.mrb[0].mxu0
          %v4180 = vpop.f32.mrb[0].mxu0
          %v4181 = vadd.f32 %v4036, %v4180
          %v4182 = vpop.f32.mrb[0].mxu0
          %4183 = vmatprep.mubr.bf16.mxu0 0
          %4184 = vmatmul.mubr.bf16.gmra.mrb[0].mxu0 %v3903
          %v4185 = vpop.f32.mrb[0].mxu0
          %v4186 = vadd.f32 %v4041, %v4185
          %v4187 = vpop.f32.mrb[0].mxu0
          %v4188 = vpop.f32.mrb[0].mxu0
          %v4189 = vadd.f32 %v4044, %v4188
          %v4190 = vpop.f32.mrb[0].mxu0
          %4191 = vmatprep.mubr.bf16.mxu0 0
          %4192 = vmatmul.mubr.bf16.gmra.mrb[0].mxu0 %v3904
          %v4193 = vpop.f32.mrb[0].mxu0
          %v4194 = vadd.f32 %v4049, %v4193
          %v4195 = vpop.f32.mrb[0].mxu0
          %v4196 = vpop.f32.mrb[0].mxu0
          %v4197 = vadd.f32 %v4052, %v4196
          %v4198 = vpop.f32.mrb[0].mxu0
          %4199 = vmatprep.mubr.bf16.mxu0 0
          %4200 = vmatmul.mubr.bf16.gmra.mrb[0].mxu0 %v3905
          %v4201 = vpop.f32.mrb[0].mxu0
          %v4202 = vadd.f32 %v4057, %v4201
          %v4203 = vpop.f32.mrb[0].mxu0
          %v4204 = vpop.f32.mrb[0].mxu0
          %v4205 = vadd.f32 %v4060, %v4204
          %v4206 = vpop.f32.mrb[0].mxu0
          %4207 = vmatprep.mubr.bf16.mxu0 0
          %4208 = vmatmul.mubr.bf16.gmra.mrb[0].mxu0 %v3906
          %v4209 = vpop.f32.mrb[0].mxu0
          %v4210 = vadd.f32 %v4065, %v4209
          %v4211 = vpop.f32.mrb[0].mxu0
          %v4212 = vpop.f32.mrb[0].mxu0
          %v4213 = vadd.f32 %v4068, %v4212
          %v4214 = vpop.f32.mrb[0].mxu0
          %4215 = vmatprep.mubr.bf16.mxu0 0
          %4216 = vmatmul.mubr.bf16.gmra.mrb[0].mxu0 %v3907
          %v4217 = vpop.f32.mrb[0].mxu0
          %v4218 = vadd.f32 %v4073, %v4217
          %v4219 = vpop.f32.mrb[0].mxu0
          %v4220 = vpop.f32.mrb[0].mxu0
          %v4221 = vadd.f32 %v4076, %v4220
          %v4222 = vpop.f32.mrb[0].mxu0
          %4223 = vmatprep.mubr.bf16.mxu0 0
          %4224 = vmatmul.mubr.bf16.gmra.mrb[0].mxu0 %v3908
          %v4225 = vpop.f32.mrb[0].mxu0
          %v4226 = vadd.f32 %v4081, %v4225
          %v4227 = vpop.f32.mrb[0].mxu0
          %v4228 = vpop.f32.mrb[0].mxu0
          %v4229 = vadd.f32 %v4084, %v4228
          %v4230 = vpop.f32.mrb[0].mxu0
          %4231 = vmatprep.mubr.bf16.mxu0 0
          %4232 = vmatmul.mubr.bf16.gmra.mrb[0].mxu0 %v3909
          %v4233 = vpop.f32.mrb[0].mxu0
          %v4234 = vadd.f32 %v4089, %v4233
          %v4235 = vpop.f32.mrb[0].mxu0
          %v4236 = vpop.f32.mrb[0].mxu0
          %v4237 = vadd.f32 %v4092, %v4236
          %v4238 = vpop.f32.mrb[0].mxu0
          %4239 = vdwg.mxu0
          %v4240 = vld [vmem:[%s25] sm:$0x1]
          %v4242 = vlaneseq
          %v4243 = vshrl.u32 %v4242, 7
          %v4244 = vsub.s32 0, %v4243
          %v4245 = vrot.slane %v4240, %v4244
          %v4247 = vadd.f32 %v4178, %v4245
          %v4248 = vadd.f32 %v4181, %v4245
          %v4249 = vadd.f32 %v4186, %v4245
          %v4250 = vadd.f32 %v4189, %v4245
          %v4251 = vadd.f32 %v4194, %v4245
          %v4252 = vadd.f32 %v4197, %v4245
          %v4253 = vadd.f32 %v4202, %v4245
          %v4254 = vadd.f32 %v4205, %v4245
          %v4255 = vadd.f32 %v4210, %v4245
          %v4256 = vadd.f32 %v4213, %v4245
          %v4257 = vadd.f32 %v4218, %v4245
          %v4258 = vadd.f32 %v4221, %v4245
          %v4259 = vadd.f32 %v4226, %v4245
          %v4260 = vadd.f32 %v4229, %v4245
          %v4261 = vadd.f32 %v4234, %v4245
          %v4262 = vadd.f32 %v4237, %v4245
          %4263 = vst [vmem:[#allocation21] sm:$0xff] %v4247
          %4264 = vst [vmem:[#allocation21 + $0x8] sm:$0xff] %v4248
          %4265 = vst [vmem:[#allocation21 + $0x10] sm:$0xff] %v4249
          %4266 = vst [vmem:[#allocation21 + $0x18] sm:$0xff] %v4250
          %4267 = vst [vmem:[#allocation21 + $0x20] sm:$0xff] %v4251
          %4268 = vst [vmem:[#allocation21 + $0x28] sm:$0xff] %v4252
          %4269 = vst [vmem:[#allocation21 + $0x30] sm:$0xff] %v4253
          %4270 = vst [vmem:[#allocation21 + $0x38] sm:$0xff] %v4254
          %4271 = vst [vmem:[#allocation21 + $0x40] sm:$0xff] %v4255
          %4272 = vst [vmem:[#allocation21 + $0x48] sm:$0xff] %v4256
          %4273 = vst [vmem:[#allocation21 + $0x50] sm:$0xff] %v4257
          %4274 = vst [vmem:[#allocation21 + $0x58] sm:$0xff] %v4258
          %4275 = vst [vmem:[#allocation21 + $0x60] sm:$0xff] %v4259
          %4276 = vst [vmem:[#allocation21 + $0x68] sm:$0xff] %v4260
          %4277 = vst [vmem:[#allocation21 + $0x70] sm:$0xff] %v4261
          %4278 = vst [vmem:[#allocation21 + $0x78] sm:$0xff] %v4262
        $region176: #{tpu_custom_call.1} parent=123 // pred_fallthru
          _
        // Predicated region
        $region177: #{tpu_custom_call.1} parent=123 // pred_check
          %p4279 = pneg %p667
        $region178: #{tpu_custom_call.1} parent=123 // pred_check_branch
          %4281 = sbr.rel (%p4279) target = $region180
        $region179: #{tpu_custom_call.1} parent=123 // pred_region
          %s4283 = ssub.s32 2048, 2048
          %4284 = vsyncadd [#allocation6], %s4283
          %s4285 = sshll.u32 [#allocation21], 4
          %s4286 = int_to_ptr.vmem [resolvable:$true] %s4285
          %4291 = dma.vmem_to_hbm [thread:$0]  %s4286, 2048, %s26, [#allocation6], 128, 128, 8
        $region180: #{tpu_custom_call.1} parent=123 // pred_fallthru
          _
        // Predicated region
        $region181: #{tpu_custom_call.1} parent=123 // pred_check
          %p4292 = pneg %p667
        $region182: #{tpu_custom_call.1} parent=123 // pred_check_branch
          %4294 = sbr.rel (%p4292) target = $region184
        $region183: #{tpu_custom_call.1} parent=123 // pred_region
          %4295 = dma.done [#allocation6], 2048
        $region184: #{tpu_custom_call.1} parent=123 // pred_fallthru
          _
      $region124: #{tpu_custom_call.1} parent=5 // pred_fallthru
        _
      %p4296 = scmp.le.s32.totalorder 2, %s43
      // Predicated region
      $region185: #{tpu_custom_call.1} parent=5 // pred_check
        %p4297 = pneg %p4296
      $region186: #{tpu_custom_call.1} parent=5 // pred_check_branch
        %4299 = sbr.rel (%p4297) target = $region188
      $region187: #{tpu_custom_call.1} parent=5 // pred_region
        %s4300 = ssub.s32 %s43, 2
      $region188: #{tpu_custom_call.1} parent=5 // pred_fallthru
        _
    $region6: #{tpu_custom_call.1} parent=1 // loop_footer
      %s47 = sadd.s32 1, %s43
    $region7: #{tpu_custom_call.1} parent=1 // loop_footer_branch
      %42 = sbr.rel target = $region3
    $region8: #{tpu_custom_call.1} parent=1 // loop_exit
      _
    %4301 = vsyncpa [#allocation5], 1
    %s4302 = scalar_lea.sflag [#allocation5], 1
    %4303 = vsyncpa %s4302, 1
    %4304 = vsyncpa [#allocation8], 1
    %4305 = vsyncpa [#allocation11], 1
    %4306 = vsyncpa [#allocation14], 1
    %s4307 = scalar_lea.sflag [#allocation14], 1
    %4308 = vsyncpa %s4307, 1
    %4309 = vsyncpa [#allocation17], 1
    %s4310 = scalar_lea.sflag [#allocation17], 1
    %4311 = vsyncpa %s4310, 1
    %4312 = vsyncpa [#allocation20], 1
    %4313 = vsyncpa [#allocation6], 1
    %s4314 = scalar_lea.sflag [#allocation6], 1
    %4315 = vsyncpa %s4314, 1

</llo_original>
